<compile_context>
chip_gen: v7x
topology: tpu7x:2x2x1
jax: 0.10.0
libtpu: 0.0.40
codegen_flags: <defaults>
</compile_context>

<pallas_src>
import jax
import jax.numpy as jnp
from jax import lax
from jax.experimental import pallas as pl
from jax.experimental.pallas import tpu as pltpu


# ----------------------------------------------------------------------------
# Fused Pallas kernel: L-layer LSTM recurrence + fc + sigmoid
# ----------------------------------------------------------------------------
def make_fused_kernel(n_layers, hidden_dim, seq_len, time_chunk):
    L = n_layers
    H = hidden_dim
    TC = time_chunk
    needs_mask = (seq_len % TC) != 0

    def kernel(x_ref, h0_ref, c0_ref, *rest):
        # rest layout:
        #   layer 0     : w_ih0_t (E,4H), w_hh0_t (H,4H), b0 (1,4H)
        #   layers 1..L : w_cat_l (2H,4H), b_l (1,4H)          [fused ih|hh]
        #   fc          : w_fc_t (H,O), b_fc (1,O)
        #   outputs     : sig_ref (BB,O), hN_ref (L,BB,H), cN_ref (L,BB,H)
        #   scratch     : xproj_sc (TC,BB,4H)
        n_w = 3 + 2 * (L - 1)
        w_refs = rest[:n_w]
        wfc_ref, bfc_ref = rest[n_w], rest[n_w + 1]
        sig_ref, hN_ref, cN_ref = rest[n_w + 2], rest[n_w + 3], rest[n_w + 4]
        xproj_sc = rest[n_w + 5]

        w_ih0, w_hh0, b0 = w_refs[0], w_refs[1], w_refs[2]
        upper = [(w_refs[3 + 2 * (l - 1)], w_refs[3 + 2 * (l - 1) + 1])
                 for l in range(1, L)]

        _, BB, E = x_ref.shape
        t_blk = pl.program_id(1)
        nt = pl.num_programs(1)

        # Output refs have a constant block index over t ("arbitrary" axis), so
        # they stay VMEM-resident across the whole time axis: accumulator pattern.
        @pl.when(t_blk == 0)
        def _init():
            hN_ref[...] = h0_ref[...]
            cN_ref[...] = c0_ref[...]

        # Hoisted layer-0 input projection for the whole chunk: one big MXU
        # matmul with the layer-0 bias folded in once (not per step).
        x_flat = x_ref[...].reshape(TC * BB, E)
        xproj_sc[...] = (
            jnp.dot(x_flat, w_ih0[...], preferred_element_type=jnp.float32)
            + b0[...]
        ).reshape(TC, BB, 4 * H)

        # Hoisted loop-invariant values (JAX does not CSE broadcast_in_dim
        # inside the loop).
        w_hh0_v = w_hh0[...]
        w_up = [wb[0][...] for wb in upper]
        b_up = [jnp.broadcast_to(wb[1][...], (BB, 4 * H)) for wb in upper]

        def lstm_cell(gates, c_prev):
            # Gate columns were permuted in the wrapper to [i, f, o | g]:
            # two contiguous nonlinearity passes instead of four H-wide slices.
            sg = jax.nn.sigmoid(gates[:, : 3 * H])
            g_g = jnp.tanh(gates[:, 3 * H:])
            i_g = sg[:, 0 * H: 1 * H]
            f_g = sg[:, 1 * H: 2 * H]
            o_g = sg[:, 2 * H: 3 * H]
            c_new = f_g * c_prev + i_g * g_g
            h_new = o_g * jnp.tanh(c_new)
            return h_new, c_new

        # Load state into the loop carry ONCE per chunk; no per-step VMEM h/c.
        h_carry = tuple(hN_ref[l] for l in range(L))
        c_carry = tuple(cN_ref[l] for l in range(L))

        def step(tl, carry):
            hs, cs = carry
            # Layer 0: only the recurrent matmul is on the serial path.
            gates = xproj_sc[tl] + jnp.dot(hs[0], w_hh0_v,
                                           preferred_element_type=jnp.float32)
            h_new, c_new = lstm_cell(gates, cs[0])
            new_hs = [h_new]
            new_cs = [c_new]
            # Upper layers: single fused dot on concat([h_below, h_l]).
            for l in range(1, L):
                inp = jnp.concatenate([new_hs[l - 1], hs[l]], axis=-1)
                gates = jnp.dot(inp, w_up[l - 1],
                                preferred_element_type=jnp.float32) + b_up[l - 1]
                h_new, c_new = lstm_cell(gates, cs[l])
                new_hs.append(h_new)
                new_cs.append(c_new)
            if needs_mask:
                valid = (t_blk * TC + tl) < seq_len
                new_hs = [jnp.where(valid, nh, oh) for nh, oh in zip(new_hs, hs)]
                new_cs = [jnp.where(valid, nc, oc) for nc, oc in zip(new_cs, cs)]
            return (tuple(new_hs), tuple(new_cs))

        hs_fin, cs_fin = lax.fori_loop(0, TC, step, (h_carry, c_carry),
                                       unroll=True)

        # Write the carried state back once per chunk.
        for l in range(L):
            hN_ref[l] = hs_fin[l]
            cN_ref[l] = cs_fin[l]

        # Final fc + sigmoid fused in (dropout is eval-mode identity).
        @pl.when(t_blk == nt - 1)
        def _final():
            sig_ref[...] = jax.nn.sigmoid(
                jnp.dot(hs_fin[L - 1], wfc_ref[...],
                        preferred_element_type=jnp.float32)
                + bfc_ref[...])

    return kernel


# ----------------------------------------------------------------------------
# Wrapper
# ----------------------------------------------------------------------------
def _reorder_gate_rows(w):
    """PyTorch gate blocks [i, f, g, o] (rows of size H) -> [i, f, o, g]."""
    H = w.shape[0] // 4
    return jnp.concatenate([w[: 2 * H], w[3 * H:], w[2 * H: 3 * H]], axis=0)


def _batch_block(bp, prefer_two_blocks, cap=64):
    # On v7x, cap the block at Bp/2 (multiple of 8) so the leading "parallel"
    # grid axis has >= 2 blocks and both TensorCores get work.
    if prefer_two_blocks and bp >= 16:
        cap = min(cap, max(8, (bp // 2) // 8 * 8))
    best = 8
    for c in range(8, min(bp, cap) + 1, 8):
        if bp % c == 0:
            best = c
    return best


def sentiment_rnn_forward(params, x_tokens, hidden, *, time_chunk_cap=None):
    """Mirrors SentimentRNN.forward (eval mode).

    x_tokens: (B, T) int32 token ids
    hidden:   (h0, c0) each of shape (no_layers, B, H)
    returns:  (sig_out (B,), (hN, cN))
    """
    h0_all, c0_all = hidden
    L, B, H = h0_all.shape
    _, T = x_tokens.shape

    device_kind = ""
    try:
        device_kind = jax.devices()[0].device_kind.lower()
    except Exception:  # pragma: no cover - CPU/interpret fallback
        pass
    is_v7 = "v7" in device_kind

    # Generation-aware VMEM budget and time-chunk size (v5e/v6e: 128 MiB
    # physical; v7x: 64 MiB).
    if time_chunk_cap is None:
        time_chunk_cap = 8 if is_v7 else 16
    vmem_limit = (48 if is_v7 else 96) * 1024 * 1024

    # Embedding gather directly in time-major order: no separate
    # (B,T,E)->(T,B,E) transpose / extra HBM round trip of the largest tensor.
    # TODO(synk): for large vocab keep the table in HBM (memory_space=pl.ANY)
    # and DMA-gather rows inside the kernel from scalar-prefetched token ids.
    x_tm = params["embedding"][x_tokens.T].astype(jnp.float32)     # (T, B, E)
    E = x_tm.shape[-1]

    # Pad batch to a multiple of 8 sublanes (f32); padded rows sliced off later.
    Bp = max(8, -(-B // 8) * 8)
    if Bp != B:
        pad = Bp - B
        x_tm = jnp.pad(x_tm, ((0, 0), (0, pad), (0, 0)))
        h0p = jnp.pad(h0_all, ((0, 0), (0, pad), (0, 0)))
        c0p = jnp.pad(c0_all, ((0, 0), (0, pad), (0, 0)))
    else:
        h0p, c0p = h0_all, c0_all

    # Time chunk: pad T up to a multiple of TC and mask tail steps in-kernel
    # (avoids degrading to TC=1 for awkward/prime T).
    TC = min(time_chunk_cap, T)
    Tp = -(-T // TC) * TC
    if Tp != T:
        x_tm = jnp.pad(x_tm, ((0, Tp - T), (0, 0), (0, 0)))
    nt = Tp // TC

    BB = _batch_block(Bp, is_v7)
    nb = Bp // BB
    O = params["w_fc"].shape[0]

    # Weights: gate columns permuted to [i, f, o | g]; upper layers get a single
    # fused (2H, 4H) [W_ih | W_hh] matrix. Kept in f32 for exact parity.
    # TODO(synk): on v6e/v7x, casting weights + dot inputs to bf16 (keeping
    # preferred_element_type=f32) gives ~3x MXU throughput at looser tolerance.
    w_ih0 = jnp.transpose(_reorder_gate_rows(params["w_ih_l0"]))    # (E, 4H)
    w_hh0 = jnp.transpose(_reorder_gate_rows(params["w_hh_l0"]))    # (H, 4H)
    b0 = _reorder_gate_rows(params["b_ih_l0"] + params["b_hh_l0"]).reshape(1, 4 * H)

    ins = [x_tm, h0p, c0p, w_ih0, w_hh0, b0]
    for l in range(1, L):
        w_ih_l = jnp.transpose(_reorder_gate_rows(params[f"w_ih_l{l}"]))   # (H, 4H)
        w_hh_l = jnp.transpose(_reorder_gate_rows(params[f"w_hh_l{l}"]))   # (H, 4H)
        w_cat = jnp.concatenate([w_ih_l, w_hh_l], axis=0)                  # (2H, 4H)
        b_l = _reorder_gate_rows(
            params[f"b_ih_l{l}"] + params[f"b_hh_l{l}"]).reshape(1, 4 * H)
        ins += [w_cat, b_l]
    ins += [jnp.transpose(params["w_fc"]), params["b_fc"].reshape(1, O)]

    out_shapes = (
        jax.ShapeDtypeStruct((Bp, O), jnp.float32),
        jax.ShapeDtypeStruct((L, Bp, H), jnp.float32),
        jax.ShapeDtypeStruct((L, Bp, H), jnp.float32),
    )
    out_specs = (
        pl.BlockSpec((BB, O), lambda b, t: (b, 0)),
        pl.BlockSpec((L, BB, H), lambda b, t: (0, b, 0)),
        pl.BlockSpec((L, BB, H), lambda b, t: (0, b, 0)),
    )

    def build_in_specs(single_buffer_weights):
        wkw = {}
        if single_buffer_weights:
            # Constant-index weights never change across grid steps; single
            # buffering halves their resident VMEM footprint (v7x headroom).
            wkw = dict(pipeline_mode=pl.Buffered(1))
        specs = [
            pl.BlockSpec((TC, BB, E), lambda b, t: (t, b, 0)),
            pl.BlockSpec((L, BB, H), lambda b, t: (0, b, 0)),
            pl.BlockSpec((L, BB, H), lambda b, t: (0, b, 0)),
            pl.BlockSpec((E, 4 * H), lambda b, t: (0, 0), **wkw),
            pl.BlockSpec((H, 4 * H), lambda b, t: (0, 0), **wkw),
            pl.BlockSpec((1, 4 * H), lambda b, t: (0, 0), **wkw),
        ]
        for _ in range(1, L):
            specs += [
                pl.BlockSpec((2 * H, 4 * H), lambda b, t: (0, 0), **wkw),
                pl.BlockSpec((1, 4 * H), lambda b, t: (0, 0), **wkw),
            ]
        specs += [
            pl.BlockSpec((H, O), lambda b, t: (0, 0), **wkw),
            pl.BlockSpec((1, O), lambda b, t: (0, 0), **wkw),
        ]
        return specs

    kernel = make_fused_kernel(L, H, T, TC)

    def run(single_buffer_weights):
        return pl.pallas_call(
            kernel,
            out_shape=out_shapes,
            grid_spec=pltpu.PrefetchScalarGridSpec(
                num_scalar_prefetch=0,
                grid=(nb, nt),
                in_specs=build_in_specs(single_buffer_weights),
                out_specs=out_specs,
                scratch_shapes=[pltpu.VMEM((TC, BB, 4 * H), jnp.float32)],
            ),
            compiler_params=pltpu.CompilerParams(
                dimension_semantics=("parallel", "arbitrary"),
                vmem_limit_bytes=vmem_limit),
        )(*ins)

    try:
        sig, hN, cN = run(True)
    except Exception:
        # Fallback if pipeline_mode=pl.Buffered(1) is unsupported on this JAX.
        sig, hN, cN = run(False)

    # sigmoid(fc(lstm_out)).view(B, -1)[:, -1] == last time step, last output dim.
    sig_out = sig[:B, -1]
    return sig_out, (hN[:, :B, :], cN[:, :B, :])


# ----------------------------------------------------------------------------
# Pure-JAX reference (for correctness check)
# ----------------------------------------------------------------------------
def reference_forward(params, x_tokens, hidden):
    h0_all, c0_all = hidden
    B, T = x_tokens.shape
    embeds = params["embedding"][x_tokens]              # (B, T, E)
    layer_in = embeds
    no_layers = h0_all.shape[0]
    h_fin, c_fin = [], []
    for l in range(no_layers):
        w_ih = params[f"w_ih_l{l}"]; w_hh = params[f"w_hh_l{l}"]
        b = params[f"b_ih_l{l}"] + params[f"b_hh_l{l}"]
        H = w_hh.shape[1]
        h = h0_all[l]; c = c0_all[l]
        outs = []
        for t in range(T):
            x_t = layer_in[:, t, :]
            gates = x_t @ w_ih.T + h @ w_hh.T + b
            i_g = jax.nn.sigmoid(gates[:, 0 * H:1 * H])
            f_g = jax.nn.sigmoid(gates[:, 1 * H:2 * H])
            g_g = jnp.tanh(gates[:, 2 * H:3 * H])
            o_g = jax.nn.sigmoid(gates[:, 3 * H:4 * H])
            c = f_g * c + i_g * g_g
            h = o_g * jnp.tanh(c)
            outs.append(h)
        layer_in = jnp.stack(outs, axis=1)               # (B, T, H)
        h_fin.append(h); c_fin.append(c)
    h_last = layer_in[:, -1, :]
    sig = jax.nn.sigmoid(h_last @ params["w_fc"].T + params["b_fc"])
    return sig[:, -1], jnp.stack(h_fin, 0), jnp.stack(c_fin, 0)


# ----------------------------------------------------------------------------
# Main
# ----------------------------------------------------------------------------
if __name__ == "__main__":
    batch = 2
    seq_len = 8
    vocab_size = 50
    embedding_dim = 32
    hidden_dim = 32
    no_layers = 2
    output_dim = 1

    key = jax.random.PRNGKey(0)
    ks = jax.random.split(key, 16)

    def u(k, shape, scale):
        return jax.random.uniform(k, shape, jnp.float32, -scale, scale)

    params = {}
    params["embedding"] = jax.random.normal(ks[0], (vocab_size, embedding_dim),
                                            jnp.float32) * 0.6
    s = 1.0 / jnp.sqrt(hidden_dim)
    ki = 1
    for l in range(no_layers):
        in_dim = embedding_dim if l == 0 else hidden_dim
        params[f"w_ih_l{l}"] = u(ks[ki + 0], (4 * hidden_dim, in_dim), s)
        params[f"w_hh_l{l}"] = u(ks[ki + 1], (4 * hidden_dim, hidden_dim), s)
        params[f"b_ih_l{l}"] = u(ks[ki + 2], (4 * hidden_dim,), s)
        params[f"b_hh_l{l}"] = u(ks[ki + 3], (4 * hidden_dim,), s)
        ki += 4
    params["w_fc"] = u(ks[ki + 0], (output_dim, hidden_dim), s)
    params["b_fc"] = u(ks[ki + 1], (output_dim,), s)

    x_tokens = jax.random.randint(ks[ki + 2], (batch, seq_len), 0, vocab_size,
                                  dtype=jnp.int32)
    h0 = jnp.zeros((no_layers, batch, hidden_dim), jnp.float32)
    c0 = jnp.zeros((no_layers, batch, hidden_dim), jnp.float32)

    # TODO(synk): nn.Dropout(0.5) treated as eval-mode identity (no RNG-matched dropout).
    sig_out, (hN, cN) = sentiment_rnn_forward(params, x_tokens, (h0, c0))
    jax.block_until_ready((sig_out, hN, cN))

    ref_sig, ref_hN, ref_cN = reference_forward(params, x_tokens, (h0, c0))
    assert sig_out.shape == (batch,)
    assert hN.shape == (no_layers, batch, hidden_dim)
    assert cN.shape == (no_layers, batch, hidden_dim)
    assert jnp.allclose(sig_out, ref_sig, atol=1e-4, rtol=1e-4)
    assert jnp.allclose(hN, ref_hN, atol=1e-4, rtol=1e-4)
    assert jnp.allclose(cN, ref_cN, atol=1e-4, rtol=1e-4)

    print("KERNEL_OK")
</pallas_src>

<mosaic_0001>
module attributes {stable_mosaic.version = 11 : i64} {
  func.func @kernel(%arg0: i32, %arg1: i32, %arg2: memref<8x8x32xf32, #tpu.memory_space<vmem>>, %arg3: memref<2x8x32xf32, #tpu.memory_space<vmem>>, %arg4: memref<2x8x32xf32, #tpu.memory_space<vmem>>, %arg5: memref<32x128xf32, #tpu.memory_space<vmem>>, %arg6: memref<32x128xf32, #tpu.memory_space<vmem>>, %arg7: memref<1x128xf32, #tpu.memory_space<vmem>>, %arg8: memref<64x128xf32, #tpu.memory_space<vmem>>, %arg9: memref<1x128xf32, #tpu.memory_space<vmem>>, %arg10: memref<32x1xf32, #tpu.memory_space<vmem>>, %arg11: memref<1x1xf32, #tpu.memory_space<vmem>>, %arg12: memref<8x1xf32, #tpu.memory_space<vmem>>, %arg13: memref<2x8x32xf32, #tpu.memory_space<vmem>>, %arg14: memref<2x8x32xf32, #tpu.memory_space<vmem>>, %arg15: memref<8x8x128xf32, #tpu.memory_space<vmem>>) attributes {dimension_semantics = [#tpu.dimension_semantics<parallel>, #tpu.dimension_semantics<arbitrary>], iteration_bounds = array<i64: 1, 1>, scalar_prefetch = 0 : i64, scratch_operands = 1 : i64, tpu.core_type = #tpu.core_type<tc>, window_params = [{transform_indices = @transform_0, window_bounds = array<i64: 8, 8, 32>}, {transform_indices = @transform_1, window_bounds = array<i64: 2, 8, 32>}, {transform_indices = @transform_2, window_bounds = array<i64: 2, 8, 32>}, {pipeline_mode = #tpu.pipeline_mode<synchronous>, transform_indices = @transform_3, window_bounds = array<i64: 32, 128>}, {pipeline_mode = #tpu.pipeline_mode<synchronous>, transform_indices = @transform_4, window_bounds = array<i64: 32, 128>}, {pipeline_mode = #tpu.pipeline_mode<synchronous>, transform_indices = @transform_5, window_bounds = array<i64: 1, 128>}, {pipeline_mode = #tpu.pipeline_mode<synchronous>, transform_indices = @transform_6, window_bounds = array<i64: 64, 128>}, {pipeline_mode = #tpu.pipeline_mode<synchronous>, transform_indices = @transform_7, window_bounds = array<i64: 1, 128>}, {pipeline_mode = #tpu.pipeline_mode<synchronous>, transform_indices = @transform_8, window_bounds = array<i64: 32, 1>}, {pipeline_mode = #tpu.pipeline_mode<synchronous>, transform_indices = @transform_9, window_bounds = array<i64: 1, 1>}, {transform_indices = @transform_10, window_bounds = array<i64: 8, 1>}, {transform_indices = @transform_11, window_bounds = array<i64: 2, 8, 32>}, {transform_indices = @transform_12, window_bounds = array<i64: 2, 8, 32>}]} {
    %c0_i32 = arith.constant 0 : i32
    %0 = arith.cmpi eq, %arg1, %c0_i32 : i32
    %1 = arith.extui %0 : i1 to i32
    %c0_i32_0 = arith.constant 0 : i32
    %2 = arith.cmpi ne, %1, %c0_i32_0 : i32
    scf.if %2 {
      %c0_90 = arith.constant 0 : index
      %c0_91 = arith.constant 0 : index
      %c0_92 = arith.constant 0 : index
      %360 = vector.load %arg3[%c0_90, %c0_91, %c0_92] : memref<2x8x32xf32, #tpu.memory_space<vmem>>, vector<2x8x32xf32>
      %c0_93 = arith.constant 0 : index
      %c0_94 = arith.constant 0 : index
      %c0_95 = arith.constant 0 : index
      %361 = vector.load %arg13[%c0_93, %c0_94, %c0_95] : memref<2x8x32xf32, #tpu.memory_space<vmem>>, vector<2x8x32xf32>
      tpu.vector_store %arg13[%c0_93, %c0_94, %c0_95], %360 {strides = array<i32>} : memref<2x8x32xf32, #tpu.memory_space<vmem>>, vector<2x8x32xf32>,
      %c0_96 = arith.constant 0 : index
      %c0_97 = arith.constant 0 : index
      %c0_98 = arith.constant 0 : index
      %362 = vector.load %arg4[%c0_96, %c0_97, %c0_98] : memref<2x8x32xf32, #tpu.memory_space<vmem>>, vector<2x8x32xf32>
      %c0_99 = arith.constant 0 : index
      %c0_100 = arith.constant 0 : index
      %c0_101 = arith.constant 0 : index
      %363 = vector.load %arg14[%c0_99, %c0_100, %c0_101] : memref<2x8x32xf32, #tpu.memory_space<vmem>>, vector<2x8x32xf32>
      tpu.vector_store %arg14[%c0_99, %c0_100, %c0_101], %362 {strides = array<i32>} : memref<2x8x32xf32, #tpu.memory_space<vmem>>, vector<2x8x32xf32>,
    } else {
    }
    %c0 = arith.constant 0 : index
    %c0_1 = arith.constant 0 : index
    %c0_2 = arith.constant 0 : index
    %3 = vector.load %arg2[%c0, %c0_1, %c0_2] : memref<8x8x32xf32, #tpu.memory_space<vmem>>, vector<8x8x32xf32>
    %4 = vector.shape_cast %3 : vector<8x8x32xf32> to vector<64x32xf32>
    %c0_3 = arith.constant 0 : index
    %c0_4 = arith.constant 0 : index
    %5 = vector.load %arg5[%c0_3, %c0_4] : memref<32x128xf32, #tpu.memory_space<vmem>>, vector<32x128xf32>
    %cst = arith.constant dense<0.000000e+00> : vector<64x128xf32>
    %6 = tpu.matmul %4, %5, %cst {dimension_numbers = #tpu.dot_dimension_numbers<[1], [0], [0], [1], [0, 0, 1, 1], [], []>} : vector<64x32xf32>, vector<32x128xf32>, vector<64x128xf32> -> vector<64x128xf32>
    %c0_5 = arith.constant 0 : index
    %c0_6 = arith.constant 0 : index
    %7 = vector.load %arg7[%c0_5, %c0_6] : memref<1x128xf32, #tpu.memory_space<vmem>>, vector<1x128xf32>
    %8 = vector.broadcast %7 : vector<1x128xf32> to vector<64x128xf32>
    %9 = arith.addf %6, %8 : vector<64x128xf32>
    %10 = vector.shape_cast %9 : vector<64x128xf32> to vector<8x8x128xf32>
    %c0_7 = arith.constant 0 : index
    %c0_8 = arith.constant 0 : index
    %c0_9 = arith.constant 0 : index
    %11 = vector.load %arg15[%c0_7, %c0_8, %c0_9] : memref<8x8x128xf32, #tpu.memory_space<vmem>>, vector<8x8x128xf32>
    tpu.vector_store %arg15[%c0_7, %c0_8, %c0_9], %10 {strides = array<i32>} : memref<8x8x128xf32, #tpu.memory_space<vmem>>, vector<8x8x128xf32>,
    %c0_10 = arith.constant 0 : index
    %c0_11 = arith.constant 0 : index
    %12 = vector.load %arg6[%c0_10, %c0_11] : memref<32x128xf32, #tpu.memory_space<vmem>>, vector<32x128xf32>
    %c0_12 = arith.constant 0 : index
    %c0_13 = arith.constant 0 : index
    %13 = vector.load %arg8[%c0_12, %c0_13] : memref<64x128xf32, #tpu.memory_space<vmem>>, vector<64x128xf32>
    %c0_14 = arith.constant 0 : index
    %c0_15 = arith.constant 0 : index
    %14 = vector.load %arg9[%c0_14, %c0_15] : memref<1x128xf32, #tpu.memory_space<vmem>>, vector<1x128xf32>
    %15 = vector.shape_cast %14 : vector<1x128xf32> to vector<1x128xf32>
    %16 = vector.broadcast %15 : vector<1x128xf32> to vector<8x128xf32>
    %c0_16 = arith.constant 0 : index
    %c0_17 = arith.constant 0 : index
    %c0_18 = arith.constant 0 : index
    %17 = vector.load %arg13[%c0_16, %c0_17, %c0_18] : memref<2x8x32xf32, #tpu.memory_space<vmem>>, vector<1x8x32xf32>
    %18 = vector.shape_cast %17 : vector<1x8x32xf32> to vector<8x32xf32>
    %c1 = arith.constant 1 : index
    %c0_19 = arith.constant 0 : index
    %c0_20 = arith.constant 0 : index
    %19 = vector.load %arg13[%c1, %c0_19, %c0_20] : memref<2x8x32xf32, #tpu.memory_space<vmem>>, vector<1x8x32xf32>
    %20 = vector.shape_cast %19 : vector<1x8x32xf32> to vector<8x32xf32>
    %c0_21 = arith.constant 0 : index
    %c0_22 = arith.constant 0 : index
    %c0_23 = arith.constant 0 : index
    %21 = vector.load %arg14[%c0_21, %c0_22, %c0_23] : memref<2x8x32xf32, #tpu.memory_space<vmem>>, vector<1x8x32xf32>
    %22 = vector.shape_cast %21 : vector<1x8x32xf32> to vector<8x32xf32>
    %c1_24 = arith.constant 1 : index
    %c0_25 = arith.constant 0 : index
    %c0_26 = arith.constant 0 : index
    %23 = vector.load %arg14[%c1_24, %c0_25, %c0_26] : memref<2x8x32xf32, #tpu.memory_space<vmem>>, vector<1x8x32xf32>
    %24 = vector.shape_cast %23 : vector<1x8x32xf32> to vector<8x32xf32>
    %c0_i32_27 = arith.constant 0 : i32
    %25 = arith.index_cast %c0_i32_27 : i32 to index
    %c0_28 = arith.constant 0 : index
    %c0_29 = arith.constant 0 : index
    %26 = vector.load %arg15[%25, %c0_28, %c0_29] : memref<8x8x128xf32, #tpu.memory_space<vmem>>, vector<1x8x128xf32>
    %27 = vector.shape_cast %26 : vector<1x8x128xf32> to vector<8x128xf32>
    %cst_30 = arith.constant dense<0.000000e+00> : vector<8x128xf32>
    %28 = tpu.matmul %18, %12, %cst_30 {dimension_numbers = #tpu.dot_dimension_numbers<[1], [0], [0], [1], [0, 0, 1, 1], [], []>} : vector<8x32xf32>, vector<32x128xf32>, vector<8x128xf32> -> vector<8x128xf32>
    %29 = arith.addf %27, %28 : vector<8x128xf32>
    %30 = vector.extract_strided_slice %29 {offsets = [0, 0], sizes = [8, 96], strides = [1, 1]} : vector<8x128xf32> to vector<8x96xf32>
    %31 = arith.negf %30 : vector<8x96xf32>
    %32 = math.exp %31 : vector<8x96xf32>
    %cst_31 = arith.constant 1.000000e+00 : f32
    %33 = vector.broadcast %cst_31 : f32 to vector<8x96xf32>
    %34 = arith.addf %33, %32 : vector<8x96xf32>
    %35 = arith.divf %33, %34 : vector<8x96xf32>
    %36 = vector.extract_strided_slice %29 {offsets = [0, 96], sizes = [8, 32], strides = [1, 1]} : vector<8x128xf32> to vector<8x32xf32>
    %37 = math.tanh %36 : vector<8x32xf32>
    %38 = vector.extract_strided_slice %35 {offsets = [0, 0], sizes = [8, 32], strides = [1, 1]} : vector<8x96xf32> to vector<8x32xf32>
    %39 = vector.extract_strided_slice %35 {offsets = [0, 32], sizes = [8, 32], strides = [1, 1]} : vector<8x96xf32> to vector<8x32xf32>
    %40 = vector.extract_strided_slice %35 {offsets = [0, 64], sizes = [8, 32], strides = [1, 1]} : vector<8x96xf32> to vector<8x32xf32>
    %41 = arith.mulf %39, %22 : vector<8x32xf32>
    %42 = arith.mulf %38, %37 : vector<8x32xf32>
    %43 = arith.addf %41, %42 : vector<8x32xf32>
    %44 = math.tanh %43 : vector<8x32xf32>
    %45 = arith.mulf %40, %44 : vector<8x32xf32>
    %46 = tpu.concatenate %45, %20 in 1 : vector<8x32xf32>, vector<8x32xf32> -> vector<8x64xf32>
    %cst_32 = arith.constant dense<0.000000e+00> : vector<8x128xf32>
    %47 = tpu.matmul %46, %13, %cst_32 {dimension_numbers = #tpu.dot_dimension_numbers<[1], [0], [0], [1], [0, 0, 1, 1], [], []>} : vector<8x64xf32>, vector<64x128xf32>, vector<8x128xf32> -> vector<8x128xf32>
    %48 = arith.addf %47, %16 : vector<8x128xf32>
    %49 = vector.extract_strided_slice %48 {offsets = [0, 0], sizes = [8, 96], strides = [1, 1]} : vector<8x128xf32> to vector<8x96xf32>
    %50 = arith.negf %49 : vector<8x96xf32>
    %51 = math.exp %50 : vector<8x96xf32>
    %cst_33 = arith.constant 1.000000e+00 : f32
    %52 = vector.broadcast %cst_33 : f32 to vector<8x96xf32>
    %53 = arith.addf %52, %51 : vector<8x96xf32>
    %54 = arith.divf %52, %53 : vector<8x96xf32>
    %55 = vector.extract_strided_slice %48 {offsets = [0, 96], sizes = [8, 32], strides = [1, 1]} : vector<8x128xf32> to vector<8x32xf32>
    %56 = math.tanh %55 : vector<8x32xf32>
    %57 = vector.extract_strided_slice %54 {offsets = [0, 0], sizes = [8, 32], strides = [1, 1]} : vector<8x96xf32> to vector<8x32xf32>
    %58 = vector.extract_strided_slice %54 {offsets = [0, 32], sizes = [8, 32], strides = [1, 1]} : vector<8x96xf32> to vector<8x32xf32>
    %59 = vector.extract_strided_slice %54 {offsets = [0, 64], sizes = [8, 32], strides = [1, 1]} : vector<8x96xf32> to vector<8x32xf32>
    %60 = arith.mulf %58, %24 : vector<8x32xf32>
    %61 = arith.mulf %57, %56 : vector<8x32xf32>
    %62 = arith.addf %60, %61 : vector<8x32xf32>
    %63 = math.tanh %62 : vector<8x32xf32>
    %64 = arith.mulf %59, %63 : vector<8x32xf32>
    %c1_i32 = arith.constant 1 : i32
    %65 = arith.index_cast %c1_i32 : i32 to index
    %c0_34 = arith.constant 0 : index
    %c0_35 = arith.constant 0 : index
    %66 = vector.load %arg15[%65, %c0_34, %c0_35] : memref<8x8x128xf32, #tpu.memory_space<vmem>>, vector<1x8x128xf32>
    %67 = vector.shape_cast %66 : vector<1x8x128xf32> to vector<8x128xf32>
    %cst_36 = arith.constant dense<0.000000e+00> : vector<8x128xf32>
    %68 = tpu.matmul %45, %12, %cst_36 {dimension_numbers = #tpu.dot_dimension_numbers<[1], [0], [0], [1], [0, 0, 1, 1], [], []>} : vector<8x32xf32>, vector<32x128xf32>, vector<8x128xf32> -> vector<8x128xf32>
    %69 = arith.addf %67, %68 : vector<8x128xf32>
    %70 = vector.extract_strided_slice %69 {offsets = [0, 0], sizes = [8, 96], strides = [1, 1]} : vector<8x128xf32> to vector<8x96xf32>
    %71 = arith.negf %70 : vector<8x96xf32>
    %72 = math.exp %71 : vector<8x96xf32>
    %cst_37 = arith.constant 1.000000e+00 : f32
    %73 = vector.broadcast %cst_37 : f32 to vector<8x96xf32>
    %74 = arith.addf %73, %72 : vector<8x96xf32>
    %75 = arith.divf %73, %74 : vector<8x96xf32>
    %76 = vector.extract_strided_slice %69 {offsets = [0, 96], sizes = [8, 32], strides = [1, 1]} : vector<8x128xf32> to vector<8x32xf32>
    %77 = math.tanh %76 : vector<8x32xf32>
    %78 = vector.extract_strided_slice %75 {offsets = [0, 0], sizes = [8, 32], strides = [1, 1]} : vector<8x96xf32> to vector<8x32xf32>
    %79 = vector.extract_strided_slice %75 {offsets = [0, 32], sizes = [8, 32], strides = [1, 1]} : vector<8x96xf32> to vector<8x32xf32>
    %80 = vector.extract_strided_slice %75 {offsets = [0, 64], sizes = [8, 32], strides = [1, 1]} : vector<8x96xf32> to vector<8x32xf32>
    %81 = arith.mulf %79, %43 : vector<8x32xf32>
    %82 = arith.mulf %78, %77 : vector<8x32xf32>
    %83 = arith.addf %81, %82 : vector<8x32xf32>
    %84 = math.tanh %83 : vector<8x32xf32>
    %85 = arith.mulf %80, %84 : vector<8x32xf32>
    %86 = tpu.concatenate %85, %64 in 1 : vector<8x32xf32>, vector<8x32xf32> -> vector<8x64xf32>
    %cst_38 = arith.constant dense<0.000000e+00> : vector<8x128xf32>
    %87 = tpu.matmul %86, %13, %cst_38 {dimension_numbers = #tpu.dot_dimension_numbers<[1], [0], [0], [1], [0, 0, 1, 1], [], []>} : vector<8x64xf32>, vector<64x128xf32>, vector<8x128xf32> -> vector<8x128xf32>
    %88 = arith.addf %87, %16 : vector<8x128xf32>
    %89 = vector.extract_strided_slice %88 {offsets = [0, 0], sizes = [8, 96], strides = [1, 1]} : vector<8x128xf32> to vector<8x96xf32>
    %90 = arith.negf %89 : vector<8x96xf32>
    %91 = math.exp %90 : vector<8x96xf32>
    %cst_39 = arith.constant 1.000000e+00 : f32
    %92 = vector.broadcast %cst_39 : f32 to vector<8x96xf32>
    %93 = arith.addf %92, %91 : vector<8x96xf32>
    %94 = arith.divf %92, %93 : vector<8x96xf32>
    %95 = vector.extract_strided_slice %88 {offsets = [0, 96], sizes = [8, 32], strides = [1, 1]} : vector<8x128xf32> to vector<8x32xf32>
    %96 = math.tanh %95 : vector<8x32xf32>
    %97 = vector.extract_strided_slice %94 {offsets = [0, 0], sizes = [8, 32], strides = [1, 1]} : vector<8x96xf32> to vector<8x32xf32>
    %98 = vector.extract_strided_slice %94 {offsets = [0, 32], sizes = [8, 32], strides = [1, 1]} : vector<8x96xf32> to vector<8x32xf32>
    %99 = vector.extract_strided_slice %94 {offsets = [0, 64], sizes = [8, 32], strides = [1, 1]} : vector<8x96xf32> to vector<8x32xf32>
    %100 = arith.mulf %98, %62 : vector<8x32xf32>
    %101 = arith.mulf %97, %96 : vector<8x32xf32>
    %102 = arith.addf %100, %101 : vector<8x32xf32>
    %103 = math.tanh %102 : vector<8x32xf32>
    %104 = arith.mulf %99, %103 : vector<8x32xf32>
    %c2_i32 = arith.constant 2 : i32
    %105 = arith.index_cast %c2_i32 : i32 to index
    %c0_40 = arith.constant 0 : index
    %c0_41 = arith.constant 0 : index
    %106 = vector.load %arg15[%105, %c0_40, %c0_41] : memref<8x8x128xf32, #tpu.memory_space<vmem>>, vector<1x8x128xf32>
    %107 = vector.shape_cast %106 : vector<1x8x128xf32> to vector<8x128xf32>
    %cst_42 = arith.constant dense<0.000000e+00> : vector<8x128xf32>
    %108 = tpu.matmul %85, %12, %cst_42 {dimension_numbers = #tpu.dot_dimension_numbers<[1], [0], [0], [1], [0, 0, 1, 1], [], []>} : vector<8x32xf32>, vector<32x128xf32>, vector<8x128xf32> -> vector<8x128xf32>
    %109 = arith.addf %107, %108 : vector<8x128xf32>
    %110 = vector.extract_strided_slice %109 {offsets = [0, 0], sizes = [8, 96], strides = [1, 1]} : vector<8x128xf32> to vector<8x96xf32>
    %111 = arith.negf %110 : vector<8x96xf32>
    %112 = math.exp %111 : vector<8x96xf32>
    %cst_43 = arith.constant 1.000000e+00 : f32
    %113 = vector.broadcast %cst_43 : f32 to vector<8x96xf32>
    %114 = arith.addf %113, %112 : vector<8x96xf32>
    %115 = arith.divf %113, %114 : vector<8x96xf32>
    %116 = vector.extract_strided_slice %109 {offsets = [0, 96], sizes = [8, 32], strides = [1, 1]} : vector<8x128xf32> to vector<8x32xf32>
    %117 = math.tanh %116 : vector<8x32xf32>
    %118 = vector.extract_strided_slice %115 {offsets = [0, 0], sizes = [8, 32], strides = [1, 1]} : vector<8x96xf32> to vector<8x32xf32>
    %119 = vector.extract_strided_slice %115 {offsets = [0, 32], sizes = [8, 32], strides = [1, 1]} : vector<8x96xf32> to vector<8x32xf32>
    %120 = vector.extract_strided_slice %115 {offsets = [0, 64], sizes = [8, 32], strides = [1, 1]} : vector<8x96xf32> to vector<8x32xf32>
    %121 = arith.mulf %119, %83 : vector<8x32xf32>
    %122 = arith.mulf %118, %117 : vector<8x32xf32>
    %123 = arith.addf %121, %122 : vector<8x32xf32>
    %124 = math.tanh %123 : vector<8x32xf32>
    %125 = arith.mulf %120, %124 : vector<8x32xf32>
    %126 = tpu.concatenate %125, %104 in 1 : vector<8x32xf32>, vector<8x32xf32> -> vector<8x64xf32>
    %cst_44 = arith.constant dense<0.000000e+00> : vector<8x128xf32>
    %127 = tpu.matmul %126, %13, %cst_44 {dimension_numbers = #tpu.dot_dimension_numbers<[1], [0], [0], [1], [0, 0, 1, 1], [], []>} : vector<8x64xf32>, vector<64x128xf32>, vector<8x128xf32> -> vector<8x128xf32>
    %128 = arith.addf %127, %16 : vector<8x128xf32>
    %129 = vector.extract_strided_slice %128 {offsets = [0, 0], sizes = [8, 96], strides = [1, 1]} : vector<8x128xf32> to vector<8x96xf32>
    %130 = arith.negf %129 : vector<8x96xf32>
    %131 = math.exp %130 : vector<8x96xf32>
    %cst_45 = arith.constant 1.000000e+00 : f32
    %132 = vector.broadcast %cst_45 : f32 to vector<8x96xf32>
    %133 = arith.addf %132, %131 : vector<8x96xf32>
    %134 = arith.divf %132, %133 : vector<8x96xf32>
    %135 = vector.extract_strided_slice %128 {offsets = [0, 96], sizes = [8, 32], strides = [1, 1]} : vector<8x128xf32> to vector<8x32xf32>
    %136 = math.tanh %135 : vector<8x32xf32>
    %137 = vector.extract_strided_slice %134 {offsets = [0, 0], sizes = [8, 32], strides = [1, 1]} : vector<8x96xf32> to vector<8x32xf32>
    %138 = vector.extract_strided_slice %134 {offsets = [0, 32], sizes = [8, 32], strides = [1, 1]} : vector<8x96xf32> to vector<8x32xf32>
    %139 = vector.extract_strided_slice %134 {offsets = [0, 64], sizes = [8, 32], strides = [1, 1]} : vector<8x96xf32> to vector<8x32xf32>
    %140 = arith.mulf %138, %102 : vector<8x32xf32>
    %141 = arith.mulf %137, %136 : vector<8x32xf32>
    %142 = arith.addf %140, %141 : vector<8x32xf32>
    %143 = math.tanh %142 : vector<8x32xf32>
    %144 = arith.mulf %139, %143 : vector<8x32xf32>
    %c3_i32 = arith.constant 3 : i32
    %145 = arith.index_cast %c3_i32 : i32 to index
    %c0_46 = arith.constant 0 : index
    %c0_47 = arith.constant 0 : index
    %146 = vector.load %arg15[%145, %c0_46, %c0_47] : memref<8x8x128xf32, #tpu.memory_space<vmem>>, vector<1x8x128xf32>
    %147 = vector.shape_cast %146 : vector<1x8x128xf32> to vector<8x128xf32>
    %cst_48 = arith.constant dense<0.000000e+00> : vector<8x128xf32>
    %148 = tpu.matmul %125, %12, %cst_48 {dimension_numbers = #tpu.dot_dimension_numbers<[1], [0], [0], [1], [0, 0, 1, 1], [], []>} : vector<8x32xf32>, vector<32x128xf32>, vector<8x128xf32> -> vector<8x128xf32>
    %149 = arith.addf %147, %148 : vector<8x128xf32>
    %150 = vector.extract_strided_slice %149 {offsets = [0, 0], sizes = [8, 96], strides = [1, 1]} : vector<8x128xf32> to vector<8x96xf32>
    %151 = arith.negf %150 : vector<8x96xf32>
    %152 = math.exp %151 : vector<8x96xf32>
    %cst_49 = arith.constant 1.000000e+00 : f32
    %153 = vector.broadcast %cst_49 : f32 to vector<8x96xf32>
    %154 = arith.addf %153, %152 : vector<8x96xf32>
    %155 = arith.divf %153, %154 : vector<8x96xf32>
    %156 = vector.extract_strided_slice %149 {offsets = [0, 96], sizes = [8, 32], strides = [1, 1]} : vector<8x128xf32> to vector<8x32xf32>
    %157 = math.tanh %156 : vector<8x32xf32>
    %158 = vector.extract_strided_slice %155 {offsets = [0, 0], sizes = [8, 32], strides = [1, 1]} : vector<8x96xf32> to vector<8x32xf32>
    %159 = vector.extract_strided_slice %155 {offsets = [0, 32], sizes = [8, 32], strides = [1, 1]} : vector<8x96xf32> to vector<8x32xf32>
    %160 = vector.extract_strided_slice %155 {offsets = [0, 64], sizes = [8, 32], strides = [1, 1]} : vector<8x96xf32> to vector<8x32xf32>
    %161 = arith.mulf %159, %123 : vector<8x32xf32>
    %162 = arith.mulf %158, %157 : vector<8x32xf32>
    %163 = arith.addf %161, %162 : vector<8x32xf32>
    %164 = math.tanh %163 : vector<8x32xf32>
    %165 = arith.mulf %160, %164 : vector<8x32xf32>
    %166 = tpu.concatenate %165, %144 in 1 : vector<8x32xf32>, vector<8x32xf32> -> vector<8x64xf32>
    %cst_50 = arith.constant dense<0.000000e+00> : vector<8x128xf32>
    %167 = tpu.matmul %166, %13, %cst_50 {dimension_numbers = #tpu.dot_dimension_numbers<[1], [0], [0], [1], [0, 0, 1, 1], [], []>} : vector<8x64xf32>, vector<64x128xf32>, vector<8x128xf32> -> vector<8x128xf32>
    %168 = arith.addf %167, %16 : vector<8x128xf32>
    %169 = vector.extract_strided_slice %168 {offsets = [0, 0], sizes = [8, 96], strides = [1, 1]} : vector<8x128xf32> to vector<8x96xf32>
    %170 = arith.negf %169 : vector<8x96xf32>
    %171 = math.exp %170 : vector<8x96xf32>
    %cst_51 = arith.constant 1.000000e+00 : f32
    %172 = vector.broadcast %cst_51 : f32 to vector<8x96xf32>
    %173 = arith.addf %172, %171 : vector<8x96xf32>
    %174 = arith.divf %172, %173 : vector<8x96xf32>
    %175 = vector.extract_strided_slice %168 {offsets = [0, 96], sizes = [8, 32], strides = [1, 1]} : vector<8x128xf32> to vector<8x32xf32>
    %176 = math.tanh %175 : vector<8x32xf32>
    %177 = vector.extract_strided_slice %174 {offsets = [0, 0], sizes = [8, 32], strides = [1, 1]} : vector<8x96xf32> to vector<8x32xf32>
    %178 = vector.extract_strided_slice %174 {offsets = [0, 32], sizes = [8, 32], strides = [1, 1]} : vector<8x96xf32> to vector<8x32xf32>
    %179 = vector.extract_strided_slice %174 {offsets = [0, 64], sizes = [8, 32], strides = [1, 1]} : vector<8x96xf32> to vector<8x32xf32>
    %180 = arith.mulf %178, %142 : vector<8x32xf32>
    %181 = arith.mulf %177, %176 : vector<8x32xf32>
    %182 = arith.addf %180, %181 : vector<8x32xf32>
    %183 = math.tanh %182 : vector<8x32xf32>
    %184 = arith.mulf %179, %183 : vector<8x32xf32>
    %c4_i32 = arith.constant 4 : i32
    %185 = arith.index_cast %c4_i32 : i32 to index
    %c0_52 = arith.constant 0 : index
    %c0_53 = arith.constant 0 : index
    %186 = vector.load %arg15[%185, %c0_52, %c0_53] : memref<8x8x128xf32, #tpu.memory_space<vmem>>, vector<1x8x128xf32>
    %187 = vector.shape_cast %186 : vector<1x8x128xf32> to vector<8x128xf32>
    %cst_54 = arith.constant dense<0.000000e+00> : vector<8x128xf32>
    %188 = tpu.matmul %165, %12, %cst_54 {dimension_numbers = #tpu.dot_dimension_numbers<[1], [0], [0], [1], [0, 0, 1, 1], [], []>} : vector<8x32xf32>, vector<32x128xf32>, vector<8x128xf32> -> vector<8x128xf32>
    %189 = arith.addf %187, %188 : vector<8x128xf32>
    %190 = vector.extract_strided_slice %189 {offsets = [0, 0], sizes = [8, 96], strides = [1, 1]} : vector<8x128xf32> to vector<8x96xf32>
    %191 = arith.negf %190 : vector<8x96xf32>
    %192 = math.exp %191 : vector<8x96xf32>
    %cst_55 = arith.constant 1.000000e+00 : f32
    %193 = vector.broadcast %cst_55 : f32 to vector<8x96xf32>
    %194 = arith.addf %193, %192 : vector<8x96xf32>
    %195 = arith.divf %193, %194 : vector<8x96xf32>
    %196 = vector.extract_strided_slice %189 {offsets = [0, 96], sizes = [8, 32], strides = [1, 1]} : vector<8x128xf32> to vector<8x32xf32>
    %197 = math.tanh %196 : vector<8x32xf32>
    %198 = vector.extract_strided_slice %195 {offsets = [0, 0], sizes = [8, 32], strides = [1, 1]} : vector<8x96xf32> to vector<8x32xf32>
    %199 = vector.extract_strided_slice %195 {offsets = [0, 32], sizes = [8, 32], strides = [1, 1]} : vector<8x96xf32> to vector<8x32xf32>
    %200 = vector.extract_strided_slice %195 {offsets = [0, 64], sizes = [8, 32], strides = [1, 1]} : vector<8x96xf32> to vector<8x32xf32>
    %201 = arith.mulf %199, %163 : vector<8x32xf32>
    %202 = arith.mulf %198, %197 : vector<8x32xf32>
    %203 = arith.addf %201, %202 : vector<8x32xf32>
    %204 = math.tanh %203 : vector<8x32xf32>
    %205 = arith.mulf %200, %204 : vector<8x32xf32>
    %206 = tpu.concatenate %205, %184 in 1 : vector<8x32xf32>, vector<8x32xf32> -> vector<8x64xf32>
    %cst_56 = arith.constant dense<0.000000e+00> : vector<8x128xf32>
    %207 = tpu.matmul %206, %13, %cst_56 {dimension_numbers = #tpu.dot_dimension_numbers<[1], [0], [0], [1], [0, 0, 1, 1], [], []>} : vector<8x64xf32>, vector<64x128xf32>, vector<8x128xf32> -> vector<8x128xf32>
    %208 = arith.addf %207, %16 : vector<8x128xf32>
    %209 = vector.extract_strided_slice %208 {offsets = [0, 0], sizes = [8, 96], strides = [1, 1]} : vector<8x128xf32> to vector<8x96xf32>
    %210 = arith.negf %209 : vector<8x96xf32>
    %211 = math.exp %210 : vector<8x96xf32>
    %cst_57 = arith.constant 1.000000e+00 : f32
    %212 = vector.broadcast %cst_57 : f32 to vector<8x96xf32>
    %213 = arith.addf %212, %211 : vector<8x96xf32>
    %214 = arith.divf %212, %213 : vector<8x96xf32>
    %215 = vector.extract_strided_slice %208 {offsets = [0, 96], sizes = [8, 32], strides = [1, 1]} : vector<8x128xf32> to vector<8x32xf32>
    %216 = math.tanh %215 : vector<8x32xf32>
    %217 = vector.extract_strided_slice %214 {offsets = [0, 0], sizes = [8, 32], strides = [1, 1]} : vector<8x96xf32> to vector<8x32xf32>
    %218 = vector.extract_strided_slice %214 {offsets = [0, 32], sizes = [8, 32], strides = [1, 1]} : vector<8x96xf32> to vector<8x32xf32>
    %219 = vector.extract_strided_slice %214 {offsets = [0, 64], sizes = [8, 32], strides = [1, 1]} : vector<8x96xf32> to vector<8x32xf32>
    %220 = arith.mulf %218, %182 : vector<8x32xf32>
    %221 = arith.mulf %217, %216 : vector<8x32xf32>
    %222 = arith.addf %220, %221 : vector<8x32xf32>
    %223 = math.tanh %222 : vector<8x32xf32>
    %224 = arith.mulf %219, %223 : vector<8x32xf32>
    %c5_i32 = arith.constant 5 : i32
    %225 = arith.index_cast %c5_i32 : i32 to index
    %c0_58 = arith.constant 0 : index
    %c0_59 = arith.constant 0 : index
    %226 = vector.load %arg15[%225, %c0_58, %c0_59] : memref<8x8x128xf32, #tpu.memory_space<vmem>>, vector<1x8x128xf32>
    %227 = vector.shape_cast %226 : vector<1x8x128xf32> to vector<8x128xf32>
    %cst_60 = arith.constant dense<0.000000e+00> : vector<8x128xf32>
    %228 = tpu.matmul %205, %12, %cst_60 {dimension_numbers = #tpu.dot_dimension_numbers<[1], [0], [0], [1], [0, 0, 1, 1], [], []>} : vector<8x32xf32>, vector<32x128xf32>, vector<8x128xf32> -> vector<8x128xf32>
    %229 = arith.addf %227, %228 : vector<8x128xf32>
    %230 = vector.extract_strided_slice %229 {offsets = [0, 0], sizes = [8, 96], strides = [1, 1]} : vector<8x128xf32> to vector<8x96xf32>
    %231 = arith.negf %230 : vector<8x96xf32>
    %232 = math.exp %231 : vector<8x96xf32>
    %cst_61 = arith.constant 1.000000e+00 : f32
    %233 = vector.broadcast %cst_61 : f32 to vector<8x96xf32>
    %234 = arith.addf %233, %232 : vector<8x96xf32>
    %235 = arith.divf %233, %234 : vector<8x96xf32>
    %236 = vector.extract_strided_slice %229 {offsets = [0, 96], sizes = [8, 32], strides = [1, 1]} : vector<8x128xf32> to vector<8x32xf32>
    %237 = math.tanh %236 : vector<8x32xf32>
    %238 = vector.extract_strided_slice %235 {offsets = [0, 0], sizes = [8, 32], strides = [1, 1]} : vector<8x96xf32> to vector<8x32xf32>
    %239 = vector.extract_strided_slice %235 {offsets = [0, 32], sizes = [8, 32], strides = [1, 1]} : vector<8x96xf32> to vector<8x32xf32>
    %240 = vector.extract_strided_slice %235 {offsets = [0, 64], sizes = [8, 32], strides = [1, 1]} : vector<8x96xf32> to vector<8x32xf32>
    %241 = arith.mulf %239, %203 : vector<8x32xf32>
    %242 = arith.mulf %238, %237 : vector<8x32xf32>
    %243 = arith.addf %241, %242 : vector<8x32xf32>
    %244 = math.tanh %243 : vector<8x32xf32>
    %245 = arith.mulf %240, %244 : vector<8x32xf32>
    %246 = tpu.concatenate %245, %224 in 1 : vector<8x32xf32>, vector<8x32xf32> -> vector<8x64xf32>
    %cst_62 = arith.constant dense<0.000000e+00> : vector<8x128xf32>
    %247 = tpu.matmul %246, %13, %cst_62 {dimension_numbers = #tpu.dot_dimension_numbers<[1], [0], [0], [1], [0, 0, 1, 1], [], []>} : vector<8x64xf32>, vector<64x128xf32>, vector<8x128xf32> -> vector<8x128xf32>
    %248 = arith.addf %247, %16 : vector<8x128xf32>
    %249 = vector.extract_strided_slice %248 {offsets = [0, 0], sizes = [8, 96], strides = [1, 1]} : vector<8x128xf32> to vector<8x96xf32>
    %250 = arith.negf %249 : vector<8x96xf32>
    %251 = math.exp %250 : vector<8x96xf32>
    %cst_63 = arith.constant 1.000000e+00 : f32
    %252 = vector.broadcast %cst_63 : f32 to vector<8x96xf32>
    %253 = arith.addf %252, %251 : vector<8x96xf32>
    %254 = arith.divf %252, %253 : vector<8x96xf32>
    %255 = vector.extract_strided_slice %248 {offsets = [0, 96], sizes = [8, 32], strides = [1, 1]} : vector<8x128xf32> to vector<8x32xf32>
    %256 = math.tanh %255 : vector<8x32xf32>
    %257 = vector.extract_strided_slice %254 {offsets = [0, 0], sizes = [8, 32], strides = [1, 1]} : vector<8x96xf32> to vector<8x32xf32>
    %258 = vector.extract_strided_slice %254 {offsets = [0, 32], sizes = [8, 32], strides = [1, 1]} : vector<8x96xf32> to vector<8x32xf32>
    %259 = vector.extract_strided_slice %254 {offsets = [0, 64], sizes = [8, 32], strides = [1, 1]} : vector<8x96xf32> to vector<8x32xf32>
    %260 = arith.mulf %258, %222 : vector<8x32xf32>
    %261 = arith.mulf %257, %256 : vector<8x32xf32>
    %262 = arith.addf %260, %261 : vector<8x32xf32>
    %263 = math.tanh %262 : vector<8x32xf32>
    %264 = arith.mulf %259, %263 : vector<8x32xf32>
    %c6_i32 = arith.constant 6 : i32
    %265 = arith.index_cast %c6_i32 : i32 to index
    %c0_64 = arith.constant 0 : index
    %c0_65 = arith.constant 0 : index
    %266 = vector.load %arg15[%265, %c0_64, %c0_65] : memref<8x8x128xf32, #tpu.memory_space<vmem>>, vector<1x8x128xf32>
    %267 = vector.shape_cast %266 : vector<1x8x128xf32> to vector<8x128xf32>
    %cst_66 = arith.constant dense<0.000000e+00> : vector<8x128xf32>
    %268 = tpu.matmul %245, %12, %cst_66 {dimension_numbers = #tpu.dot_dimension_numbers<[1], [0], [0], [1], [0, 0, 1, 1], [], []>} : vector<8x32xf32>, vector<32x128xf32>, vector<8x128xf32> -> vector<8x128xf32>
    %269 = arith.addf %267, %268 : vector<8x128xf32>
    %270 = vector.extract_strided_slice %269 {offsets = [0, 0], sizes = [8, 96], strides = [1, 1]} : vector<8x128xf32> to vector<8x96xf32>
    %271 = arith.negf %270 : vector<8x96xf32>
    %272 = math.exp %271 : vector<8x96xf32>
    %cst_67 = arith.constant 1.000000e+00 : f32
    %273 = vector.broadcast %cst_67 : f32 to vector<8x96xf32>
    %274 = arith.addf %273, %272 : vector<8x96xf32>
    %275 = arith.divf %273, %274 : vector<8x96xf32>
    %276 = vector.extract_strided_slice %269 {offsets = [0, 96], sizes = [8, 32], strides = [1, 1]} : vector<8x128xf32> to vector<8x32xf32>
    %277 = math.tanh %276 : vector<8x32xf32>
    %278 = vector.extract_strided_slice %275 {offsets = [0, 0], sizes = [8, 32], strides = [1, 1]} : vector<8x96xf32> to vector<8x32xf32>
    %279 = vector.extract_strided_slice %275 {offsets = [0, 32], sizes = [8, 32], strides = [1, 1]} : vector<8x96xf32> to vector<8x32xf32>
    %280 = vector.extract_strided_slice %275 {offsets = [0, 64], sizes = [8, 32], strides = [1, 1]} : vector<8x96xf32> to vector<8x32xf32>
    %281 = arith.mulf %279, %243 : vector<8x32xf32>
    %282 = arith.mulf %278, %277 : vector<8x32xf32>
    %283 = arith.addf %281, %282 : vector<8x32xf32>
    %284 = math.tanh %283 : vector<8x32xf32>
    %285 = arith.mulf %280, %284 : vector<8x32xf32>
    %286 = tpu.concatenate %285, %264 in 1 : vector<8x32xf32>, vector<8x32xf32> -> vector<8x64xf32>
    %cst_68 = arith.constant dense<0.000000e+00> : vector<8x128xf32>
    %287 = tpu.matmul %286, %13, %cst_68 {dimension_numbers = #tpu.dot_dimension_numbers<[1], [0], [0], [1], [0, 0, 1, 1], [], []>} : vector<8x64xf32>, vector<64x128xf32>, vector<8x128xf32> -> vector<8x128xf32>
    %288 = arith.addf %287, %16 : vector<8x128xf32>
    %289 = vector.extract_strided_slice %288 {offsets = [0, 0], sizes = [8, 96], strides = [1, 1]} : vector<8x128xf32> to vector<8x96xf32>
    %290 = arith.negf %289 : vector<8x96xf32>
    %291 = math.exp %290 : vector<8x96xf32>
    %cst_69 = arith.constant 1.000000e+00 : f32
    %292 = vector.broadcast %cst_69 : f32 to vector<8x96xf32>
    %293 = arith.addf %292, %291 : vector<8x96xf32>
    %294 = arith.divf %292, %293 : vector<8x96xf32>
    %295 = vector.extract_strided_slice %288 {offsets = [0, 96], sizes = [8, 32], strides = [1, 1]} : vector<8x128xf32> to vector<8x32xf32>
    %296 = math.tanh %295 : vector<8x32xf32>
    %297 = vector.extract_strided_slice %294 {offsets = [0, 0], sizes = [8, 32], strides = [1, 1]} : vector<8x96xf32> to vector<8x32xf32>
    %298 = vector.extract_strided_slice %294 {offsets = [0, 32], sizes = [8, 32], strides = [1, 1]} : vector<8x96xf32> to vector<8x32xf32>
    %299 = vector.extract_strided_slice %294 {offsets = [0, 64], sizes = [8, 32], strides = [1, 1]} : vector<8x96xf32> to vector<8x32xf32>
    %300 = arith.mulf %298, %262 : vector<8x32xf32>
    %301 = arith.mulf %297, %296 : vector<8x32xf32>
    %302 = arith.addf %300, %301 : vector<8x32xf32>
    %303 = math.tanh %302 : vector<8x32xf32>
    %304 = arith.mulf %299, %303 : vector<8x32xf32>
    %c7_i32 = arith.constant 7 : i32
    %305 = arith.index_cast %c7_i32 : i32 to index
    %c0_70 = arith.constant 0 : index
    %c0_71 = arith.constant 0 : index
    %306 = vector.load %arg15[%305, %c0_70, %c0_71] : memref<8x8x128xf32, #tpu.memory_space<vmem>>, vector<1x8x128xf32>
    %307 = vector.shape_cast %306 : vector<1x8x128xf32> to vector<8x128xf32>
    %cst_72 = arith.constant dense<0.000000e+00> : vector<8x128xf32>
    %308 = tpu.matmul %285, %12, %cst_72 {dimension_numbers = #tpu.dot_dimension_numbers<[1], [0], [0], [1], [0, 0, 1, 1], [], []>} : vector<8x32xf32>, vector<32x128xf32>, vector<8x128xf32> -> vector<8x128xf32>
    %309 = arith.addf %307, %308 : vector<8x128xf32>
    %310 = vector.extract_strided_slice %309 {offsets = [0, 0], sizes = [8, 96], strides = [1, 1]} : vector<8x128xf32> to vector<8x96xf32>
    %311 = arith.negf %310 : vector<8x96xf32>
    %312 = math.exp %311 : vector<8x96xf32>
    %cst_73 = arith.constant 1.000000e+00 : f32
    %313 = vector.broadcast %cst_73 : f32 to vector<8x96xf32>
    %314 = arith.addf %313, %312 : vector<8x96xf32>
    %315 = arith.divf %313, %314 : vector<8x96xf32>
    %316 = vector.extract_strided_slice %309 {offsets = [0, 96], sizes = [8, 32], strides = [1, 1]} : vector<8x128xf32> to vector<8x32xf32>
    %317 = math.tanh %316 : vector<8x32xf32>
    %318 = vector.extract_strided_slice %315 {offsets = [0, 0], sizes = [8, 32], strides = [1, 1]} : vector<8x96xf32> to vector<8x32xf32>
    %319 = vector.extract_strided_slice %315 {offsets = [0, 32], sizes = [8, 32], strides = [1, 1]} : vector<8x96xf32> to vector<8x32xf32>
    %320 = vector.extract_strided_slice %315 {offsets = [0, 64], sizes = [8, 32], strides = [1, 1]} : vector<8x96xf32> to vector<8x32xf32>
    %321 = arith.mulf %319, %283 : vector<8x32xf32>
    %322 = arith.mulf %318, %317 : vector<8x32xf32>
    %323 = arith.addf %321, %322 : vector<8x32xf32>
    %324 = math.tanh %323 : vector<8x32xf32>
    %325 = arith.mulf %320, %324 : vector<8x32xf32>
    %326 = tpu.concatenate %325, %304 in 1 : vector<8x32xf32>, vector<8x32xf32> -> vector<8x64xf32>
    %cst_74 = arith.constant dense<0.000000e+00> : vector<8x128xf32>
    %327 = tpu.matmul %326, %13, %cst_74 {dimension_numbers = #tpu.dot_dimension_numbers<[1], [0], [0], [1], [0, 0, 1, 1], [], []>} : vector<8x64xf32>, vector<64x128xf32>, vector<8x128xf32> -> vector<8x128xf32>
    %328 = arith.addf %327, %16 : vector<8x128xf32>
    %329 = vector.extract_strided_slice %328 {offsets = [0, 0], sizes = [8, 96], strides = [1, 1]} : vector<8x128xf32> to vector<8x96xf32>
    %330 = arith.negf %329 : vector<8x96xf32>
    %331 = math.exp %330 : vector<8x96xf32>
    %cst_75 = arith.constant 1.000000e+00 : f32
    %332 = vector.broadcast %cst_75 : f32 to vector<8x96xf32>
    %333 = arith.addf %332, %331 : vector<8x96xf32>
    %334 = arith.divf %332, %333 : vector<8x96xf32>
    %335 = vector.extract_strided_slice %328 {offsets = [0, 96], sizes = [8, 32], strides = [1, 1]} : vector<8x128xf32> to vector<8x32xf32>
    %336 = math.tanh %335 : vector<8x32xf32>
    %337 = vector.extract_strided_slice %334 {offsets = [0, 0], sizes = [8, 32], strides = [1, 1]} : vector<8x96xf32> to vector<8x32xf32>
    %338 = vector.extract_strided_slice %334 {offsets = [0, 32], sizes = [8, 32], strides = [1, 1]} : vector<8x96xf32> to vector<8x32xf32>
    %339 = vector.extract_strided_slice %334 {offsets = [0, 64], sizes = [8, 32], strides = [1, 1]} : vector<8x96xf32> to vector<8x32xf32>
    %340 = arith.mulf %338, %302 : vector<8x32xf32>
    %341 = arith.mulf %337, %336 : vector<8x32xf32>
    %342 = arith.addf %340, %341 : vector<8x32xf32>
    %343 = math.tanh %342 : vector<8x32xf32>
    %344 = arith.mulf %339, %343 : vector<8x32xf32>
    %c8_i32 = arith.constant 8 : i32
    %c0_76 = arith.constant 0 : index
    %c0_77 = arith.constant 0 : index
    %c0_78 = arith.constant 0 : index
    %345 = vector.load %arg13[%c0_76, %c0_77, %c0_78] : memref<2x8x32xf32, #tpu.memory_space<vmem>>, vector<1x8x32xf32>
    %346 = vector.shape_cast %345 : vector<1x8x32xf32> to vector<8x32xf32>
    %347 = vector.shape_cast %325 : vector<8x32xf32> to vector<1x8x32xf32>
    tpu.vector_store %arg13[%c0_76, %c0_77, %c0_78], %347 {strides = array<i32>} : memref<2x8x32xf32, #tpu.memory_space<vmem>>, vector<1x8x32xf32>,
    %c0_79 = arith.constant 0 : index
    %c0_80 = arith.constant 0 : index
    %c0_81 = arith.constant 0 : index
    %348 = vector.load %arg14[%c0_79, %c0_80, %c0_81] : memref<2x8x32xf32, #tpu.memory_space<vmem>>, vector<1x8x32xf32>
    %349 = vector.shape_cast %348 : vector<1x8x32xf32> to vector<8x32xf32>
    %350 = vector.shape_cast %323 : vector<8x32xf32> to vector<1x8x32xf32>
    tpu.vector_store %arg14[%c0_79, %c0_80, %c0_81], %350 {strides = array<i32>} : memref<2x8x32xf32, #tpu.memory_space<vmem>>, vector<1x8x32xf32>,
    %c1_82 = arith.constant 1 : index
    %c0_83 = arith.constant 0 : index
    %c0_84 = arith.constant 0 : index
    %351 = vector.load %arg13[%c1_82, %c0_83, %c0_84] : memref<2x8x32xf32, #tpu.memory_space<vmem>>, vector<1x8x32xf32>
    %352 = vector.shape_cast %351 : vector<1x8x32xf32> to vector<8x32xf32>
    %353 = vector.shape_cast %344 : vector<8x32xf32> to vector<1x8x32xf32>
    tpu.vector_store %arg13[%c1_82, %c0_83, %c0_84], %353 {strides = array<i32>} : memref<2x8x32xf32, #tpu.memory_space<vmem>>, vector<1x8x32xf32>,
    %c1_85 = arith.constant 1 : index
    %c0_86 = arith.constant 0 : index
    %c0_87 = arith.constant 0 : index
    %354 = vector.load %arg14[%c1_85, %c0_86, %c0_87] : memref<2x8x32xf32, #tpu.memory_space<vmem>>, vector<1x8x32xf32>
    %355 = vector.shape_cast %354 : vector<1x8x32xf32> to vector<8x32xf32>
    %356 = vector.shape_cast %342 : vector<8x32xf32> to vector<1x8x32xf32>
    tpu.vector_store %arg14[%c1_85, %c0_86, %c0_87], %356 {strides = array<i32>} : memref<2x8x32xf32, #tpu.memory_space<vmem>>, vector<1x8x32xf32>,
    %c0_i32_88 = arith.constant 0 : i32
    %357 = arith.cmpi eq, %arg1, %c0_i32_88 : i32
    %358 = arith.extui %357 : i1 to i32
    %c0_i32_89 = arith.constant 0 : i32
    %359 = arith.cmpi ne, %358, %c0_i32_89 : i32
    scf.if %359 {
      %c0_90 = arith.constant 0 : index
      %c0_91 = arith.constant 0 : index
      %360 = vector.load %arg10[%c0_90, %c0_91] : memref<32x1xf32, #tpu.memory_space<vmem>>, vector<32x1xf32>
      %cst_92 = arith.constant dense<0.000000e+00> : vector<8x1xf32>
      %361 = tpu.matmul %344, %360, %cst_92 {dimension_numbers = #tpu.dot_dimension_numbers<[1], [0], [0], [1], [0, 0, 1, 1], [], []>} : vector<8x32xf32>, vector<32x1xf32>, vector<8x1xf32> -> vector<8x1xf32>
      %c0_93 = arith.constant 0 : index
      %c0_94 = arith.constant 0 : index
      %362 = vector.load %arg11[%c0_93, %c0_94] : memref<1x1xf32, #tpu.memory_space<vmem>>, vector<1x1xf32>
      %363 = vector.broadcast %362 : vector<1x1xf32> to vector<8x1xf32>
      %364 = arith.addf %361, %363 : vector<8x1xf32>
      %365 = arith.negf %364 : vector<8x1xf32>
      %366 = math.exp %365 : vector<8x1xf32>
      %cst_95 = arith.constant 1.000000e+00 : f32
      %367 = vector.broadcast %cst_95 : f32 to vector<8x1xf32>
      %368 = arith.addf %367, %366 : vector<8x1xf32>
      %369 = arith.divf %367, %368 : vector<8x1xf32>
      %c0_96 = arith.constant 0 : index
      %c0_97 = arith.constant 0 : index
      %370 = vector.load %arg12[%c0_96, %c0_97] : memref<8x1xf32, #tpu.memory_space<vmem>>, vector<8x1xf32>
      tpu.vector_store %arg12[%c0_96, %c0_97], %369 {strides = array<i32>} : memref<8x1xf32, #tpu.memory_space<vmem>>, vector<8x1xf32>,
    } else {
    }
    return
  }
  func.func @transform_0(%arg0: i32, %arg1: i32) -> (i32, i32, i32) {
    %c0_i32 = arith.constant 0 : i32
    %c0_i32_0 = arith.constant 0 : i32
    return %arg1, %arg0, %c0_i32 : i32, i32, i32
  }
  func.func @transform_1(%arg0: i32, %arg1: i32) -> (i32, i32, i32) {
    %c0_i32 = arith.constant 0 : i32
    %c0_i32_0 = arith.constant 0 : i32
    %c0_i32_1 = arith.constant 0 : i32
    return %c0_i32, %arg0, %c0_i32_0 : i32, i32, i32
  }
  func.func @transform_2(%arg0: i32, %arg1: i32) -> (i32, i32, i32) {
    %c0_i32 = arith.constant 0 : i32
    %c0_i32_0 = arith.constant 0 : i32
    %c0_i32_1 = arith.constant 0 : i32
    return %c0_i32, %arg0, %c0_i32_0 : i32, i32, i32
  }
  func.func @transform_3(%arg0: i32, %arg1: i32) -> (i32, i32) {
    %c0_i32 = arith.constant 0 : i32
    %c0_i32_0 = arith.constant 0 : i32
    %c0_i32_1 = arith.constant 0 : i32
    return %c0_i32, %c0_i32_0 : i32, i32
  }
  func.func @transform_4(%arg0: i32, %arg1: i32) -> (i32, i32) {
    %c0_i32 = arith.constant 0 : i32
    %c0_i32_0 = arith.constant 0 : i32
    %c0_i32_1 = arith.constant 0 : i32
    return %c0_i32, %c0_i32_0 : i32, i32
  }
  func.func @transform_5(%arg0: i32, %arg1: i32) -> (i32, i32) {
    %c0_i32 = arith.constant 0 : i32
    %c0_i32_0 = arith.constant 0 : i32
    %c0_i32_1 = arith.constant 0 : i32
    return %c0_i32, %c0_i32_0 : i32, i32
  }
  func.func @transform_6(%arg0: i32, %arg1: i32) -> (i32, i32) {
    %c0_i32 = arith.constant 0 : i32
    %c0_i32_0 = arith.constant 0 : i32
    %c0_i32_1 = arith.constant 0 : i32
    return %c0_i32, %c0_i32_0 : i32, i32
  }
  func.func @transform_7(%arg0: i32, %arg1: i32) -> (i32, i32) {
    %c0_i32 = arith.constant 0 : i32
    %c0_i32_0 = arith.constant 0 : i32
    %c0_i32_1 = arith.constant 0 : i32
    return %c0_i32, %c0_i32_0 : i32, i32
  }
  func.func @transform_8(%arg0: i32, %arg1: i32) -> (i32, i32) {
    %c0_i32 = arith.constant 0 : i32
    %c0_i32_0 = arith.constant 0 : i32
    %c0_i32_1 = arith.constant 0 : i32
    return %c0_i32, %c0_i32_0 : i32, i32
  }
  func.func @transform_9(%arg0: i32, %arg1: i32) -> (i32, i32) {
    %c0_i32 = arith.constant 0 : i32
    %c0_i32_0 = arith.constant 0 : i32
    %c0_i32_1 = arith.constant 0 : i32
    return %c0_i32, %c0_i32_0 : i32, i32
  }
  func.func @transform_10(%arg0: i32, %arg1: i32) -> (i32, i32) {
    %c0_i32 = arith.constant 0 : i32
    %c0_i32_0 = arith.constant 0 : i32
    return %arg0, %c0_i32 : i32, i32
  }
  func.func @transform_11(%arg0: i32, %arg1: i32) -> (i32, i32, i32) {
    %c0_i32 = arith.constant 0 : i32
    %c0_i32_0 = arith.constant 0 : i32
    %c0_i32_1 = arith.constant 0 : i32
    return %c0_i32, %arg0, %c0_i32_0 : i32, i32, i32
  }
  func.func @transform_12(%arg0: i32, %arg1: i32) -> (i32, i32, i32) {
    %c0_i32 = arith.constant 0 : i32
    %c0_i32_0 = arith.constant 0 : i32
    %c0_i32_1 = arith.constant 0 : i32
    return %c0_i32, %arg0, %c0_i32_0 : i32, i32, i32
  }
}

module attributes {stable_mosaic.version = 11 : i64} {
  func.func @kernel(%arg0: i32, %arg1: i32, %arg2: memref<8x8x32xf32, #tpu.memory_space<vmem>>, %arg3: memref<2x8x32xf32, #tpu.memory_space<vmem>>, %arg4: memref<2x8x32xf32, #tpu.memory_space<vmem>>, %arg5: memref<32x128xf32, #tpu.memory_space<vmem>>, %arg6: memref<32x128xf32, #tpu.memory_space<vmem>>, %arg7: memref<1x128xf32, #tpu.memory_space<vmem>>, %arg8: memref<64x128xf32, #tpu.memory_space<vmem>>, %arg9: memref<1x128xf32, #tpu.memory_space<vmem>>, %arg10: memref<32x1xf32, #tpu.memory_space<vmem>>, %arg11: memref<1x1xf32, #tpu.memory_space<vmem>>, %arg12: memref<8x1xf32, #tpu.memory_space<vmem>>, %arg13: memref<2x8x32xf32, #tpu.memory_space<vmem>>, %arg14: memref<2x8x32xf32, #tpu.memory_space<vmem>>, %arg15: memref<8x8x128xf32, #tpu.memory_space<vmem>>) attributes {dimension_semantics = [#tpu.dimension_semantics<parallel>, #tpu.dimension_semantics<arbitrary>], iteration_bounds = array<i64: 1, 1>, scalar_prefetch = 0 : i64, scratch_operands = 1 : i64, tpu.core_type = #tpu.core_type<tc>, window_params = [{transform_indices = @transform_0, window_bounds = array<i64: 8, 8, 32>}, {transform_indices = @transform_1, window_bounds = array<i64: 2, 8, 32>}, {transform_indices = @transform_2, window_bounds = array<i64: 2, 8, 32>}, {pipeline_mode = #tpu.pipeline_mode<synchronous>, transform_indices = @transform_3, window_bounds = array<i64: 32, 128>}, {pipeline_mode = #tpu.pipeline_mode<synchronous>, transform_indices = @transform_4, window_bounds = array<i64: 32, 128>}, {pipeline_mode = #tpu.pipeline_mode<synchronous>, transform_indices = @transform_5, window_bounds = array<i64: 1, 128>}, {pipeline_mode = #tpu.pipeline_mode<synchronous>, transform_indices = @transform_6, window_bounds = array<i64: 64, 128>}, {pipeline_mode = #tpu.pipeline_mode<synchronous>, transform_indices = @transform_7, window_bounds = array<i64: 1, 128>}, {pipeline_mode = #tpu.pipeline_mode<synchronous>, transform_indices = @transform_8, window_bounds = array<i64: 32, 1>}, {pipeline_mode = #tpu.pipeline_mode<synchronous>, transform_indices = @transform_9, window_bounds = array<i64: 1, 1>}, {transform_indices = @transform_10, window_bounds = array<i64: 8, 1>}, {transform_indices = @transform_11, window_bounds = array<i64: 2, 8, 32>}, {transform_indices = @transform_12, window_bounds = array<i64: 2, 8, 32>}]} {
    %c0_i32 = arith.constant 0 : i32
    %0 = arith.cmpi eq, %arg1, %c0_i32 : i32
    %1 = arith.extui %0 : i1 to i32
    %c0_i32_0 = arith.constant 0 : i32
    %2 = arith.cmpi ne, %1, %c0_i32_0 : i32
    scf.if %2 {
      %c0_90 = arith.constant 0 : index
      %c0_91 = arith.constant 0 : index
      %c0_92 = arith.constant 0 : index
      %360 = vector.load %arg3[%c0_90, %c0_91, %c0_92] : memref<2x8x32xf32, #tpu.memory_space<vmem>>, vector<2x8x32xf32>
      %c0_93 = arith.constant 0 : index
      %c0_94 = arith.constant 0 : index
      %c0_95 = arith.constant 0 : index
      %361 = vector.load %arg13[%c0_93, %c0_94, %c0_95] : memref<2x8x32xf32, #tpu.memory_space<vmem>>, vector<2x8x32xf32>
      tpu.vector_store %arg13[%c0_93, %c0_94, %c0_95], %360 {strides = array<i32>} : memref<2x8x32xf32, #tpu.memory_space<vmem>>, vector<2x8x32xf32>,
      %c0_96 = arith.constant 0 : index
      %c0_97 = arith.constant 0 : index
      %c0_98 = arith.constant 0 : index
      %362 = vector.load %arg4[%c0_96, %c0_97, %c0_98] : memref<2x8x32xf32, #tpu.memory_space<vmem>>, vector<2x8x32xf32>
      %c0_99 = arith.constant 0 : index
      %c0_100 = arith.constant 0 : index
      %c0_101 = arith.constant 0 : index
      %363 = vector.load %arg14[%c0_99, %c0_100, %c0_101] : memref<2x8x32xf32, #tpu.memory_space<vmem>>, vector<2x8x32xf32>
      tpu.vector_store %arg14[%c0_99, %c0_100, %c0_101], %362 {strides = array<i32>} : memref<2x8x32xf32, #tpu.memory_space<vmem>>, vector<2x8x32xf32>,
    } else {
    }
    %c0 = arith.constant 0 : index
    %c0_1 = arith.constant 0 : index
    %c0_2 = arith.constant 0 : index
    %3 = vector.load %arg2[%c0, %c0_1, %c0_2] : memref<8x8x32xf32, #tpu.memory_space<vmem>>, vector<8x8x32xf32>
    %4 = vector.shape_cast %3 : vector<8x8x32xf32> to vector<64x32xf32>
    %c0_3 = arith.constant 0 : index
    %c0_4 = arith.constant 0 : index
    %5 = vector.load %arg5[%c0_3, %c0_4] : memref<32x128xf32, #tpu.memory_space<vmem>>, vector<32x128xf32>
    %cst = arith.constant dense<0.000000e+00> : vector<64x128xf32>
    %6 = tpu.matmul %4, %5, %cst {dimension_numbers = #tpu.dot_dimension_numbers<[1], [0], [0], [1], [0, 0, 1, 1], [], []>} : vector<64x32xf32>, vector<32x128xf32>, vector<64x128xf32> -> vector<64x128xf32>
    %c0_5 = arith.constant 0 : index
    %c0_6 = arith.constant 0 : index
    %7 = vector.load %arg7[%c0_5, %c0_6] : memref<1x128xf32, #tpu.memory_space<vmem>>, vector<1x128xf32>
    %8 = vector.broadcast %7 : vector<1x128xf32> to vector<64x128xf32>
    %9 = arith.addf %6, %8 : vector<64x128xf32>
    %10 = vector.shape_cast %9 : vector<64x128xf32> to vector<8x8x128xf32>
    %c0_7 = arith.constant 0 : index
    %c0_8 = arith.constant 0 : index
    %c0_9 = arith.constant 0 : index
    %11 = vector.load %arg15[%c0_7, %c0_8, %c0_9] : memref<8x8x128xf32, #tpu.memory_space<vmem>>, vector<8x8x128xf32>
    tpu.vector_store %arg15[%c0_7, %c0_8, %c0_9], %10 {strides = array<i32>} : memref<8x8x128xf32, #tpu.memory_space<vmem>>, vector<8x8x128xf32>,
    %c0_10 = arith.constant 0 : index
    %c0_11 = arith.constant 0 : index
    %12 = vector.load %arg6[%c0_10, %c0_11] : memref<32x128xf32, #tpu.memory_space<vmem>>, vector<32x128xf32>
    %c0_12 = arith.constant 0 : index
    %c0_13 = arith.constant 0 : index
    %13 = vector.load %arg8[%c0_12, %c0_13] : memref<64x128xf32, #tpu.memory_space<vmem>>, vector<64x128xf32>
    %c0_14 = arith.constant 0 : index
    %c0_15 = arith.constant 0 : index
    %14 = vector.load %arg9[%c0_14, %c0_15] : memref<1x128xf32, #tpu.memory_space<vmem>>, vector<1x128xf32>
    %15 = vector.shape_cast %14 : vector<1x128xf32> to vector<1x128xf32>
    %16 = vector.broadcast %15 : vector<1x128xf32> to vector<8x128xf32>
    %c0_16 = arith.constant 0 : index
    %c0_17 = arith.constant 0 : index
    %c0_18 = arith.constant 0 : index
    %17 = vector.load %arg13[%c0_16, %c0_17, %c0_18] : memref<2x8x32xf32, #tpu.memory_space<vmem>>, vector<1x8x32xf32>
    %18 = vector.shape_cast %17 : vector<1x8x32xf32> to vector<8x32xf32>
    %c1 = arith.constant 1 : index
    %c0_19 = arith.constant 0 : index
    %c0_20 = arith.constant 0 : index
    %19 = vector.load %arg13[%c1, %c0_19, %c0_20] : memref<2x8x32xf32, #tpu.memory_space<vmem>>, vector<1x8x32xf32>
    %20 = vector.shape_cast %19 : vector<1x8x32xf32> to vector<8x32xf32>
    %c0_21 = arith.constant 0 : index
    %c0_22 = arith.constant 0 : index
    %c0_23 = arith.constant 0 : index
    %21 = vector.load %arg14[%c0_21, %c0_22, %c0_23] : memref<2x8x32xf32, #tpu.memory_space<vmem>>, vector<1x8x32xf32>
    %22 = vector.shape_cast %21 : vector<1x8x32xf32> to vector<8x32xf32>
    %c1_24 = arith.constant 1 : index
    %c0_25 = arith.constant 0 : index
    %c0_26 = arith.constant 0 : index
    %23 = vector.load %arg14[%c1_24, %c0_25, %c0_26] : memref<2x8x32xf32, #tpu.memory_space<vmem>>, vector<1x8x32xf32>
    %24 = vector.shape_cast %23 : vector<1x8x32xf32> to vector<8x32xf32>
    %c0_i32_27 = arith.constant 0 : i32
    %25 = arith.index_cast %c0_i32_27 : i32 to index
    %c0_28 = arith.constant 0 : index
    %c0_29 = arith.constant 0 : index
    %26 = vector.load %arg15[%25, %c0_28, %c0_29] : memref<8x8x128xf32, #tpu.memory_space<vmem>>, vector<1x8x128xf32>
    %27 = vector.shape_cast %26 : vector<1x8x128xf32> to vector<8x128xf32>
    %cst_30 = arith.constant dense<0.000000e+00> : vector<8x128xf32>
    %28 = tpu.matmul %18, %12, %cst_30 {dimension_numbers = #tpu.dot_dimension_numbers<[1], [0], [0], [1], [0, 0, 1, 1], [], []>} : vector<8x32xf32>, vector<32x128xf32>, vector<8x128xf32> -> vector<8x128xf32>
    %29 = arith.addf %27, %28 : vector<8x128xf32>
    %30 = vector.extract_strided_slice %29 {offsets = [0, 0], sizes = [8, 96], strides = [1, 1]} : vector<8x128xf32> to vector<8x96xf32>
    %31 = arith.negf %30 : vector<8x96xf32>
    %32 = math.exp %31 : vector<8x96xf32>
    %cst_31 = arith.constant 1.000000e+00 : f32
    %33 = vector.broadcast %cst_31 : f32 to vector<8x96xf32>
    %34 = arith.addf %33, %32 : vector<8x96xf32>
    %35 = arith.divf %33, %34 : vector<8x96xf32>
    %36 = vector.extract_strided_slice %29 {offsets = [0, 96], sizes = [8, 32], strides = [1, 1]} : vector<8x128xf32> to vector<8x32xf32>
    %37 = math.tanh %36 : vector<8x32xf32>
    %38 = vector.extract_strided_slice %35 {offsets = [0, 0], sizes = [8, 32], strides = [1, 1]} : vector<8x96xf32> to vector<8x32xf32>
    %39 = vector.extract_strided_slice %35 {offsets = [0, 32], sizes = [8, 32], strides = [1, 1]} : vector<8x96xf32> to vector<8x32xf32>
    %40 = vector.extract_strided_slice %35 {offsets = [0, 64], sizes = [8, 32], strides = [1, 1]} : vector<8x96xf32> to vector<8x32xf32>
    %41 = arith.mulf %39, %22 : vector<8x32xf32>
    %42 = arith.mulf %38, %37 : vector<8x32xf32>
    %43 = arith.addf %41, %42 : vector<8x32xf32>
    %44 = math.tanh %43 : vector<8x32xf32>
    %45 = arith.mulf %40, %44 : vector<8x32xf32>
    %46 = tpu.concatenate %45, %20 in 1 : vector<8x32xf32>, vector<8x32xf32> -> vector<8x64xf32>
    %cst_32 = arith.constant dense<0.000000e+00> : vector<8x128xf32>
    %47 = tpu.matmul %46, %13, %cst_32 {dimension_numbers = #tpu.dot_dimension_numbers<[1], [0], [0], [1], [0, 0, 1, 1], [], []>} : vector<8x64xf32>, vector<64x128xf32>, vector<8x128xf32> -> vector<8x128xf32>
    %48 = arith.addf %47, %16 : vector<8x128xf32>
    %49 = vector.extract_strided_slice %48 {offsets = [0, 0], sizes = [8, 96], strides = [1, 1]} : vector<8x128xf32> to vector<8x96xf32>
    %50 = arith.negf %49 : vector<8x96xf32>
    %51 = math.exp %50 : vector<8x96xf32>
    %cst_33 = arith.constant 1.000000e+00 : f32
    %52 = vector.broadcast %cst_33 : f32 to vector<8x96xf32>
    %53 = arith.addf %52, %51 : vector<8x96xf32>
    %54 = arith.divf %52, %53 : vector<8x96xf32>
    %55 = vector.extract_strided_slice %48 {offsets = [0, 96], sizes = [8, 32], strides = [1, 1]} : vector<8x128xf32> to vector<8x32xf32>
    %56 = math.tanh %55 : vector<8x32xf32>
    %57 = vector.extract_strided_slice %54 {offsets = [0, 0], sizes = [8, 32], strides = [1, 1]} : vector<8x96xf32> to vector<8x32xf32>
    %58 = vector.extract_strided_slice %54 {offsets = [0, 32], sizes = [8, 32], strides = [1, 1]} : vector<8x96xf32> to vector<8x32xf32>
    %59 = vector.extract_strided_slice %54 {offsets = [0, 64], sizes = [8, 32], strides = [1, 1]} : vector<8x96xf32> to vector<8x32xf32>
    %60 = arith.mulf %58, %24 : vector<8x32xf32>
    %61 = arith.mulf %57, %56 : vector<8x32xf32>
    %62 = arith.addf %60, %61 : vector<8x32xf32>
    %63 = math.tanh %62 : vector<8x32xf32>
    %64 = arith.mulf %59, %63 : vector<8x32xf32>
    %c1_i32 = arith.constant 1 : i32
    %65 = arith.index_cast %c1_i32 : i32 to index
    %c0_34 = arith.constant 0 : index
    %c0_35 = arith.constant 0 : index
    %66 = vector.load %arg15[%65, %c0_34, %c0_35] : memref<8x8x128xf32, #tpu.memory_space<vmem>>, vector<1x8x128xf32>
    %67 = vector.shape_cast %66 : vector<1x8x128xf32> to vector<8x128xf32>
    %cst_36 = arith.constant dense<0.000000e+00> : vector<8x128xf32>
    %68 = tpu.matmul %45, %12, %cst_36 {dimension_numbers = #tpu.dot_dimension_numbers<[1], [0], [0], [1], [0, 0, 1, 1], [], []>} : vector<8x32xf32>, vector<32x128xf32>, vector<8x128xf32> -> vector<8x128xf32>
    %69 = arith.addf %67, %68 : vector<8x128xf32>
    %70 = vector.extract_strided_slice %69 {offsets = [0, 0], sizes = [8, 96], strides = [1, 1]} : vector<8x128xf32> to vector<8x96xf32>
    %71 = arith.negf %70 : vector<8x96xf32>
    %72 = math.exp %71 : vector<8x96xf32>
    %cst_37 = arith.constant 1.000000e+00 : f32
    %73 = vector.broadcast %cst_37 : f32 to vector<8x96xf32>
    %74 = arith.addf %73, %72 : vector<8x96xf32>
    %75 = arith.divf %73, %74 : vector<8x96xf32>
    %76 = vector.extract_strided_slice %69 {offsets = [0, 96], sizes = [8, 32], strides = [1, 1]} : vector<8x128xf32> to vector<8x32xf32>
    %77 = math.tanh %76 : vector<8x32xf32>
    %78 = vector.extract_strided_slice %75 {offsets = [0, 0], sizes = [8, 32], strides = [1, 1]} : vector<8x96xf32> to vector<8x32xf32>
    %79 = vector.extract_strided_slice %75 {offsets = [0, 32], sizes = [8, 32], strides = [1, 1]} : vector<8x96xf32> to vector<8x32xf32>
    %80 = vector.extract_strided_slice %75 {offsets = [0, 64], sizes = [8, 32], strides = [1, 1]} : vector<8x96xf32> to vector<8x32xf32>
    %81 = arith.mulf %79, %43 : vector<8x32xf32>
    %82 = arith.mulf %78, %77 : vector<8x32xf32>
    %83 = arith.addf %81, %82 : vector<8x32xf32>
    %84 = math.tanh %83 : vector<8x32xf32>
    %85 = arith.mulf %80, %84 : vector<8x32xf32>
    %86 = tpu.concatenate %85, %64 in 1 : vector<8x32xf32>, vector<8x32xf32> -> vector<8x64xf32>
    %cst_38 = arith.constant dense<0.000000e+00> : vector<8x128xf32>
    %87 = tpu.matmul %86, %13, %cst_38 {dimension_numbers = #tpu.dot_dimension_numbers<[1], [0], [0], [1], [0, 0, 1, 1], [], []>} : vector<8x64xf32>, vector<64x128xf32>, vector<8x128xf32> -> vector<8x128xf32>
    %88 = arith.addf %87, %16 : vector<8x128xf32>
    %89 = vector.extract_strided_slice %88 {offsets = [0, 0], sizes = [8, 96], strides = [1, 1]} : vector<8x128xf32> to vector<8x96xf32>
    %90 = arith.negf %89 : vector<8x96xf32>
    %91 = math.exp %90 : vector<8x96xf32>
    %cst_39 = arith.constant 1.000000e+00 : f32
    %92 = vector.broadcast %cst_39 : f32 to vector<8x96xf32>
    %93 = arith.addf %92, %91 : vector<8x96xf32>
    %94 = arith.divf %92, %93 : vector<8x96xf32>
    %95 = vector.extract_strided_slice %88 {offsets = [0, 96], sizes = [8, 32], strides = [1, 1]} : vector<8x128xf32> to vector<8x32xf32>
    %96 = math.tanh %95 : vector<8x32xf32>
    %97 = vector.extract_strided_slice %94 {offsets = [0, 0], sizes = [8, 32], strides = [1, 1]} : vector<8x96xf32> to vector<8x32xf32>
    %98 = vector.extract_strided_slice %94 {offsets = [0, 32], sizes = [8, 32], strides = [1, 1]} : vector<8x96xf32> to vector<8x32xf32>
    %99 = vector.extract_strided_slice %94 {offsets = [0, 64], sizes = [8, 32], strides = [1, 1]} : vector<8x96xf32> to vector<8x32xf32>
    %100 = arith.mulf %98, %62 : vector<8x32xf32>
    %101 = arith.mulf %97, %96 : vector<8x32xf32>
    %102 = arith.addf %100, %101 : vector<8x32xf32>
    %103 = math.tanh %102 : vector<8x32xf32>
    %104 = arith.mulf %99, %103 : vector<8x32xf32>
    %c2_i32 = arith.constant 2 : i32
    %105 = arith.index_cast %c2_i32 : i32 to index
    %c0_40 = arith.constant 0 : index
    %c0_41 = arith.constant 0 : index
    %106 = vector.load %arg15[%105, %c0_40, %c0_41] : memref<8x8x128xf32, #tpu.memory_space<vmem>>, vector<1x8x128xf32>
    %107 = vector.shape_cast %106 : vector<1x8x128xf32> to vector<8x128xf32>
    %cst_42 = arith.constant dense<0.000000e+00> : vector<8x128xf32>
    %108 = tpu.matmul %85, %12, %cst_42 {dimension_numbers = #tpu.dot_dimension_numbers<[1], [0], [0], [1], [0, 0, 1, 1], [], []>} : vector<8x32xf32>, vector<32x128xf32>, vector<8x128xf32> -> vector<8x128xf32>
    %109 = arith.addf %107, %108 : vector<8x128xf32>
    %110 = vector.extract_strided_slice %109 {offsets = [0, 0], sizes = [8, 96], strides = [1, 1]} : vector<8x128xf32> to vector<8x96xf32>
    %111 = arith.negf %110 : vector<8x96xf32>
    %112 = math.exp %111 : vector<8x96xf32>
    %cst_43 = arith.constant 1.000000e+00 : f32
    %113 = vector.broadcast %cst_43 : f32 to vector<8x96xf32>
    %114 = arith.addf %113, %112 : vector<8x96xf32>
    %115 = arith.divf %113, %114 : vector<8x96xf32>
    %116 = vector.extract_strided_slice %109 {offsets = [0, 96], sizes = [8, 32], strides = [1, 1]} : vector<8x128xf32> to vector<8x32xf32>
    %117 = math.tanh %116 : vector<8x32xf32>
    %118 = vector.extract_strided_slice %115 {offsets = [0, 0], sizes = [8, 32], strides = [1, 1]} : vector<8x96xf32> to vector<8x32xf32>
    %119 = vector.extract_strided_slice %115 {offsets = [0, 32], sizes = [8, 32], strides = [1, 1]} : vector<8x96xf32> to vector<8x32xf32>
    %120 = vector.extract_strided_slice %115 {offsets = [0, 64], sizes = [8, 32], strides = [1, 1]} : vector<8x96xf32> to vector<8x32xf32>
    %121 = arith.mulf %119, %83 : vector<8x32xf32>
    %122 = arith.mulf %118, %117 : vector<8x32xf32>
    %123 = arith.addf %121, %122 : vector<8x32xf32>
    %124 = math.tanh %123 : vector<8x32xf32>
    %125 = arith.mulf %120, %124 : vector<8x32xf32>
    %126 = tpu.concatenate %125, %104 in 1 : vector<8x32xf32>, vector<8x32xf32> -> vector<8x64xf32>
    %cst_44 = arith.constant dense<0.000000e+00> : vector<8x128xf32>
    %127 = tpu.matmul %126, %13, %cst_44 {dimension_numbers = #tpu.dot_dimension_numbers<[1], [0], [0], [1], [0, 0, 1, 1], [], []>} : vector<8x64xf32>, vector<64x128xf32>, vector<8x128xf32> -> vector<8x128xf32>
    %128 = arith.addf %127, %16 : vector<8x128xf32>
    %129 = vector.extract_strided_slice %128 {offsets = [0, 0], sizes = [8, 96], strides = [1, 1]} : vector<8x128xf32> to vector<8x96xf32>
    %130 = arith.negf %129 : vector<8x96xf32>
    %131 = math.exp %130 : vector<8x96xf32>
    %cst_45 = arith.constant 1.000000e+00 : f32
    %132 = vector.broadcast %cst_45 : f32 to vector<8x96xf32>
    %133 = arith.addf %132, %131 : vector<8x96xf32>
    %134 = arith.divf %132, %133 : vector<8x96xf32>
    %135 = vector.extract_strided_slice %128 {offsets = [0, 96], sizes = [8, 32], strides = [1, 1]} : vector<8x128xf32> to vector<8x32xf32>
    %136 = math.tanh %135 : vector<8x32xf32>
    %137 = vector.extract_strided_slice %134 {offsets = [0, 0], sizes = [8, 32], strides = [1, 1]} : vector<8x96xf32> to vector<8x32xf32>
    %138 = vector.extract_strided_slice %134 {offsets = [0, 32], sizes = [8, 32], strides = [1, 1]} : vector<8x96xf32> to vector<8x32xf32>
    %139 = vector.extract_strided_slice %134 {offsets = [0, 64], sizes = [8, 32], strides = [1, 1]} : vector<8x96xf32> to vector<8x32xf32>
    %140 = arith.mulf %138, %102 : vector<8x32xf32>
    %141 = arith.mulf %137, %136 : vector<8x32xf32>
    %142 = arith.addf %140, %141 : vector<8x32xf32>
    %143 = math.tanh %142 : vector<8x32xf32>
    %144 = arith.mulf %139, %143 : vector<8x32xf32>
    %c3_i32 = arith.constant 3 : i32
    %145 = arith.index_cast %c3_i32 : i32 to index
    %c0_46 = arith.constant 0 : index
    %c0_47 = arith.constant 0 : index
    %146 = vector.load %arg15[%145, %c0_46, %c0_47] : memref<8x8x128xf32, #tpu.memory_space<vmem>>, vector<1x8x128xf32>
    %147 = vector.shape_cast %146 : vector<1x8x128xf32> to vector<8x128xf32>
    %cst_48 = arith.constant dense<0.000000e+00> : vector<8x128xf32>
    %148 = tpu.matmul %125, %12, %cst_48 {dimension_numbers = #tpu.dot_dimension_numbers<[1], [0], [0], [1], [0, 0, 1, 1], [], []>} : vector<8x32xf32>, vector<32x128xf32>, vector<8x128xf32> -> vector<8x128xf32>
    %149 = arith.addf %147, %148 : vector<8x128xf32>
    %150 = vector.extract_strided_slice %149 {offsets = [0, 0], sizes = [8, 96], strides = [1, 1]} : vector<8x128xf32> to vector<8x96xf32>
    %151 = arith.negf %150 : vector<8x96xf32>
    %152 = math.exp %151 : vector<8x96xf32>
    %cst_49 = arith.constant 1.000000e+00 : f32
    %153 = vector.broadcast %cst_49 : f32 to vector<8x96xf32>
    %154 = arith.addf %153, %152 : vector<8x96xf32>
    %155 = arith.divf %153, %154 : vector<8x96xf32>
    %156 = vector.extract_strided_slice %149 {offsets = [0, 96], sizes = [8, 32], strides = [1, 1]} : vector<8x128xf32> to vector<8x32xf32>
    %157 = math.tanh %156 : vector<8x32xf32>
    %158 = vector.extract_strided_slice %155 {offsets = [0, 0], sizes = [8, 32], strides = [1, 1]} : vector<8x96xf32> to vector<8x32xf32>
    %159 = vector.extract_strided_slice %155 {offsets = [0, 32], sizes = [8, 32], strides = [1, 1]} : vector<8x96xf32> to vector<8x32xf32>
    %160 = vector.extract_strided_slice %155 {offsets = [0, 64], sizes = [8, 32], strides = [1, 1]} : vector<8x96xf32> to vector<8x32xf32>
    %161 = arith.mulf %159, %123 : vector<8x32xf32>
    %162 = arith.mulf %158, %157 : vector<8x32xf32>
    %163 = arith.addf %161, %162 : vector<8x32xf32>
    %164 = math.tanh %163 : vector<8x32xf32>
    %165 = arith.mulf %160, %164 : vector<8x32xf32>
    %166 = tpu.concatenate %165, %144 in 1 : vector<8x32xf32>, vector<8x32xf32> -> vector<8x64xf32>
    %cst_50 = arith.constant dense<0.000000e+00> : vector<8x128xf32>
    %167 = tpu.matmul %166, %13, %cst_50 {dimension_numbers = #tpu.dot_dimension_numbers<[1], [0], [0], [1], [0, 0, 1, 1], [], []>} : vector<8x64xf32>, vector<64x128xf32>, vector<8x128xf32> -> vector<8x128xf32>
    %168 = arith.addf %167, %16 : vector<8x128xf32>
    %169 = vector.extract_strided_slice %168 {offsets = [0, 0], sizes = [8, 96], strides = [1, 1]} : vector<8x128xf32> to vector<8x96xf32>
    %170 = arith.negf %169 : vector<8x96xf32>
    %171 = math.exp %170 : vector<8x96xf32>
    %cst_51 = arith.constant 1.000000e+00 : f32
    %172 = vector.broadcast %cst_51 : f32 to vector<8x96xf32>
    %173 = arith.addf %172, %171 : vector<8x96xf32>
    %174 = arith.divf %172, %173 : vector<8x96xf32>
    %175 = vector.extract_strided_slice %168 {offsets = [0, 96], sizes = [8, 32], strides = [1, 1]} : vector<8x128xf32> to vector<8x32xf32>
    %176 = math.tanh %175 : vector<8x32xf32>
    %177 = vector.extract_strided_slice %174 {offsets = [0, 0], sizes = [8, 32], strides = [1, 1]} : vector<8x96xf32> to vector<8x32xf32>
    %178 = vector.extract_strided_slice %174 {offsets = [0, 32], sizes = [8, 32], strides = [1, 1]} : vector<8x96xf32> to vector<8x32xf32>
    %179 = vector.extract_strided_slice %174 {offsets = [0, 64], sizes = [8, 32], strides = [1, 1]} : vector<8x96xf32> to vector<8x32xf32>
    %180 = arith.mulf %178, %142 : vector<8x32xf32>
    %181 = arith.mulf %177, %176 : vector<8x32xf32>
    %182 = arith.addf %180, %181 : vector<8x32xf32>
    %183 = math.tanh %182 : vector<8x32xf32>
    %184 = arith.mulf %179, %183 : vector<8x32xf32>
    %c4_i32 = arith.constant 4 : i32
    %185 = arith.index_cast %c4_i32 : i32 to index
    %c0_52 = arith.constant 0 : index
    %c0_53 = arith.constant 0 : index
    %186 = vector.load %arg15[%185, %c0_52, %c0_53] : memref<8x8x128xf32, #tpu.memory_space<vmem>>, vector<1x8x128xf32>
    %187 = vector.shape_cast %186 : vector<1x8x128xf32> to vector<8x128xf32>
    %cst_54 = arith.constant dense<0.000000e+00> : vector<8x128xf32>
    %188 = tpu.matmul %165, %12, %cst_54 {dimension_numbers = #tpu.dot_dimension_numbers<[1], [0], [0], [1], [0, 0, 1, 1], [], []>} : vector<8x32xf32>, vector<32x128xf32>, vector<8x128xf32> -> vector<8x128xf32>
    %189 = arith.addf %187, %188 : vector<8x128xf32>
    %190 = vector.extract_strided_slice %189 {offsets = [0, 0], sizes = [8, 96], strides = [1, 1]} : vector<8x128xf32> to vector<8x96xf32>
    %191 = arith.negf %190 : vector<8x96xf32>
    %192 = math.exp %191 : vector<8x96xf32>
    %cst_55 = arith.constant 1.000000e+00 : f32
    %193 = vector.broadcast %cst_55 : f32 to vector<8x96xf32>
    %194 = arith.addf %193, %192 : vector<8x96xf32>
    %195 = arith.divf %193, %194 : vector<8x96xf32>
    %196 = vector.extract_strided_slice %189 {offsets = [0, 96], sizes = [8, 32], strides = [1, 1]} : vector<8x128xf32> to vector<8x32xf32>
    %197 = math.tanh %196 : vector<8x32xf32>
    %198 = vector.extract_strided_slice %195 {offsets = [0, 0], sizes = [8, 32], strides = [1, 1]} : vector<8x96xf32> to vector<8x32xf32>
    %199 = vector.extract_strided_slice %195 {offsets = [0, 32], sizes = [8, 32], strides = [1, 1]} : vector<8x96xf32> to vector<8x32xf32>
    %200 = vector.extract_strided_slice %195 {offsets = [0, 64], sizes = [8, 32], strides = [1, 1]} : vector<8x96xf32> to vector<8x32xf32>
    %201 = arith.mulf %199, %163 : vector<8x32xf32>
    %202 = arith.mulf %198, %197 : vector<8x32xf32>
    %203 = arith.addf %201, %202 : vector<8x32xf32>
    %204 = math.tanh %203 : vector<8x32xf32>
    %205 = arith.mulf %200, %204 : vector<8x32xf32>
    %206 = tpu.concatenate %205, %184 in 1 : vector<8x32xf32>, vector<8x32xf32> -> vector<8x64xf32>
    %cst_56 = arith.constant dense<0.000000e+00> : vector<8x128xf32>
    %207 = tpu.matmul %206, %13, %cst_56 {dimension_numbers = #tpu.dot_dimension_numbers<[1], [0], [0], [1], [0, 0, 1, 1], [], []>} : vector<8x64xf32>, vector<64x128xf32>, vector<8x128xf32> -> vector<8x128xf32>
    %208 = arith.addf %207, %16 : vector<8x128xf32>
    %209 = vector.extract_strided_slice %208 {offsets = [0, 0], sizes = [8, 96], strides = [1, 1]} : vector<8x128xf32> to vector<8x96xf32>
    %210 = arith.negf %209 : vector<8x96xf32>
    %211 = math.exp %210 : vector<8x96xf32>
    %cst_57 = arith.constant 1.000000e+00 : f32
    %212 = vector.broadcast %cst_57 : f32 to vector<8x96xf32>
    %213 = arith.addf %212, %211 : vector<8x96xf32>
    %214 = arith.divf %212, %213 : vector<8x96xf32>
    %215 = vector.extract_strided_slice %208 {offsets = [0, 96], sizes = [8, 32], strides = [1, 1]} : vector<8x128xf32> to vector<8x32xf32>
    %216 = math.tanh %215 : vector<8x32xf32>
    %217 = vector.extract_strided_slice %214 {offsets = [0, 0], sizes = [8, 32], strides = [1, 1]} : vector<8x96xf32> to vector<8x32xf32>
    %218 = vector.extract_strided_slice %214 {offsets = [0, 32], sizes = [8, 32], strides = [1, 1]} : vector<8x96xf32> to vector<8x32xf32>
    %219 = vector.extract_strided_slice %214 {offsets = [0, 64], sizes = [8, 32], strides = [1, 1]} : vector<8x96xf32> to vector<8x32xf32>
    %220 = arith.mulf %218, %182 : vector<8x32xf32>
    %221 = arith.mulf %217, %216 : vector<8x32xf32>
    %222 = arith.addf %220, %221 : vector<8x32xf32>
    %223 = math.tanh %222 : vector<8x32xf32>
    %224 = arith.mulf %219, %223 : vector<8x32xf32>
    %c5_i32 = arith.constant 5 : i32
    %225 = arith.index_cast %c5_i32 : i32 to index
    %c0_58 = arith.constant 0 : index
    %c0_59 = arith.constant 0 : index
    %226 = vector.load %arg15[%225, %c0_58, %c0_59] : memref<8x8x128xf32, #tpu.memory_space<vmem>>, vector<1x8x128xf32>
    %227 = vector.shape_cast %226 : vector<1x8x128xf32> to vector<8x128xf32>
    %cst_60 = arith.constant dense<0.000000e+00> : vector<8x128xf32>
    %228 = tpu.matmul %205, %12, %cst_60 {dimension_numbers = #tpu.dot_dimension_numbers<[1], [0], [0], [1], [0, 0, 1, 1], [], []>} : vector<8x32xf32>, vector<32x128xf32>, vector<8x128xf32> -> vector<8x128xf32>
    %229 = arith.addf %227, %228 : vector<8x128xf32>
    %230 = vector.extract_strided_slice %229 {offsets = [0, 0], sizes = [8, 96], strides = [1, 1]} : vector<8x128xf32> to vector<8x96xf32>
    %231 = arith.negf %230 : vector<8x96xf32>
    %232 = math.exp %231 : vector<8x96xf32>
    %cst_61 = arith.constant 1.000000e+00 : f32
    %233 = vector.broadcast %cst_61 : f32 to vector<8x96xf32>
    %234 = arith.addf %233, %232 : vector<8x96xf32>
    %235 = arith.divf %233, %234 : vector<8x96xf32>
    %236 = vector.extract_strided_slice %229 {offsets = [0, 96], sizes = [8, 32], strides = [1, 1]} : vector<8x128xf32> to vector<8x32xf32>
    %237 = math.tanh %236 : vector<8x32xf32>
    %238 = vector.extract_strided_slice %235 {offsets = [0, 0], sizes = [8, 32], strides = [1, 1]} : vector<8x96xf32> to vector<8x32xf32>
    %239 = vector.extract_strided_slice %235 {offsets = [0, 32], sizes = [8, 32], strides = [1, 1]} : vector<8x96xf32> to vector<8x32xf32>
    %240 = vector.extract_strided_slice %235 {offsets = [0, 64], sizes = [8, 32], strides = [1, 1]} : vector<8x96xf32> to vector<8x32xf32>
    %241 = arith.mulf %239, %203 : vector<8x32xf32>
    %242 = arith.mulf %238, %237 : vector<8x32xf32>
    %243 = arith.addf %241, %242 : vector<8x32xf32>
    %244 = math.tanh %243 : vector<8x32xf32>
    %245 = arith.mulf %240, %244 : vector<8x32xf32>
    %246 = tpu.concatenate %245, %224 in 1 : vector<8x32xf32>, vector<8x32xf32> -> vector<8x64xf32>
    %cst_62 = arith.constant dense<0.000000e+00> : vector<8x128xf32>
    %247 = tpu.matmul %246, %13, %cst_62 {dimension_numbers = #tpu.dot_dimension_numbers<[1], [0], [0], [1], [0, 0, 1, 1], [], []>} : vector<8x64xf32>, vector<64x128xf32>, vector<8x128xf32> -> vector<8x128xf32>
    %248 = arith.addf %247, %16 : vector<8x128xf32>
    %249 = vector.extract_strided_slice %248 {offsets = [0, 0], sizes = [8, 96], strides = [1, 1]} : vector<8x128xf32> to vector<8x96xf32>
    %250 = arith.negf %249 : vector<8x96xf32>
    %251 = math.exp %250 : vector<8x96xf32>
    %cst_63 = arith.constant 1.000000e+00 : f32
    %252 = vector.broadcast %cst_63 : f32 to vector<8x96xf32>
    %253 = arith.addf %252, %251 : vector<8x96xf32>
    %254 = arith.divf %252, %253 : vector<8x96xf32>
    %255 = vector.extract_strided_slice %248 {offsets = [0, 96], sizes = [8, 32], strides = [1, 1]} : vector<8x128xf32> to vector<8x32xf32>
    %256 = math.tanh %255 : vector<8x32xf32>
    %257 = vector.extract_strided_slice %254 {offsets = [0, 0], sizes = [8, 32], strides = [1, 1]} : vector<8x96xf32> to vector<8x32xf32>
    %258 = vector.extract_strided_slice %254 {offsets = [0, 32], sizes = [8, 32], strides = [1, 1]} : vector<8x96xf32> to vector<8x32xf32>
    %259 = vector.extract_strided_slice %254 {offsets = [0, 64], sizes = [8, 32], strides = [1, 1]} : vector<8x96xf32> to vector<8x32xf32>
    %260 = arith.mulf %258, %222 : vector<8x32xf32>
    %261 = arith.mulf %257, %256 : vector<8x32xf32>
    %262 = arith.addf %260, %261 : vector<8x32xf32>
    %263 = math.tanh %262 : vector<8x32xf32>
    %264 = arith.mulf %259, %263 : vector<8x32xf32>
    %c6_i32 = arith.constant 6 : i32
    %265 = arith.index_cast %c6_i32 : i32 to index
    %c0_64 = arith.constant 0 : index
    %c0_65 = arith.constant 0 : index
    %266 = vector.load %arg15[%265, %c0_64, %c0_65] : memref<8x8x128xf32, #tpu.memory_space<vmem>>, vector<1x8x128xf32>
    %267 = vector.shape_cast %266 : vector<1x8x128xf32> to vector<8x128xf32>
    %cst_66 = arith.constant dense<0.000000e+00> : vector<8x128xf32>
    %268 = tpu.matmul %245, %12, %cst_66 {dimension_numbers = #tpu.dot_dimension_numbers<[1], [0], [0], [1], [0, 0, 1, 1], [], []>} : vector<8x32xf32>, vector<32x128xf32>, vector<8x128xf32> -> vector<8x128xf32>
    %269 = arith.addf %267, %268 : vector<8x128xf32>
    %270 = vector.extract_strided_slice %269 {offsets = [0, 0], sizes = [8, 96], strides = [1, 1]} : vector<8x128xf32> to vector<8x96xf32>
    %271 = arith.negf %270 : vector<8x96xf32>
    %272 = math.exp %271 : vector<8x96xf32>
    %cst_67 = arith.constant 1.000000e+00 : f32
    %273 = vector.broadcast %cst_67 : f32 to vector<8x96xf32>
    %274 = arith.addf %273, %272 : vector<8x96xf32>
    %275 = arith.divf %273, %274 : vector<8x96xf32>
    %276 = vector.extract_strided_slice %269 {offsets = [0, 96], sizes = [8, 32], strides = [1, 1]} : vector<8x128xf32> to vector<8x32xf32>
    %277 = math.tanh %276 : vector<8x32xf32>
    %278 = vector.extract_strided_slice %275 {offsets = [0, 0], sizes = [8, 32], strides = [1, 1]} : vector<8x96xf32> to vector<8x32xf32>
    %279 = vector.extract_strided_slice %275 {offsets = [0, 32], sizes = [8, 32], strides = [1, 1]} : vector<8x96xf32> to vector<8x32xf32>
    %280 = vector.extract_strided_slice %275 {offsets = [0, 64], sizes = [8, 32], strides = [1, 1]} : vector<8x96xf32> to vector<8x32xf32>
    %281 = arith.mulf %279, %243 : vector<8x32xf32>
    %282 = arith.mulf %278, %277 : vector<8x32xf32>
    %283 = arith.addf %281, %282 : vector<8x32xf32>
    %284 = math.tanh %283 : vector<8x32xf32>
    %285 = arith.mulf %280, %284 : vector<8x32xf32>
    %286 = tpu.concatenate %285, %264 in 1 : vector<8x32xf32>, vector<8x32xf32> -> vector<8x64xf32>
    %cst_68 = arith.constant dense<0.000000e+00> : vector<8x128xf32>
    %287 = tpu.matmul %286, %13, %cst_68 {dimension_numbers = #tpu.dot_dimension_numbers<[1], [0], [0], [1], [0, 0, 1, 1], [], []>} : vector<8x64xf32>, vector<64x128xf32>, vector<8x128xf32> -> vector<8x128xf32>
    %288 = arith.addf %287, %16 : vector<8x128xf32>
    %289 = vector.extract_strided_slice %288 {offsets = [0, 0], sizes = [8, 96], strides = [1, 1]} : vector<8x128xf32> to vector<8x96xf32>
    %290 = arith.negf %289 : vector<8x96xf32>
    %291 = math.exp %290 : vector<8x96xf32>
    %cst_69 = arith.constant 1.000000e+00 : f32
    %292 = vector.broadcast %cst_69 : f32 to vector<8x96xf32>
    %293 = arith.addf %292, %291 : vector<8x96xf32>
    %294 = arith.divf %292, %293 : vector<8x96xf32>
    %295 = vector.extract_strided_slice %288 {offsets = [0, 96], sizes = [8, 32], strides = [1, 1]} : vector<8x128xf32> to vector<8x32xf32>
    %296 = math.tanh %295 : vector<8x32xf32>
    %297 = vector.extract_strided_slice %294 {offsets = [0, 0], sizes = [8, 32], strides = [1, 1]} : vector<8x96xf32> to vector<8x32xf32>
    %298 = vector.extract_strided_slice %294 {offsets = [0, 32], sizes = [8, 32], strides = [1, 1]} : vector<8x96xf32> to vector<8x32xf32>
    %299 = vector.extract_strided_slice %294 {offsets = [0, 64], sizes = [8, 32], strides = [1, 1]} : vector<8x96xf32> to vector<8x32xf32>
    %300 = arith.mulf %298, %262 : vector<8x32xf32>
    %301 = arith.mulf %297, %296 : vector<8x32xf32>
    %302 = arith.addf %300, %301 : vector<8x32xf32>
    %303 = math.tanh %302 : vector<8x32xf32>
    %304 = arith.mulf %299, %303 : vector<8x32xf32>
    %c7_i32 = arith.constant 7 : i32
    %305 = arith.index_cast %c7_i32 : i32 to index
    %c0_70 = arith.constant 0 : index
    %c0_71 = arith.constant 0 : index
    %306 = vector.load %arg15[%305, %c0_70, %c0_71] : memref<8x8x128xf32, #tpu.memory_space<vmem>>, vector<1x8x128xf32>
    %307 = vector.shape_cast %306 : vector<1x8x128xf32> to vector<8x128xf32>
    %cst_72 = arith.constant dense<0.000000e+00> : vector<8x128xf32>
    %308 = tpu.matmul %285, %12, %cst_72 {dimension_numbers = #tpu.dot_dimension_numbers<[1], [0], [0], [1], [0, 0, 1, 1], [], []>} : vector<8x32xf32>, vector<32x128xf32>, vector<8x128xf32> -> vector<8x128xf32>
    %309 = arith.addf %307, %308 : vector<8x128xf32>
    %310 = vector.extract_strided_slice %309 {offsets = [0, 0], sizes = [8, 96], strides = [1, 1]} : vector<8x128xf32> to vector<8x96xf32>
    %311 = arith.negf %310 : vector<8x96xf32>
    %312 = math.exp %311 : vector<8x96xf32>
    %cst_73 = arith.constant 1.000000e+00 : f32
    %313 = vector.broadcast %cst_73 : f32 to vector<8x96xf32>
    %314 = arith.addf %313, %312 : vector<8x96xf32>
    %315 = arith.divf %313, %314 : vector<8x96xf32>
    %316 = vector.extract_strided_slice %309 {offsets = [0, 96], sizes = [8, 32], strides = [1, 1]} : vector<8x128xf32> to vector<8x32xf32>
    %317 = math.tanh %316 : vector<8x32xf32>
    %318 = vector.extract_strided_slice %315 {offsets = [0, 0], sizes = [8, 32], strides = [1, 1]} : vector<8x96xf32> to vector<8x32xf32>
    %319 = vector.extract_strided_slice %315 {offsets = [0, 32], sizes = [8, 32], strides = [1, 1]} : vector<8x96xf32> to vector<8x32xf32>
    %320 = vector.extract_strided_slice %315 {offsets = [0, 64], sizes = [8, 32], strides = [1, 1]} : vector<8x96xf32> to vector<8x32xf32>
    %321 = arith.mulf %319, %283 : vector<8x32xf32>
    %322 = arith.mulf %318, %317 : vector<8x32xf32>
    %323 = arith.addf %321, %322 : vector<8x32xf32>
    %324 = math.tanh %323 : vector<8x32xf32>
    %325 = arith.mulf %320, %324 : vector<8x32xf32>
    %326 = tpu.concatenate %325, %304 in 1 : vector<8x32xf32>, vector<8x32xf32> -> vector<8x64xf32>
    %cst_74 = arith.constant dense<0.000000e+00> : vector<8x128xf32>
    %327 = tpu.matmul %326, %13, %cst_74 {dimension_numbers = #tpu.dot_dimension_numbers<[1], [0], [0], [1], [0, 0, 1, 1], [], []>} : vector<8x64xf32>, vector<64x128xf32>, vector<8x128xf32> -> vector<8x128xf32>
    %328 = arith.addf %327, %16 : vector<8x128xf32>
    %329 = vector.extract_strided_slice %328 {offsets = [0, 0], sizes = [8, 96], strides = [1, 1]} : vector<8x128xf32> to vector<8x96xf32>
    %330 = arith.negf %329 : vector<8x96xf32>
    %331 = math.exp %330 : vector<8x96xf32>
    %cst_75 = arith.constant 1.000000e+00 : f32
    %332 = vector.broadcast %cst_75 : f32 to vector<8x96xf32>
    %333 = arith.addf %332, %331 : vector<8x96xf32>
    %334 = arith.divf %332, %333 : vector<8x96xf32>
    %335 = vector.extract_strided_slice %328 {offsets = [0, 96], sizes = [8, 32], strides = [1, 1]} : vector<8x128xf32> to vector<8x32xf32>
    %336 = math.tanh %335 : vector<8x32xf32>
    %337 = vector.extract_strided_slice %334 {offsets = [0, 0], sizes = [8, 32], strides = [1, 1]} : vector<8x96xf32> to vector<8x32xf32>
    %338 = vector.extract_strided_slice %334 {offsets = [0, 32], sizes = [8, 32], strides = [1, 1]} : vector<8x96xf32> to vector<8x32xf32>
    %339 = vector.extract_strided_slice %334 {offsets = [0, 64], sizes = [8, 32], strides = [1, 1]} : vector<8x96xf32> to vector<8x32xf32>
    %340 = arith.mulf %338, %302 : vector<8x32xf32>
    %341 = arith.mulf %337, %336 : vector<8x32xf32>
    %342 = arith.addf %340, %341 : vector<8x32xf32>
    %343 = math.tanh %342 : vector<8x32xf32>
    %344 = arith.mulf %339, %343 : vector<8x32xf32>
    %c8_i32 = arith.constant 8 : i32
    %c0_76 = arith.constant 0 : index
    %c0_77 = arith.constant 0 : index
    %c0_78 = arith.constant 0 : index
    %345 = vector.load %arg13[%c0_76, %c0_77, %c0_78] : memref<2x8x32xf32, #tpu.memory_space<vmem>>, vector<1x8x32xf32>
    %346 = vector.shape_cast %345 : vector<1x8x32xf32> to vector<8x32xf32>
    %347 = vector.shape_cast %325 : vector<8x32xf32> to vector<1x8x32xf32>
    tpu.vector_store %arg13[%c0_76, %c0_77, %c0_78], %347 {strides = array<i32>} : memref<2x8x32xf32, #tpu.memory_space<vmem>>, vector<1x8x32xf32>,
    %c0_79 = arith.constant 0 : index
    %c0_80 = arith.constant 0 : index
    %c0_81 = arith.constant 0 : index
    %348 = vector.load %arg14[%c0_79, %c0_80, %c0_81] : memref<2x8x32xf32, #tpu.memory_space<vmem>>, vector<1x8x32xf32>
    %349 = vector.shape_cast %348 : vector<1x8x32xf32> to vector<8x32xf32>
    %350 = vector.shape_cast %323 : vector<8x32xf32> to vector<1x8x32xf32>
    tpu.vector_store %arg14[%c0_79, %c0_80, %c0_81], %350 {strides = array<i32>} : memref<2x8x32xf32, #tpu.memory_space<vmem>>, vector<1x8x32xf32>,
    %c1_82 = arith.constant 1 : index
    %c0_83 = arith.constant 0 : index
    %c0_84 = arith.constant 0 : index
    %351 = vector.load %arg13[%c1_82, %c0_83, %c0_84] : memref<2x8x32xf32, #tpu.memory_space<vmem>>, vector<1x8x32xf32>
    %352 = vector.shape_cast %351 : vector<1x8x32xf32> to vector<8x32xf32>
    %353 = vector.shape_cast %344 : vector<8x32xf32> to vector<1x8x32xf32>
    tpu.vector_store %arg13[%c1_82, %c0_83, %c0_84], %353 {strides = array<i32>} : memref<2x8x32xf32, #tpu.memory_space<vmem>>, vector<1x8x32xf32>,
    %c1_85 = arith.constant 1 : index
    %c0_86 = arith.constant 0 : index
    %c0_87 = arith.constant 0 : index
    %354 = vector.load %arg14[%c1_85, %c0_86, %c0_87] : memref<2x8x32xf32, #tpu.memory_space<vmem>>, vector<1x8x32xf32>
    %355 = vector.shape_cast %354 : vector<1x8x32xf32> to vector<8x32xf32>
    %356 = vector.shape_cast %342 : vector<8x32xf32> to vector<1x8x32xf32>
    tpu.vector_store %arg14[%c1_85, %c0_86, %c0_87], %356 {strides = array<i32>} : memref<2x8x32xf32, #tpu.memory_space<vmem>>, vector<1x8x32xf32>,
    %c0_i32_88 = arith.constant 0 : i32
    %357 = arith.cmpi eq, %arg1, %c0_i32_88 : i32
    %358 = arith.extui %357 : i1 to i32
    %c0_i32_89 = arith.constant 0 : i32
    %359 = arith.cmpi ne, %358, %c0_i32_89 : i32
    scf.if %359 {
      %c0_90 = arith.constant 0 : index
      %c0_91 = arith.constant 0 : index
      %360 = vector.load %arg10[%c0_90, %c0_91] : memref<32x1xf32, #tpu.memory_space<vmem>>, vector<32x1xf32>
      %cst_92 = arith.constant dense<0.000000e+00> : vector<8x1xf32>
      %361 = tpu.matmul %344, %360, %cst_92 {dimension_numbers = #tpu.dot_dimension_numbers<[1], [0], [0], [1], [0, 0, 1, 1], [], []>} : vector<8x32xf32>, vector<32x1xf32>, vector<8x1xf32> -> vector<8x1xf32>
      %c0_93 = arith.constant 0 : index
      %c0_94 = arith.constant 0 : index
      %362 = vector.load %arg11[%c0_93, %c0_94] : memref<1x1xf32, #tpu.memory_space<vmem>>, vector<1x1xf32>
      %363 = vector.broadcast %362 : vector<1x1xf32> to vector<8x1xf32>
      %364 = arith.addf %361, %363 : vector<8x1xf32>
      %365 = arith.negf %364 : vector<8x1xf32>
      %366 = math.exp %365 : vector<8x1xf32>
      %cst_95 = arith.constant 1.000000e+00 : f32
      %367 = vector.broadcast %cst_95 : f32 to vector<8x1xf32>
      %368 = arith.addf %367, %366 : vector<8x1xf32>
      %369 = arith.divf %367, %368 : vector<8x1xf32>
      %c0_96 = arith.constant 0 : index
      %c0_97 = arith.constant 0 : index
      %370 = vector.load %arg12[%c0_96, %c0_97] : memref<8x1xf32, #tpu.memory_space<vmem>>, vector<8x1xf32>
      tpu.vector_store %arg12[%c0_96, %c0_97], %369 {strides = array<i32>} : memref<8x1xf32, #tpu.memory_space<vmem>>, vector<8x1xf32>,
    } else {
    }
    return
  }
  func.func @transform_0(%arg0: i32, %arg1: i32) -> (i32, i32, i32) {
    %c0_i32 = arith.constant 0 : i32
    %c0_i32_0 = arith.constant 0 : i32
    return %arg1, %arg0, %c0_i32 : i32, i32, i32
  }
  func.func @transform_1(%arg0: i32, %arg1: i32) -> (i32, i32, i32) {
    %c0_i32 = arith.constant 0 : i32
    %c0_i32_0 = arith.constant 0 : i32
    %c0_i32_1 = arith.constant 0 : i32
    return %c0_i32, %arg0, %c0_i32_0 : i32, i32, i32
  }
  func.func @transform_2(%arg0: i32, %arg1: i32) -> (i32, i32, i32) {
    %c0_i32 = arith.constant 0 : i32
    %c0_i32_0 = arith.constant 0 : i32
    %c0_i32_1 = arith.constant 0 : i32
    return %c0_i32, %arg0, %c0_i32_0 : i32, i32, i32
  }
  func.func @transform_3(%arg0: i32, %arg1: i32) -> (i32, i32) {
    %c0_i32 = arith.constant 0 : i32
    %c0_i32_0 = arith.constant 0 : i32
    %c0_i32_1 = arith.constant 0 : i32
    return %c0_i32, %c0_i32_0 : i32, i32
  }
  func.func @transform_4(%arg0: i32, %arg1: i32) -> (i32, i32) {
    %c0_i32 = arith.constant 0 : i32
    %c0_i32_0 = arith.constant 0 : i32
    %c0_i32_1 = arith.constant 0 : i32
    return %c0_i32, %c0_i32_0 : i32, i32
  }
  func.func @transform_5(%arg0: i32, %arg1: i32) -> (i32, i32) {
    %c0_i32 = arith.constant 0 : i32
    %c0_i32_0 = arith.constant 0 : i32
    %c0_i32_1 = arith.constant 0 : i32
    return %c0_i32, %c0_i32_0 : i32, i32
  }
  func.func @transform_6(%arg0: i32, %arg1: i32) -> (i32, i32) {
    %c0_i32 = arith.constant 0 : i32
    %c0_i32_0 = arith.constant 0 : i32
    %c0_i32_1 = arith.constant 0 : i32
    return %c0_i32, %c0_i32_0 : i32, i32
  }
  func.func @transform_7(%arg0: i32, %arg1: i32) -> (i32, i32) {
    %c0_i32 = arith.constant 0 : i32
    %c0_i32_0 = arith.constant 0 : i32
    %c0_i32_1 = arith.constant 0 : i32
    return %c0_i32, %c0_i32_0 : i32, i32
  }
  func.func @transform_8(%arg0: i32, %arg1: i32) -> (i32, i32) {
    %c0_i32 = arith.constant 0 : i32
    %c0_i32_0 = arith.constant 0 : i32
    %c0_i32_1 = arith.constant 0 : i32
    return %c0_i32, %c0_i32_0 : i32, i32
  }
  func.func @transform_9(%arg0: i32, %arg1: i32) -> (i32, i32) {
    %c0_i32 = arith.constant 0 : i32
    %c0_i32_0 = arith.constant 0 : i32
    %c0_i32_1 = arith.constant 0 : i32
    return %c0_i32, %c0_i32_0 : i32, i32
  }
  func.func @transform_10(%arg0: i32, %arg1: i32) -> (i32, i32) {
    %c0_i32 = arith.constant 0 : i32
    %c0_i32_0 = arith.constant 0 : i32
    return %arg0, %c0_i32 : i32, i32
  }
  func.func @transform_11(%arg0: i32, %arg1: i32) -> (i32, i32, i32) {
    %c0_i32 = arith.constant 0 : i32
    %c0_i32_0 = arith.constant 0 : i32
    %c0_i32_1 = arith.constant 0 : i32
    return %c0_i32, %arg0, %c0_i32_0 : i32, i32, i32
  }
  func.func @transform_12(%arg0: i32, %arg1: i32) -> (i32, i32, i32) {
    %c0_i32 = arith.constant 0 : i32
    %c0_i32_0 = arith.constant 0 : i32
    %c0_i32_1 = arith.constant 0 : i32
    return %c0_i32, %arg0, %c0_i32_0 : i32, i32, i32
  }
}

</mosaic_0001>

<llo_original>
// kernel: tpu_custom_call.1
$region0: #{tpu_custom_call.1}
  #allocation0 [shape = 'u32[]', space=smem, size = 0x4, offset = 0x4, fixed_abs, tag = 'smem constant byte address 0x4 - core index']
  #allocation1 [shape = 'u32[144,128]{1,0:T(1,128)}', space=vmem, size = 0x12000, scoped, tag = 'internal scratch']
  #allocation2 [shape = 'f32[8,8,128]{2,1,0:T(8,128)}', space=vmem, size = 0x8000, scoped, tag = 'scratch operand']
  #allocation3 [shape = 'f32[1,1]{1,0:T(1,128)S(1)}', space=vmem, size = 0x200, scoped, tag = 'scoped memory for tpu_custom_call.1']
  %s0 = inlined_call_operand.hbm [shape: f32[8,8,32], index: 0, kind: input, shape index: {}]
  %s1 = inlined_call_operand.hbm [shape: f32[2,8,32], index: 1, kind: input, shape index: {}]
  %s2 = inlined_call_operand.hbm [shape: f32[2,8,32], index: 2, kind: input, shape index: {}]
  %s3 = inlined_call_operand.hbm [shape: f32[32,128], index: 3, kind: input, shape index: {}]
  %s4 = inlined_call_operand.hbm [shape: f32[32,128], index: 4, kind: input, shape index: {}]
  %s5 = inlined_call_operand.hbm [shape: f32[1,128], index: 5, kind: input, shape index: {}]
  %s6 = inlined_call_operand.hbm [shape: f32[64,128], index: 6, kind: input, shape index: {}]
  %s7 = inlined_call_operand.hbm [shape: f32[1,128], index: 7, kind: input, shape index: {}]
  %s8 = inlined_call_operand.hbm [shape: f32[32,1], index: 8, kind: input, shape index: {}]
  %s9 = inlined_call_operand.<no memory space> [shape: f32[1,1], index: 9, kind: input, shape index: {}]
  %s10 = inlined_call_operand.hbm [shape: f32[8,1], index: 10, kind: output, shape index: {0}]
  %s11 = inlined_call_operand.hbm [shape: f32[2,8,32], index: 11, kind: output, shape index: {1}]
  %s12 = inlined_call_operand.hbm [shape: f32[2,8,32], index: 12, kind: output, shape index: {2}]
  %13 = xla_tuple %s10, %s11, %s12
  %s14 = sld [smem:[#allocation0]]
  $region110: #{tpu_custom_call.1} parent=0
    _
  %s16 = ssub.s32 1, %s14
  %s17 = scalar_select 0, %s16, %s14
  %v18 = vstv %s9
  %19 = vst [vmem:[#allocation3] sm:$0x1] %v18
  $region1: #{tpu_custom_call.1} parent=0
    #allocation4 [shape = 'u8[32768]{0}', space=vmem, size = 0x8000, scoped, tag = 'input window, operand 0, single buffered']
    #allocation5 [shape = 's32[1]{0}', space=sflag, size = 0x4, scoped, tag = 'scoped memory for tpu_custom_call.1']
    #allocation6 [shape = 's32[1]{0}', space=sflag, size = 0x4, scoped, tag = 'scoped memory for tpu_custom_call.1']
    #allocation7 [shape = 'u8[8192]{0}', space=vmem, size = 0x2000, scoped, tag = 'input window, operand 1, single buffered']
    #allocation8 [shape = 's32[1]{0}', space=sflag, size = 0x4, scoped, tag = 'scoped memory for tpu_custom_call.1']
    #allocation9 [shape = 'u8[8192]{0}', space=vmem, size = 0x2000, scoped, tag = 'input window, operand 2, single buffered']
    #allocation10 [shape = 'u8[16384]{0}', space=vmem, size = 0x4000, scoped, tag = 'input window, operand 3, single buffered']
    #allocation11 [shape = 's32[1]{0}', space=sflag, size = 0x4, scoped, tag = 'scoped memory for tpu_custom_call.1']
    #allocation12 [shape = 'u8[16384]{0}', space=vmem, size = 0x4000, scoped, tag = 'input window, operand 4, single buffered']
    #allocation13 [shape = 'u8[512]{0}', space=vmem, size = 0x400, scoped, tag = 'input window, operand 5, single buffered']
    #allocation14 [shape = 's32[1]{0}', space=sflag, size = 0x4, scoped, tag = 'scoped memory for tpu_custom_call.1']
    #allocation15 [shape = 'u8[32768]{0}', space=vmem, size = 0x8000, scoped, tag = 'input window, operand 6, single buffered']
    #allocation16 [shape = 'u8[512]{0}', space=vmem, size = 0x400, scoped, tag = 'input window, operand 7, single buffered']
    #allocation17 [shape = 's32[1]{0}', space=sflag, size = 0x4, scoped, tag = 'scoped memory for tpu_custom_call.1']
    #allocation18 [shape = 'u8[16384]{0}', space=vmem, size = 0x4000, scoped, tag = 'input window, operand 8, single buffered']
    #allocation19 [shape = 'u8[4096]{0}', space=vmem, size = 0x1000, scoped, tag = 'output window, operand 0, single buffered']
    #allocation20 [shape = 'u8[8192]{0}', space=vmem, size = 0x2000, scoped, tag = 'output window, operand 1, single buffered']
    #allocation21 [shape = 's32[1]{0}', space=sflag, size = 0x4, scoped, tag = 'scoped memory for tpu_custom_call.1']
    #allocation22 [shape = 'u8[8192]{0}', space=vmem, size = 0x2000, scoped, tag = 'output window, operand 2, single buffered']
    %20 = vsyncpa [#allocation5], 0
    %21 = vsyncpa [#allocation8], 0
    %22 = vsyncpa [#allocation11], 0
    %23 = vsyncpa [#allocation14], 0
    %24 = vsyncpa [#allocation17], 0
    %25 = vsyncpa [#allocation6], 0
    %26 = vsyncpa [#allocation21], 0
    // Predicated region
    $region2: #{tpu_custom_call.1} parent=1 // pred_check
      _
    $region3: #{tpu_custom_call.1} parent=1 // pred_check_branch
      %28 = sbr.rel (0) target = $region5
    $region4: #{tpu_custom_call.1} parent=1 // pred_region
      %s30 = ssub.s32 1024, 1024
      %31 = vsyncadd [#allocation5], %s30
      %s32 = sshll.u32 [#allocation4], 4
      %s33 = int_to_ptr.vmem [resolvable:$true] %s32
      %38 = dma.hbm_to_vmem [thread:$0]  %s0, 1024, %s33, [#allocation5], 128, 128, 8
    $region5: #{tpu_custom_call.1} parent=1 // pred_fallthru
      _
    // Predicated region
    $region6: #{tpu_custom_call.1} parent=1 // pred_check
      _
    $region7: #{tpu_custom_call.1} parent=1 // pred_check_branch
      %40 = sbr.rel (0) target = $region9
    $region8: #{tpu_custom_call.1} parent=1 // pred_region
      %s42 = ssub.s32 256, 256
      %43 = vsyncadd [#allocation8], %s42
      %s44 = sshll.u32 [#allocation7], 4
      %s45 = int_to_ptr.vmem [resolvable:$true] %s44
      %50 = dma.hbm_to_vmem [thread:$0]  %s1, 256, %s45, [#allocation8], 128, 128, 8
    $region9: #{tpu_custom_call.1} parent=1 // pred_fallthru
      _
    // Predicated region
    $region10: #{tpu_custom_call.1} parent=1 // pred_check
      _
    $region11: #{tpu_custom_call.1} parent=1 // pred_check_branch
      %52 = sbr.rel (0) target = $region13
    $region12: #{tpu_custom_call.1} parent=1 // pred_region
      %s54 = ssub.s32 256, 256
      %55 = vsyncadd [#allocation8], %s54
      %s56 = sshll.u32 [#allocation9], 4
      %s57 = int_to_ptr.vmem [resolvable:$true] %s56
      %62 = dma.hbm_to_vmem [thread:$0]  %s2, 256, %s57, [#allocation8], 128, 128, 8
    $region13: #{tpu_custom_call.1} parent=1 // pred_fallthru
      _
    // Predicated region
    $region14: #{tpu_custom_call.1} parent=1 // pred_check
      _
    $region15: #{tpu_custom_call.1} parent=1 // pred_check_branch
      %64 = sbr.rel (0) target = $region17
    $region16: #{tpu_custom_call.1} parent=1 // pred_region
      %s66 = ssub.s32 512, 512
      %67 = vsyncadd [#allocation11], %s66
      %s68 = sshll.u32 [#allocation10], 4
      %s69 = int_to_ptr.vmem [resolvable:$true] %s68
      %74 = dma.hbm_to_vmem [thread:$0]  %s3, 512, %s69, [#allocation11], 128, 128, 8
    $region17: #{tpu_custom_call.1} parent=1 // pred_fallthru
      _
    // Predicated region
    $region18: #{tpu_custom_call.1} parent=1 // pred_check
      _
    $region19: #{tpu_custom_call.1} parent=1 // pred_check_branch
      %76 = sbr.rel (0) target = $region21
    $region20: #{tpu_custom_call.1} parent=1 // pred_region
      %s78 = ssub.s32 512, 512
      %79 = vsyncadd [#allocation11], %s78
      %s80 = sshll.u32 [#allocation12], 4
      %s81 = int_to_ptr.vmem [resolvable:$true] %s80
      %86 = dma.hbm_to_vmem [thread:$0]  %s4, 512, %s81, [#allocation11], 128, 128, 8
    $region21: #{tpu_custom_call.1} parent=1 // pred_fallthru
      _
    // Predicated region
    $region22: #{tpu_custom_call.1} parent=1 // pred_check
      _
    $region23: #{tpu_custom_call.1} parent=1 // pred_check_branch
      %88 = sbr.rel (0) target = $region25
    $region24: #{tpu_custom_call.1} parent=1 // pred_region
      %s90 = ssub.s32 16, 16
      %91 = vsyncadd [#allocation14], %s90
      %s93 = sshll.u32 [#allocation13], 4
      %s94 = int_to_ptr.vmem [resolvable:$true] %s93
      %96 = dma.hbm_to_vmem [thread:$0]  %s5, 16, %s94, [#allocation14]
    $region25: #{tpu_custom_call.1} parent=1 // pred_fallthru
      _
    // Predicated region
    $region26: #{tpu_custom_call.1} parent=1 // pred_check
      _
    $region27: #{tpu_custom_call.1} parent=1 // pred_check_branch
      %98 = sbr.rel (0) target = $region29
    $region28: #{tpu_custom_call.1} parent=1 // pred_region
      %s100 = ssub.s32 1024, 1024
      %101 = vsyncadd [#allocation14], %s100
      %s102 = sshll.u32 [#allocation15], 4
      %s103 = int_to_ptr.vmem [resolvable:$true] %s102
      %108 = dma.hbm_to_vmem [thread:$0]  %s6, 1024, %s103, [#allocation14], 128, 128, 8
    $region29: #{tpu_custom_call.1} parent=1 // pred_fallthru
      _
    // Predicated region
    $region30: #{tpu_custom_call.1} parent=1 // pred_check
      _
    $region31: #{tpu_custom_call.1} parent=1 // pred_check_branch
      %110 = sbr.rel (0) target = $region33
    $region32: #{tpu_custom_call.1} parent=1 // pred_region
      %s112 = ssub.s32 16, 16
      %113 = vsyncadd [#allocation17], %s112
      %s115 = sshll.u32 [#allocation16], 4
      %s116 = int_to_ptr.vmem [resolvable:$true] %s115
      %118 = dma.hbm_to_vmem [thread:$0]  %s7, 16, %s116, [#allocation17]
    $region33: #{tpu_custom_call.1} parent=1 // pred_fallthru
      _
    // Predicated region
    $region34: #{tpu_custom_call.1} parent=1 // pred_check
      _
    $region35: #{tpu_custom_call.1} parent=1 // pred_check_branch
      %120 = sbr.rel (0) target = $region37
    $region36: #{tpu_custom_call.1} parent=1 // pred_region
      %s122 = ssub.s32 512, 512
      %123 = vsyncadd [#allocation17], %s122
      %s124 = sshll.u32 [#allocation18], 4
      %s125 = int_to_ptr.vmem [resolvable:$true] %s124
      %130 = dma.hbm_to_vmem [thread:$0]  %s8, 512, %s125, [#allocation17], 128, 128, 8
    $region37: #{tpu_custom_call.1} parent=1 // pred_fallthru
      _
    // Predicated region
    $region38: #{tpu_custom_call.1} parent=1 // pred_check
      _
    $region39: #{tpu_custom_call.1} parent=1 // pred_check_branch
      %132 = sbr.rel (0) target = $region41
    $region40: #{tpu_custom_call.1} parent=1 // pred_region
      _
    $region41: #{tpu_custom_call.1} parent=1 // pred_fallthru
      _
    // Predicated region
    $region42: #{tpu_custom_call.1} parent=1 // pred_check
      _
    $region43: #{tpu_custom_call.1} parent=1 // pred_check_branch
      %134 = sbr.rel (0) target = $region45
    $region44: #{tpu_custom_call.1} parent=1 // pred_region
      %135 = dma.done [#allocation5], 1024
    $region45: #{tpu_custom_call.1} parent=1 // pred_fallthru
      _
    // Predicated region
    $region46: #{tpu_custom_call.1} parent=1 // pred_check
      _
    $region47: #{tpu_custom_call.1} parent=1 // pred_check_branch
      %137 = sbr.rel (0) target = $region49
    $region48: #{tpu_custom_call.1} parent=1 // pred_region
      %138 = dma.done [#allocation8], 256
    $region49: #{tpu_custom_call.1} parent=1 // pred_fallthru
      _
    // Predicated region
    $region50: #{tpu_custom_call.1} parent=1 // pred_check
      _
    $region51: #{tpu_custom_call.1} parent=1 // pred_check_branch
      %140 = sbr.rel (0) target = $region53
    $region52: #{tpu_custom_call.1} parent=1 // pred_region
      %141 = dma.done [#allocation8], 256
    $region53: #{tpu_custom_call.1} parent=1 // pred_fallthru
      _
    // Predicated region
    $region54: #{tpu_custom_call.1} parent=1 // pred_check
      _
    $region55: #{tpu_custom_call.1} parent=1 // pred_check_branch
      %143 = sbr.rel (0) target = $region57
    $region56: #{tpu_custom_call.1} parent=1 // pred_region
      %144 = dma.done [#allocation11], 512
    $region57: #{tpu_custom_call.1} parent=1 // pred_fallthru
      _
    // Predicated region
    $region58: #{tpu_custom_call.1} parent=1 // pred_check
      _
    $region59: #{tpu_custom_call.1} parent=1 // pred_check_branch
      %146 = sbr.rel (0) target = $region61
    $region60: #{tpu_custom_call.1} parent=1 // pred_region
      %147 = dma.done [#allocation11], 512
    $region61: #{tpu_custom_call.1} parent=1 // pred_fallthru
      _
    // Predicated region
    $region62: #{tpu_custom_call.1} parent=1 // pred_check
      _
    $region63: #{tpu_custom_call.1} parent=1 // pred_check_branch
      %149 = sbr.rel (0) target = $region65
    $region64: #{tpu_custom_call.1} parent=1 // pred_region
      %150 = dma.done [#allocation14], 16
    $region65: #{tpu_custom_call.1} parent=1 // pred_fallthru
      _
    // Predicated region
    $region66: #{tpu_custom_call.1} parent=1 // pred_check
      _
    $region67: #{tpu_custom_call.1} parent=1 // pred_check_branch
      %152 = sbr.rel (0) target = $region69
    $region68: #{tpu_custom_call.1} parent=1 // pred_region
      %153 = dma.done [#allocation14], 1024
    $region69: #{tpu_custom_call.1} parent=1 // pred_fallthru
      _
    // Predicated region
    $region70: #{tpu_custom_call.1} parent=1 // pred_check
      _
    $region71: #{tpu_custom_call.1} parent=1 // pred_check_branch
      %155 = sbr.rel (0) target = $region73
    $region72: #{tpu_custom_call.1} parent=1 // pred_region
      %156 = dma.done [#allocation17], 16
    $region73: #{tpu_custom_call.1} parent=1 // pred_fallthru
      _
    // Predicated region
    $region74: #{tpu_custom_call.1} parent=1 // pred_check
      _
    $region75: #{tpu_custom_call.1} parent=1 // pred_check_branch
      %158 = sbr.rel (0) target = $region77
    $region76: #{tpu_custom_call.1} parent=1 // pred_region
      %159 = dma.done [#allocation17], 512
    $region77: #{tpu_custom_call.1} parent=1 // pred_fallthru
      _
    %p160 = scmp.eq.s32.totalorder 0, 0
    // Predicated region
    $region78: #{tpu_custom_call.1} parent=1 // pred_check
      %p161 = pneg %p160
    $region79: #{tpu_custom_call.1} parent=1 // pred_check_branch
      %163 = sbr.rel (%p161) target = $region81
    $region80: #{tpu_custom_call.1} parent=1 // pred_region
      %v164 = vld [vmem:[#allocation7] sm:$0xff]
      %v165 = vld [vmem:[#allocation7 + $0x8] sm:$0xff]
      %vm166 = vcmask 261120
      %167 = vst.msk [vmem:[#allocation20] sm:$0xff] %vm166, %v164
      %168 = vst.msk [vmem:[#allocation20 + $0x8] sm:$0xff] %vm166, %v165
      %v169 = vld [vmem:[#allocation9] sm:$0xff]
      %v170 = vld [vmem:[#allocation9 + $0x8] sm:$0xff]
      %171 = vst.msk [vmem:[#allocation22] sm:$0xff] %vm166, %v169
      %172 = vst.msk [vmem:[#allocation22 + $0x8] sm:$0xff] %vm166, %v170
    $region81: #{tpu_custom_call.1} parent=1 // pred_fallthru
      _
    %v173 = vld [vmem:[#allocation4] sm:$0xff]
    %v174 = vld [vmem:[#allocation4 + $0x8] sm:$0xff]
    %v175 = vld [vmem:[#allocation4 + $0x10] sm:$0xff]
    %v176 = vld [vmem:[#allocation4 + $0x18] sm:$0xff]
    %v177 = vld [vmem:[#allocation4 + $0x20] sm:$0xff]
    %v178 = vld [vmem:[#allocation4 + $0x28] sm:$0xff]
    %v179 = vld [vmem:[#allocation4 + $0x30] sm:$0xff]
    %v180 = vld [vmem:[#allocation4 + $0x38] sm:$0xff]
    %v181 = vld [vmem:[#allocation10] sm:$0xff]
    %v182 = vld [vmem:[#allocation10 + $0x8] sm:$0xff]
    %v183 = vld [vmem:[#allocation10 + $0x10] sm:$0xff]
    %v184 = vld [vmem:[#allocation10 + $0x18] sm:$0xff]
    %v185 = vld [vmem:[#allocation13] sm:$0x1]
    %v187 = vlaneseq
    %v188 = vshrl.u32 %v187, 7
    %v189 = vsub.s32 0, %v188
    %v190 = vrot.slane %v185, %v189
    %vm192 = vcmask 261120
    %v194 = vsel %vm192, %v173, 0
    %v197 = vsel %vm192, %v174, 0
    %v200 = vsel %vm192, %v175, 0
    %v203 = vsel %vm192, %v176, 0
    %v206 = vsel %vm192, %v177, 0
    %v209 = vsel %vm192, %v178, 0
    %v212 = vsel %vm192, %v179, 0
    %v215 = vsel %vm192, %v180, 0
    %217 = vmatprep.subr.mxu0 0.0
    %218 = vmatpush1.msra.mxu0 %v181
    %219 = vmatprep.subr.mxu0 0.0
    %220 = vmatpush1.msra.mxu0 %v182
    %221 = vmatprep.subr.mxu0 0.0
    %222 = vmatpush1.msra.mxu0 %v183
    %223 = vmatprep.subr.mxu0 0.0
    %224 = vmatpush1.msra.mxu0 %v184
    %225 = vmatprep.subr.mxu0 0.0
    %226 = vmatpush1.msra.mxu0 0.0
    %227 = vmatprep.subr.mxu0 0.0
    %228 = vmatpush1.msra.mxu0 0.0
    %229 = vmatprep.subr.mxu0 0.0
    %230 = vmatpush1.msra.mxu0 0.0
    %231 = vmatprep.subr.mxu0 0.0
    %232 = vmatpush1.msra.mxu0 0.0
    %233 = vmatprep.subr.mxu0 0.0
    %234 = vmatpush1.msra.mxu0 0.0
    %235 = vmatprep.subr.mxu0 0.0
    %236 = vmatpush1.msra.mxu0 0.0
    %237 = vmatprep.subr.mxu0 0.0
    %238 = vmatpush1.msra.mxu0 0.0
    %239 = vmatprep.subr.mxu0 0.0
    %240 = vmatpush1.msra.mxu0 0.0
    %241 = vmatprep.subr.mxu0 0.0
    %242 = vmatpush1.msra.mxu0 0.0
    %243 = vmatprep.subr.mxu0 0.0
    %244 = vmatpush1.msra.mxu0 0.0
    %245 = vmatprep.subr.mxu0 0.0
    %246 = vmatpush1.msra.mxu0 0.0
    %247 = vmatprep.subr.mxu0 0.0
    %248 = vmatpush1.msra.mxu0 0.0
    %249 = vmatprep.subr.mxu0 0.0
    %250 = vmatpush1.msra.mxu0 0.0
    %251 = vmatprep.subr.mxu0 0.0
    %252 = vmatpush1.msra.mxu0 0.0
    %253 = vmatprep.subr.mxu0 0.0
    %254 = vmatpush1.msra.mxu0 0.0
    %255 = vmatprep.subr.mxu0 0.0
    %256 = vmatpush1.msra.mxu0 0.0
    %257 = vmatprep.subr.mxu0 0.0
    %258 = vmatpush1.msra.mxu0 0.0
    %259 = vmatprep.subr.mxu0 0.0
    %260 = vmatpush1.msra.mxu0 0.0
    %261 = vmatprep.subr.mxu0 0.0
    %262 = vmatpush1.msra.mxu0 0.0
    %263 = vmatprep.subr.mxu0 0.0
    %264 = vmatpush1.msra.mxu0 0.0
    %265 = vmatprep.subr.mxu0 0.0
    %266 = vmatpush1.msra.mxu0 0.0
    %267 = vmatprep.subr.mxu0 0.0
    %268 = vmatpush1.msra.mxu0 0.0
    %269 = vmatprep.subr.mxu0 0.0
    %270 = vmatpush1.msra.mxu0 0.0
    %271 = vmatprep.subr.mxu0 0.0
    %272 = vmatpush1.msra.mxu0 0.0
    %273 = vmatprep.subr.mxu0 0.0
    %274 = vmatpush1.msra.mxu0 0.0
    %275 = vmatprep.subr.mxu0 0.0
    %276 = vmatpush1.msra.mxu0 0.0
    %277 = vmatprep.subr.mxu0 0.0
    %278 = vmatpush1.msra.mxu0 0.0
    %279 = vmatprep.subr.mxu0 0.0
    %280 = vmatpush1.msra.mxu0 0.0
    %281 = vmatprep.mubr.f32.mxu0 0.0
    %282 = vmatmul.mubr.f32.gmra.mrb[0].mxu0 %v194
    %v283 = vpop.f32.mrb[0].mxu0
    %v284 = vadd.f32 %v190, %v283
    %v285 = vpop.f32.mrb[0].mxu0
    %286 = vmatprep.mubr.f32.mxu0 0.0
    %287 = vmatmul.mubr.f32.gmra.mrb[0].mxu0 %v197
    %v288 = vpop.f32.mrb[0].mxu0
    %v289 = vadd.f32 %v190, %v288
    %v290 = vpop.f32.mrb[0].mxu0
    %291 = vmatprep.mubr.f32.mxu0 0.0
    %292 = vmatmul.mubr.f32.gmra.mrb[0].mxu0 %v200
    %v293 = vpop.f32.mrb[0].mxu0
    %v294 = vadd.f32 %v190, %v293
    %v295 = vpop.f32.mrb[0].mxu0
    %296 = vmatprep.mubr.f32.mxu0 0.0
    %297 = vmatmul.mubr.f32.gmra.mrb[0].mxu0 %v203
    %v298 = vpop.f32.mrb[0].mxu0
    %v299 = vadd.f32 %v190, %v298
    %v300 = vpop.f32.mrb[0].mxu0
    %301 = vmatprep.mubr.f32.mxu0 0.0
    %302 = vmatmul.mubr.f32.gmra.mrb[0].mxu0 %v206
    %v303 = vpop.f32.mrb[0].mxu0
    %v304 = vadd.f32 %v190, %v303
    %v305 = vpop.f32.mrb[0].mxu0
    %306 = vmatprep.mubr.f32.mxu0 0.0
    %307 = vmatmul.mubr.f32.gmra.mrb[0].mxu0 %v209
    %v308 = vpop.f32.mrb[0].mxu0
    %v309 = vadd.f32 %v190, %v308
    %v310 = vpop.f32.mrb[0].mxu0
    %311 = vmatprep.mubr.f32.mxu0 0.0
    %312 = vmatmul.mubr.f32.gmra.mrb[0].mxu0 %v212
    %v313 = vpop.f32.mrb[0].mxu0
    %v314 = vadd.f32 %v190, %v313
    %v315 = vpop.f32.mrb[0].mxu0
    %316 = vmatprep.mubr.f32.mxu0 0.0
    %317 = vmatmul.mubr.f32.gmra.mrb[0].mxu0 %v215
    %v318 = vpop.f32.mrb[0].mxu0
    %v319 = vadd.f32 %v190, %v318
    %v320 = vpop.f32.mrb[0].mxu0
    %321 = vdwg.mxu0
    %322 = vst [vmem:[#allocation2] sm:$0xff] %v284
    %323 = vst [vmem:[#allocation2 + $0x8] sm:$0xff] %v289
    %324 = vst [vmem:[#allocation2 + $0x10] sm:$0xff] %v294
    %325 = vst [vmem:[#allocation2 + $0x18] sm:$0xff] %v299
    %326 = vst [vmem:[#allocation2 + $0x20] sm:$0xff] %v304
    %327 = vst [vmem:[#allocation2 + $0x28] sm:$0xff] %v309
    %328 = vst [vmem:[#allocation2 + $0x30] sm:$0xff] %v314
    %329 = vst [vmem:[#allocation2 + $0x38] sm:$0xff] %v319
    %v330 = vld [vmem:[#allocation12] sm:$0xff]
    %v331 = vld [vmem:[#allocation12 + $0x8] sm:$0xff]
    %v332 = vld [vmem:[#allocation12 + $0x10] sm:$0xff]
    %v333 = vld [vmem:[#allocation12 + $0x18] sm:$0xff]
    %v334 = vld [vmem:[#allocation15] sm:$0xff]
    %v335 = vld [vmem:[#allocation15 + $0x8] sm:$0xff]
    %v336 = vld [vmem:[#allocation15 + $0x10] sm:$0xff]
    %v337 = vld [vmem:[#allocation15 + $0x18] sm:$0xff]
    %v338 = vld [vmem:[#allocation15 + $0x20] sm:$0xff]
    %v339 = vld [vmem:[#allocation15 + $0x28] sm:$0xff]
    %v340 = vld [vmem:[#allocation15 + $0x30] sm:$0xff]
    %v341 = vld [vmem:[#allocation15 + $0x38] sm:$0xff]
    %v342 = vld [vmem:[#allocation16] sm:$0x1]
    %v344 = vlaneseq
    %v345 = vshrl.u32 %v344, 7
    %v346 = vsub.s32 0, %v345
    %v347 = vrot.slane %v342, %v346
    %v349 = vld [vmem:[#allocation20] sm:$0xff]
    %s350 = scalar_lea.vmem [#allocation20], 8
    %v351 = vld [vmem:[%s350] sm:$0xff]
    %v352 = vld [vmem:[#allocation22] sm:$0xff]
    %s353 = scalar_lea.vmem [#allocation22], 8
    %v354 = vld [vmem:[%s353] sm:$0xff]
    %v355 = vld [vmem:[#allocation2] sm:$0xff]
    %v357 = vsel %vm192, %v349, 0
    %359 = vmatprep.subr.mxu0 0.0
    %360 = vmatpush1.msra.mxu0 %v330
    %361 = vmatprep.subr.mxu0 0.0
    %362 = vmatpush1.msra.mxu0 %v331
    %363 = vmatprep.subr.mxu0 0.0
    %364 = vmatpush1.msra.mxu0 %v332
    %365 = vmatprep.subr.mxu0 0.0
    %366 = vmatpush1.msra.mxu0 %v333
    %367 = vmatprep.subr.mxu0 0.0
    %368 = vmatpush1.msra.mxu0 0.0
    %369 = vmatprep.subr.mxu0 0.0
    %370 = vmatpush1.msra.mxu0 0.0
    %371 = vmatprep.subr.mxu0 0.0
    %372 = vmatpush1.msra.mxu0 0.0
    %373 = vmatprep.subr.mxu0 0.0
    %374 = vmatpush1.msra.mxu0 0.0
    %375 = vmatprep.subr.mxu0 0.0
    %376 = vmatpush1.msra.mxu0 0.0
    %377 = vmatprep.subr.mxu0 0.0
    %378 = vmatpush1.msra.mxu0 0.0
    %379 = vmatprep.subr.mxu0 0.0
    %380 = vmatpush1.msra.mxu0 0.0
    %381 = vmatprep.subr.mxu0 0.0
    %382 = vmatpush1.msra.mxu0 0.0
    %383 = vmatprep.subr.mxu0 0.0
    %384 = vmatpush1.msra.mxu0 0.0
    %385 = vmatprep.subr.mxu0 0.0
    %386 = vmatpush1.msra.mxu0 0.0
    %387 = vmatprep.subr.mxu0 0.0
    %388 = vmatpush1.msra.mxu0 0.0
    %389 = vmatprep.subr.mxu0 0.0
    %390 = vmatpush1.msra.mxu0 0.0
    %391 = vmatprep.subr.mxu0 0.0
    %392 = vmatpush1.msra.mxu0 0.0
    %393 = vmatprep.subr.mxu0 0.0
    %394 = vmatpush1.msra.mxu0 0.0
    %395 = vmatprep.subr.mxu0 0.0
    %396 = vmatpush1.msra.mxu0 0.0
    %397 = vmatprep.subr.mxu0 0.0
    %398 = vmatpush1.msra.mxu0 0.0
    %399 = vmatprep.subr.mxu0 0.0
    %400 = vmatpush1.msra.mxu0 0.0
    %401 = vmatprep.subr.mxu0 0.0
    %402 = vmatpush1.msra.mxu0 0.0
    %403 = vmatprep.subr.mxu0 0.0
    %404 = vmatpush1.msra.mxu0 0.0
    %405 = vmatprep.subr.mxu0 0.0
    %406 = vmatpush1.msra.mxu0 0.0
    %407 = vmatprep.subr.mxu0 0.0
    %408 = vmatpush1.msra.mxu0 0.0
    %409 = vmatprep.subr.mxu0 0.0
    %410 = vmatpush1.msra.mxu0 0.0
    %411 = vmatprep.subr.mxu0 0.0
    %412 = vmatpush1.msra.mxu0 0.0
    %413 = vmatprep.subr.mxu0 0.0
    %414 = vmatpush1.msra.mxu0 0.0
    %415 = vmatprep.subr.mxu0 0.0
    %416 = vmatpush1.msra.mxu0 0.0
    %417 = vmatprep.subr.mxu0 0.0
    %418 = vmatpush1.msra.mxu0 0.0
    %419 = vmatprep.subr.mxu0 0.0
    %420 = vmatpush1.msra.mxu0 0.0
    %421 = vmatprep.subr.mxu0 0.0
    %422 = vmatpush1.msra.mxu0 0.0
    %423 = vmatprep.mubr.f32.mxu0 0.0
    %424 = vmatmul.mubr.f32.gmra.mrb[0].mxu0 %v357
    %v425 = vpop.f32.mrb[0].mxu0
    %v426 = vadd.f32 0.0, %v425
    %v427 = vpop.f32.mrb[0].mxu0
    %428 = vdwg.mxu0
    %v429 = vadd.f32 %v355, %v426
    %v430 = vxor.u32 %v429, 2147483648
    %v431 = vmul.f32 %v430, 1.442695
    %v432 = vpow.pop %v431
    %v433 = vadd.f32 %v432, 1.0
    %v434 = vrcp.pop %v433
    %v435 = vmul.f32 1.0, %v434
    %v436 = vtanh.pop %v429
    %438 = vrot.lane.b32.xlu0 %v352, 32
    %v439 = vpop.permute.xlu0 %438
    %v441 = vmul.f32 %v435, %v439
    %443 = vrot.lane.b32.xlu0 %v436, 32
    %v444 = vpop.permute.xlu0 %443
    %v446 = vmul.f32 %v435, %v444
    %448 = vrot.lane.b32.xlu0 %v446, 32
    %v449 = vpop.permute.xlu0 %448
    %v451 = vadd.f32 %v441, %v449
    %v452 = vtanh.pop %v451
    %454 = vrot.lane.b32.xlu0 %v452, 32
    %v455 = vpop.permute.xlu0 %454
    %v457 = vmul.f32 %v435, %v455
    %459 = vrot.lane.b32.xlu0 %v457, 64
    %v460 = vpop.permute.xlu0 %459
    %463 = vrot.lane.b32.xlu0 %v351, 32
    %v464 = vpop.permute.xlu0 %463
    %v466 = vsel %vm192, %v460, %v464
    %vm467 = vcmask 523264
    %v469 = vsel %vm467, %v466, 0
    %471 = vmatprep.subr.mxu0 0.0
    %472 = vmatpush1.msra.mxu0 %v334
    %473 = vmatprep.subr.mxu0 0.0
    %474 = vmatpush1.msra.mxu0 %v335
    %475 = vmatprep.subr.mxu0 0.0
    %476 = vmatpush1.msra.mxu0 %v336
    %477 = vmatprep.subr.mxu0 0.0
    %478 = vmatpush1.msra.mxu0 %v337
    %479 = vmatprep.subr.mxu0 0.0
    %480 = vmatpush1.msra.mxu0 %v338
    %481 = vmatprep.subr.mxu0 0.0
    %482 = vmatpush1.msra.mxu0 %v339
    %483 = vmatprep.subr.mxu0 0.0
    %484 = vmatpush1.msra.mxu0 %v340
    %485 = vmatprep.subr.mxu0 0.0
    %486 = vmatpush1.msra.mxu0 %v341
    %487 = vmatprep.subr.mxu0 0.0
    %488 = vmatpush1.msra.mxu0 0.0
    %489 = vmatprep.subr.mxu0 0.0
    %490 = vmatpush1.msra.mxu0 0.0
    %491 = vmatprep.subr.mxu0 0.0
    %492 = vmatpush1.msra.mxu0 0.0
    %493 = vmatprep.subr.mxu0 0.0
    %494 = vmatpush1.msra.mxu0 0.0
    %495 = vmatprep.subr.mxu0 0.0
    %496 = vmatpush1.msra.mxu0 0.0
    %497 = vmatprep.subr.mxu0 0.0
    %498 = vmatpush1.msra.mxu0 0.0
    %499 = vmatprep.subr.mxu0 0.0
    %500 = vmatpush1.msra.mxu0 0.0
    %501 = vmatprep.subr.mxu0 0.0
    %502 = vmatpush1.msra.mxu0 0.0
    %503 = vmatprep.subr.mxu0 0.0
    %504 = vmatpush1.msra.mxu0 0.0
    %505 = vmatprep.subr.mxu0 0.0
    %506 = vmatpush1.msra.mxu0 0.0
    %507 = vmatprep.subr.mxu0 0.0
    %508 = vmatpush1.msra.mxu0 0.0
    %509 = vmatprep.subr.mxu0 0.0
    %510 = vmatpush1.msra.mxu0 0.0
    %511 = vmatprep.subr.mxu0 0.0
    %512 = vmatpush1.msra.mxu0 0.0
    %513 = vmatprep.subr.mxu0 0.0
    %514 = vmatpush1.msra.mxu0 0.0
    %515 = vmatprep.subr.mxu0 0.0
    %516 = vmatpush1.msra.mxu0 0.0
    %517 = vmatprep.subr.mxu0 0.0
    %518 = vmatpush1.msra.mxu0 0.0
    %519 = vmatprep.subr.mxu0 0.0
    %520 = vmatpush1.msra.mxu0 0.0
    %521 = vmatprep.subr.mxu0 0.0
    %522 = vmatpush1.msra.mxu0 0.0
    %523 = vmatprep.subr.mxu0 0.0
    %524 = vmatpush1.msra.mxu0 0.0
    %525 = vmatprep.subr.mxu0 0.0
    %526 = vmatpush1.msra.mxu0 0.0
    %527 = vmatprep.subr.mxu0 0.0
    %528 = vmatpush1.msra.mxu0 0.0
    %529 = vmatprep.subr.mxu0 0.0
    %530 = vmatpush1.msra.mxu0 0.0
    %531 = vmatprep.subr.mxu0 0.0
    %532 = vmatpush1.msra.mxu0 0.0
    %533 = vmatprep.subr.mxu0 0.0
    %534 = vmatpush1.msra.mxu0 0.0
    %535 = vmatprep.mubr.f32.mxu0 0.0
    %536 = vmatmul.mubr.f32.gmra.mrb[0].mxu0 %v469
    %v537 = vpop.f32.mrb[0].mxu0
    %v538 = vadd.f32 %v347, %v537
    %v539 = vpop.f32.mrb[0].mxu0
    %540 = vdwg.mxu0
    %v541 = vxor.u32 %v538, 2147483648
    %v542 = vmul.f32 %v541, 1.442695
    %v543 = vpow.pop %v542
    %v544 = vadd.f32 %v543, 1.0
    %v545 = vrcp.pop %v544
    %v546 = vmul.f32 1.0, %v545
    %v547 = vtanh.pop %v538
    %549 = vrot.lane.b32.xlu0 %v354, 32
    %v550 = vpop.permute.xlu0 %549
    %v552 = vmul.f32 %v546, %v550
    %554 = vrot.lane.b32.xlu0 %v547, 32
    %v555 = vpop.permute.xlu0 %554
    %v557 = vmul.f32 %v546, %v555
    %559 = vrot.lane.b32.xlu0 %v557, 32
    %v560 = vpop.permute.xlu0 %559
    %v562 = vadd.f32 %v552, %v560
    %v563 = vtanh.pop %v562
    %565 = vrot.lane.b32.xlu0 %v563, 32
    %v566 = vpop.permute.xlu0 %565
    %v568 = vmul.f32 %v546, %v566
    %s569 = scalar_lea.vmem [#allocation2], 8
    %v570 = vld [vmem:[%s569] sm:$0xff]
    %v571 = vsel %vm192, %v460, 0
    %573 = vmatprep.subr.mxu0 0.0
    %574 = vmatpush1.msra.mxu0 %v330
    %575 = vmatprep.subr.mxu0 0.0
    %576 = vmatpush1.msra.mxu0 %v331
    %577 = vmatprep.subr.mxu0 0.0
    %578 = vmatpush1.msra.mxu0 %v332
    %579 = vmatprep.subr.mxu0 0.0
    %580 = vmatpush1.msra.mxu0 %v333
    %581 = vmatprep.subr.mxu0 0.0
    %582 = vmatpush1.msra.mxu0 0.0
    %583 = vmatprep.subr.mxu0 0.0
    %584 = vmatpush1.msra.mxu0 0.0
    %585 = vmatprep.subr.mxu0 0.0
    %586 = vmatpush1.msra.mxu0 0.0
    %587 = vmatprep.subr.mxu0 0.0
    %588 = vmatpush1.msra.mxu0 0.0
    %589 = vmatprep.subr.mxu0 0.0
    %590 = vmatpush1.msra.mxu0 0.0
    %591 = vmatprep.subr.mxu0 0.0
    %592 = vmatpush1.msra.mxu0 0.0
    %593 = vmatprep.subr.mxu0 0.0
    %594 = vmatpush1.msra.mxu0 0.0
    %595 = vmatprep.subr.mxu0 0.0
    %596 = vmatpush1.msra.mxu0 0.0
    %597 = vmatprep.subr.mxu0 0.0
    %598 = vmatpush1.msra.mxu0 0.0
    %599 = vmatprep.subr.mxu0 0.0
    %600 = vmatpush1.msra.mxu0 0.0
    %601 = vmatprep.subr.mxu0 0.0
    %602 = vmatpush1.msra.mxu0 0.0
    %603 = vmatprep.subr.mxu0 0.0
    %604 = vmatpush1.msra.mxu0 0.0
    %605 = vmatprep.subr.mxu0 0.0
    %606 = vmatpush1.msra.mxu0 0.0
    %607 = vmatprep.subr.mxu0 0.0
    %608 = vmatpush1.msra.mxu0 0.0
    %609 = vmatprep.subr.mxu0 0.0
    %610 = vmatpush1.msra.mxu0 0.0
    %611 = vmatprep.subr.mxu0 0.0
    %612 = vmatpush1.msra.mxu0 0.0
    %613 = vmatprep.subr.mxu0 0.0
    %614 = vmatpush1.msra.mxu0 0.0
    %615 = vmatprep.subr.mxu0 0.0
    %616 = vmatpush1.msra.mxu0 0.0
    %617 = vmatprep.subr.mxu0 0.0
    %618 = vmatpush1.msra.mxu0 0.0
    %619 = vmatprep.subr.mxu0 0.0
    %620 = vmatpush1.msra.mxu0 0.0
    %621 = vmatprep.subr.mxu0 0.0
    %622 = vmatpush1.msra.mxu0 0.0
    %623 = vmatprep.subr.mxu0 0.0
    %624 = vmatpush1.msra.mxu0 0.0
    %625 = vmatprep.subr.mxu0 0.0
    %626 = vmatpush1.msra.mxu0 0.0
    %627 = vmatprep.subr.mxu0 0.0
    %628 = vmatpush1.msra.mxu0 0.0
    %629 = vmatprep.subr.mxu0 0.0
    %630 = vmatpush1.msra.mxu0 0.0
    %631 = vmatprep.subr.mxu0 0.0
    %632 = vmatpush1.msra.mxu0 0.0
    %633 = vmatprep.subr.mxu0 0.0
    %634 = vmatpush1.msra.mxu0 0.0
    %635 = vmatprep.subr.mxu0 0.0
    %636 = vmatpush1.msra.mxu0 0.0
    %637 = vmatprep.mubr.f32.mxu0 0.0
    %638 = vmatmul.mubr.f32.gmra.mrb[0].mxu0 %v571
    %v639 = vpop.f32.mrb[0].mxu0
    %v640 = vadd.f32 0.0, %v639
    %v641 = vpop.f32.mrb[0].mxu0
    %642 = vdwg.mxu0
    %v643 = vadd.f32 %v570, %v640
    %v644 = vxor.u32 %v643, 2147483648
    %v645 = vmul.f32 %v644, 1.442695
    %v646 = vpow.pop %v645
    %v647 = vadd.f32 %v646, 1.0
    %v648 = vrcp.pop %v647
    %v649 = vmul.f32 1.0, %v648
    %v650 = vtanh.pop %v643
    %v651 = vmul.f32 %v649, %v451
    %653 = vrot.lane.b32.xlu0 %v650, 32
    %v654 = vpop.permute.xlu0 %653
    %v656 = vmul.f32 %v649, %v654
    %658 = vrot.lane.b32.xlu0 %v656, 32
    %v659 = vpop.permute.xlu0 %658
    %v661 = vadd.f32 %v651, %v659
    %v662 = vtanh.pop %v661
    %664 = vrot.lane.b32.xlu0 %v662, 32
    %v665 = vpop.permute.xlu0 %664
    %v667 = vmul.f32 %v649, %v665
    %669 = vrot.lane.b32.xlu0 %v667, 64
    %v670 = vpop.permute.xlu0 %669
    %673 = vrot.lane.b32.xlu0 %v568, 96
    %v674 = vpop.permute.xlu0 %673
    %v676 = vsel %vm192, %v670, %v674
    %v678 = vsel %vm467, %v676, 0
    %680 = vmatprep.subr.mxu0 0.0
    %681 = vmatpush1.msra.mxu0 %v334
    %682 = vmatprep.subr.mxu0 0.0
    %683 = vmatpush1.msra.mxu0 %v335
    %684 = vmatprep.subr.mxu0 0.0
    %685 = vmatpush1.msra.mxu0 %v336
    %686 = vmatprep.subr.mxu0 0.0
    %687 = vmatpush1.msra.mxu0 %v337
    %688 = vmatprep.subr.mxu0 0.0
    %689 = vmatpush1.msra.mxu0 %v338
    %690 = vmatprep.subr.mxu0 0.0
    %691 = vmatpush1.msra.mxu0 %v339
    %692 = vmatprep.subr.mxu0 0.0
    %693 = vmatpush1.msra.mxu0 %v340
    %694 = vmatprep.subr.mxu0 0.0
    %695 = vmatpush1.msra.mxu0 %v341
    %696 = vmatprep.subr.mxu0 0.0
    %697 = vmatpush1.msra.mxu0 0.0
    %698 = vmatprep.subr.mxu0 0.0
    %699 = vmatpush1.msra.mxu0 0.0
    %700 = vmatprep.subr.mxu0 0.0
    %701 = vmatpush1.msra.mxu0 0.0
    %702 = vmatprep.subr.mxu0 0.0
    %703 = vmatpush1.msra.mxu0 0.0
    %704 = vmatprep.subr.mxu0 0.0
    %705 = vmatpush1.msra.mxu0 0.0
    %706 = vmatprep.subr.mxu0 0.0
    %707 = vmatpush1.msra.mxu0 0.0
    %708 = vmatprep.subr.mxu0 0.0
    %709 = vmatpush1.msra.mxu0 0.0
    %710 = vmatprep.subr.mxu0 0.0
    %711 = vmatpush1.msra.mxu0 0.0
    %712 = vmatprep.subr.mxu0 0.0
    %713 = vmatpush1.msra.mxu0 0.0
    %714 = vmatprep.subr.mxu0 0.0
    %715 = vmatpush1.msra.mxu0 0.0
    %716 = vmatprep.subr.mxu0 0.0
    %717 = vmatpush1.msra.mxu0 0.0
    %718 = vmatprep.subr.mxu0 0.0
    %719 = vmatpush1.msra.mxu0 0.0
    %720 = vmatprep.subr.mxu0 0.0
    %721 = vmatpush1.msra.mxu0 0.0
    %722 = vmatprep.subr.mxu0 0.0
    %723 = vmatpush1.msra.mxu0 0.0
    %724 = vmatprep.subr.mxu0 0.0
    %725 = vmatpush1.msra.mxu0 0.0
    %726 = vmatprep.subr.mxu0 0.0
    %727 = vmatpush1.msra.mxu0 0.0
    %728 = vmatprep.subr.mxu0 0.0
    %729 = vmatpush1.msra.mxu0 0.0
    %730 = vmatprep.subr.mxu0 0.0
    %731 = vmatpush1.msra.mxu0 0.0
    %732 = vmatprep.subr.mxu0 0.0
    %733 = vmatpush1.msra.mxu0 0.0
    %734 = vmatprep.subr.mxu0 0.0
    %735 = vmatpush1.msra.mxu0 0.0
    %736 = vmatprep.subr.mxu0 0.0
    %737 = vmatpush1.msra.mxu0 0.0
    %738 = vmatprep.subr.mxu0 0.0
    %739 = vmatpush1.msra.mxu0 0.0
    %740 = vmatprep.subr.mxu0 0.0
    %741 = vmatpush1.msra.mxu0 0.0
    %742 = vmatprep.subr.mxu0 0.0
    %743 = vmatpush1.msra.mxu0 0.0
    %744 = vmatprep.mubr.f32.mxu0 0.0
    %745 = vmatmul.mubr.f32.gmra.mrb[0].mxu0 %v678
    %v746 = vpop.f32.mrb[0].mxu0
    %v747 = vadd.f32 %v347, %v746
    %v748 = vpop.f32.mrb[0].mxu0
    %749 = vdwg.mxu0
    %v750 = vxor.u32 %v747, 2147483648
    %v751 = vmul.f32 %v750, 1.442695
    %v752 = vpow.pop %v751
    %v753 = vadd.f32 %v752, 1.0
    %v754 = vrcp.pop %v753
    %v755 = vmul.f32 1.0, %v754
    %v756 = vtanh.pop %v747
    %v757 = vmul.f32 %v755, %v562
    %759 = vrot.lane.b32.xlu0 %v756, 32
    %v760 = vpop.permute.xlu0 %759
    %v762 = vmul.f32 %v755, %v760
    %764 = vrot.lane.b32.xlu0 %v762, 32
    %v765 = vpop.permute.xlu0 %764
    %v767 = vadd.f32 %v757, %v765
    %v768 = vtanh.pop %v767
    %770 = vrot.lane.b32.xlu0 %v768, 32
    %v771 = vpop.permute.xlu0 %770
    %v773 = vmul.f32 %v755, %v771
    %s774 = scalar_lea.vmem [#allocation2], 16
    %v775 = vld [vmem:[%s774] sm:$0xff]
    %v776 = vsel %vm192, %v670, 0
    %778 = vmatprep.subr.mxu0 0.0
    %779 = vmatpush1.msra.mxu0 %v330
    %780 = vmatprep.subr.mxu0 0.0
    %781 = vmatpush1.msra.mxu0 %v331
    %782 = vmatprep.subr.mxu0 0.0
    %783 = vmatpush1.msra.mxu0 %v332
    %784 = vmatprep.subr.mxu0 0.0
    %785 = vmatpush1.msra.mxu0 %v333
    %786 = vmatprep.subr.mxu0 0.0
    %787 = vmatpush1.msra.mxu0 0.0
    %788 = vmatprep.subr.mxu0 0.0
    %789 = vmatpush1.msra.mxu0 0.0
    %790 = vmatprep.subr.mxu0 0.0
    %791 = vmatpush1.msra.mxu0 0.0
    %792 = vmatprep.subr.mxu0 0.0
    %793 = vmatpush1.msra.mxu0 0.0
    %794 = vmatprep.subr.mxu0 0.0
    %795 = vmatpush1.msra.mxu0 0.0
    %796 = vmatprep.subr.mxu0 0.0
    %797 = vmatpush1.msra.mxu0 0.0
    %798 = vmatprep.subr.mxu0 0.0
    %799 = vmatpush1.msra.mxu0 0.0
    %800 = vmatprep.subr.mxu0 0.0
    %801 = vmatpush1.msra.mxu0 0.0
    %802 = vmatprep.subr.mxu0 0.0
    %803 = vmatpush1.msra.mxu0 0.0
    %804 = vmatprep.subr.mxu0 0.0
    %805 = vmatpush1.msra.mxu0 0.0
    %806 = vmatprep.subr.mxu0 0.0
    %807 = vmatpush1.msra.mxu0 0.0
    %808 = vmatprep.subr.mxu0 0.0
    %809 = vmatpush1.msra.mxu0 0.0
    %810 = vmatprep.subr.mxu0 0.0
    %811 = vmatpush1.msra.mxu0 0.0
    %812 = vmatprep.subr.mxu0 0.0
    %813 = vmatpush1.msra.mxu0 0.0
    %814 = vmatprep.subr.mxu0 0.0
    %815 = vmatpush1.msra.mxu0 0.0
    %816 = vmatprep.subr.mxu0 0.0
    %817 = vmatpush1.msra.mxu0 0.0
    %818 = vmatprep.subr.mxu0 0.0
    %819 = vmatpush1.msra.mxu0 0.0
    %820 = vmatprep.subr.mxu0 0.0
    %821 = vmatpush1.msra.mxu0 0.0
    %822 = vmatprep.subr.mxu0 0.0
    %823 = vmatpush1.msra.mxu0 0.0
    %824 = vmatprep.subr.mxu0 0.0
    %825 = vmatpush1.msra.mxu0 0.0
    %826 = vmatprep.subr.mxu0 0.0
    %827 = vmatpush1.msra.mxu0 0.0
    %828 = vmatprep.subr.mxu0 0.0
    %829 = vmatpush1.msra.mxu0 0.0
    %830 = vmatprep.subr.mxu0 0.0
    %831 = vmatpush1.msra.mxu0 0.0
    %832 = vmatprep.subr.mxu0 0.0
    %833 = vmatpush1.msra.mxu0 0.0
    %834 = vmatprep.subr.mxu0 0.0
    %835 = vmatpush1.msra.mxu0 0.0
    %836 = vmatprep.subr.mxu0 0.0
    %837 = vmatpush1.msra.mxu0 0.0
    %838 = vmatprep.subr.mxu0 0.0
    %839 = vmatpush1.msra.mxu0 0.0
    %840 = vmatprep.subr.mxu0 0.0
    %841 = vmatpush1.msra.mxu0 0.0
    %842 = vmatprep.mubr.f32.mxu0 0.0
    %843 = vmatmul.mubr.f32.gmra.mrb[0].mxu0 %v776
    %v844 = vpop.f32.mrb[0].mxu0
    %v845 = vadd.f32 0.0, %v844
    %v846 = vpop.f32.mrb[0].mxu0
    %847 = vdwg.mxu0
    %v848 = vadd.f32 %v775, %v845
    %v849 = vxor.u32 %v848, 2147483648
    %v850 = vmul.f32 %v849, 1.442695
    %v851 = vpow.pop %v850
    %v852 = vadd.f32 %v851, 1.0
    %v853 = vrcp.pop %v852
    %v854 = vmul.f32 1.0, %v853
    %v855 = vtanh.pop %v848
    %v856 = vmul.f32 %v854, %v661
    %858 = vrot.lane.b32.xlu0 %v855, 32
    %v859 = vpop.permute.xlu0 %858
    %v861 = vmul.f32 %v854, %v859
    %863 = vrot.lane.b32.xlu0 %v861, 32
    %v864 = vpop.permute.xlu0 %863
    %v866 = vadd.f32 %v856, %v864
    %v867 = vtanh.pop %v866
    %869 = vrot.lane.b32.xlu0 %v867, 32
    %v870 = vpop.permute.xlu0 %869
    %v872 = vmul.f32 %v854, %v870
    %874 = vrot.lane.b32.xlu0 %v872, 64
    %v875 = vpop.permute.xlu0 %874
    %878 = vrot.lane.b32.xlu0 %v773, 96
    %v879 = vpop.permute.xlu0 %878
    %v881 = vsel %vm192, %v875, %v879
    %v883 = vsel %vm467, %v881, 0
    %885 = vmatprep.subr.mxu0 0.0
    %886 = vmatpush1.msra.mxu0 %v334
    %887 = vmatprep.subr.mxu0 0.0
    %888 = vmatpush1.msra.mxu0 %v335
    %889 = vmatprep.subr.mxu0 0.0
    %890 = vmatpush1.msra.mxu0 %v336
    %891 = vmatprep.subr.mxu0 0.0
    %892 = vmatpush1.msra.mxu0 %v337
    %893 = vmatprep.subr.mxu0 0.0
    %894 = vmatpush1.msra.mxu0 %v338
    %895 = vmatprep.subr.mxu0 0.0
    %896 = vmatpush1.msra.mxu0 %v339
    %897 = vmatprep.subr.mxu0 0.0
    %898 = vmatpush1.msra.mxu0 %v340
    %899 = vmatprep.subr.mxu0 0.0
    %900 = vmatpush1.msra.mxu0 %v341
    %901 = vmatprep.subr.mxu0 0.0
    %902 = vmatpush1.msra.mxu0 0.0
    %903 = vmatprep.subr.mxu0 0.0
    %904 = vmatpush1.msra.mxu0 0.0
    %905 = vmatprep.subr.mxu0 0.0
    %906 = vmatpush1.msra.mxu0 0.0
    %907 = vmatprep.subr.mxu0 0.0
    %908 = vmatpush1.msra.mxu0 0.0
    %909 = vmatprep.subr.mxu0 0.0
    %910 = vmatpush1.msra.mxu0 0.0
    %911 = vmatprep.subr.mxu0 0.0
    %912 = vmatpush1.msra.mxu0 0.0
    %913 = vmatprep.subr.mxu0 0.0
    %914 = vmatpush1.msra.mxu0 0.0
    %915 = vmatprep.subr.mxu0 0.0
    %916 = vmatpush1.msra.mxu0 0.0
    %917 = vmatprep.subr.mxu0 0.0
    %918 = vmatpush1.msra.mxu0 0.0
    %919 = vmatprep.subr.mxu0 0.0
    %920 = vmatpush1.msra.mxu0 0.0
    %921 = vmatprep.subr.mxu0 0.0
    %922 = vmatpush1.msra.mxu0 0.0
    %923 = vmatprep.subr.mxu0 0.0
    %924 = vmatpush1.msra.mxu0 0.0
    %925 = vmatprep.subr.mxu0 0.0
    %926 = vmatpush1.msra.mxu0 0.0
    %927 = vmatprep.subr.mxu0 0.0
    %928 = vmatpush1.msra.mxu0 0.0
    %929 = vmatprep.subr.mxu0 0.0
    %930 = vmatpush1.msra.mxu0 0.0
    %931 = vmatprep.subr.mxu0 0.0
    %932 = vmatpush1.msra.mxu0 0.0
    %933 = vmatprep.subr.mxu0 0.0
    %934 = vmatpush1.msra.mxu0 0.0
    %935 = vmatprep.subr.mxu0 0.0
    %936 = vmatpush1.msra.mxu0 0.0
    %937 = vmatprep.subr.mxu0 0.0
    %938 = vmatpush1.msra.mxu0 0.0
    %939 = vmatprep.subr.mxu0 0.0
    %940 = vmatpush1.msra.mxu0 0.0
    %941 = vmatprep.subr.mxu0 0.0
    %942 = vmatpush1.msra.mxu0 0.0
    %943 = vmatprep.subr.mxu0 0.0
    %944 = vmatpush1.msra.mxu0 0.0
    %945 = vmatprep.subr.mxu0 0.0
    %946 = vmatpush1.msra.mxu0 0.0
    %947 = vmatprep.subr.mxu0 0.0
    %948 = vmatpush1.msra.mxu0 0.0
    %949 = vmatprep.mubr.f32.mxu0 0.0
    %950 = vmatmul.mubr.f32.gmra.mrb[0].mxu0 %v883
    %v951 = vpop.f32.mrb[0].mxu0
    %v952 = vadd.f32 %v347, %v951
    %v953 = vpop.f32.mrb[0].mxu0
    %954 = vdwg.mxu0
    %v955 = vxor.u32 %v952, 2147483648
    %v956 = vmul.f32 %v955, 1.442695
    %v957 = vpow.pop %v956
    %v958 = vadd.f32 %v957, 1.0
    %v959 = vrcp.pop %v958
    %v960 = vmul.f32 1.0, %v959
    %v961 = vtanh.pop %v952
    %v962 = vmul.f32 %v960, %v767
    %964 = vrot.lane.b32.xlu0 %v961, 32
    %v965 = vpop.permute.xlu0 %964
    %v967 = vmul.f32 %v960, %v965
    %969 = vrot.lane.b32.xlu0 %v967, 32
    %v970 = vpop.permute.xlu0 %969
    %v972 = vadd.f32 %v962, %v970
    %v973 = vtanh.pop %v972
    %975 = vrot.lane.b32.xlu0 %v973, 32
    %v976 = vpop.permute.xlu0 %975
    %v978 = vmul.f32 %v960, %v976
    %s979 = scalar_lea.vmem [#allocation2], 24
    %v980 = vld [vmem:[%s979] sm:$0xff]
    %v981 = vsel %vm192, %v875, 0
    %983 = vmatprep.subr.mxu0 0.0
    %984 = vmatpush1.msra.mxu0 %v330
    %985 = vmatprep.subr.mxu0 0.0
    %986 = vmatpush1.msra.mxu0 %v331
    %987 = vmatprep.subr.mxu0 0.0
    %988 = vmatpush1.msra.mxu0 %v332
    %989 = vmatprep.subr.mxu0 0.0
    %990 = vmatpush1.msra.mxu0 %v333
    %991 = vmatprep.subr.mxu0 0.0
    %992 = vmatpush1.msra.mxu0 0.0
    %993 = vmatprep.subr.mxu0 0.0
    %994 = vmatpush1.msra.mxu0 0.0
    %995 = vmatprep.subr.mxu0 0.0
    %996 = vmatpush1.msra.mxu0 0.0
    %997 = vmatprep.subr.mxu0 0.0
    %998 = vmatpush1.msra.mxu0 0.0
    %999 = vmatprep.subr.mxu0 0.0
    %1000 = vmatpush1.msra.mxu0 0.0
    %1001 = vmatprep.subr.mxu0 0.0
    %1002 = vmatpush1.msra.mxu0 0.0
    %1003 = vmatprep.subr.mxu0 0.0
    %1004 = vmatpush1.msra.mxu0 0.0
    %1005 = vmatprep.subr.mxu0 0.0
    %1006 = vmatpush1.msra.mxu0 0.0
    %1007 = vmatprep.subr.mxu0 0.0
    %1008 = vmatpush1.msra.mxu0 0.0
    %1009 = vmatprep.subr.mxu0 0.0
    %1010 = vmatpush1.msra.mxu0 0.0
    %1011 = vmatprep.subr.mxu0 0.0
    %1012 = vmatpush1.msra.mxu0 0.0
    %1013 = vmatprep.subr.mxu0 0.0
    %1014 = vmatpush1.msra.mxu0 0.0
    %1015 = vmatprep.subr.mxu0 0.0
    %1016 = vmatpush1.msra.mxu0 0.0
    %1017 = vmatprep.subr.mxu0 0.0
    %1018 = vmatpush1.msra.mxu0 0.0
    %1019 = vmatprep.subr.mxu0 0.0
    %1020 = vmatpush1.msra.mxu0 0.0
    %1021 = vmatprep.subr.mxu0 0.0
    %1022 = vmatpush1.msra.mxu0 0.0
    %1023 = vmatprep.subr.mxu0 0.0
    %1024 = vmatpush1.msra.mxu0 0.0
    %1025 = vmatprep.subr.mxu0 0.0
    %1026 = vmatpush1.msra.mxu0 0.0
    %1027 = vmatprep.subr.mxu0 0.0
    %1028 = vmatpush1.msra.mxu0 0.0
    %1029 = vmatprep.subr.mxu0 0.0
    %1030 = vmatpush1.msra.mxu0 0.0
    %1031 = vmatprep.subr.mxu0 0.0
    %1032 = vmatpush1.msra.mxu0 0.0
    %1033 = vmatprep.subr.mxu0 0.0
    %1034 = vmatpush1.msra.mxu0 0.0
    %1035 = vmatprep.subr.mxu0 0.0
    %1036 = vmatpush1.msra.mxu0 0.0
    %1037 = vmatprep.subr.mxu0 0.0
    %1038 = vmatpush1.msra.mxu0 0.0
    %1039 = vmatprep.subr.mxu0 0.0
    %1040 = vmatpush1.msra.mxu0 0.0
    %1041 = vmatprep.subr.mxu0 0.0
    %1042 = vmatpush1.msra.mxu0 0.0
    %1043 = vmatprep.subr.mxu0 0.0
    %1044 = vmatpush1.msra.mxu0 0.0
    %1045 = vmatprep.subr.mxu0 0.0
    %1046 = vmatpush1.msra.mxu0 0.0
    %1047 = vmatprep.mubr.f32.mxu0 0.0
    %1048 = vmatmul.mubr.f32.gmra.mrb[0].mxu0 %v981
    %v1049 = vpop.f32.mrb[0].mxu0
    %v1050 = vadd.f32 0.0, %v1049
    %v1051 = vpop.f32.mrb[0].mxu0
    %1052 = vdwg.mxu0
    %v1053 = vadd.f32 %v980, %v1050
    %v1054 = vxor.u32 %v1053, 2147483648
    %v1055 = vmul.f32 %v1054, 1.442695
    %v1056 = vpow.pop %v1055
    %v1057 = vadd.f32 %v1056, 1.0
    %v1058 = vrcp.pop %v1057
    %v1059 = vmul.f32 1.0, %v1058
    %v1060 = vtanh.pop %v1053
    %v1061 = vmul.f32 %v1059, %v866
    %1063 = vrot.lane.b32.xlu0 %v1060, 32
    %v1064 = vpop.permute.xlu0 %1063
    %v1066 = vmul.f32 %v1059, %v1064
    %1068 = vrot.lane.b32.xlu0 %v1066, 32
    %v1069 = vpop.permute.xlu0 %1068
    %v1071 = vadd.f32 %v1061, %v1069
    %v1072 = vtanh.pop %v1071
    %1074 = vrot.lane.b32.xlu0 %v1072, 32
    %v1075 = vpop.permute.xlu0 %1074
    %v1077 = vmul.f32 %v1059, %v1075
    %1079 = vrot.lane.b32.xlu0 %v1077, 64
    %v1080 = vpop.permute.xlu0 %1079
    %1083 = vrot.lane.b32.xlu0 %v978, 96
    %v1084 = vpop.permute.xlu0 %1083
    %v1086 = vsel %vm192, %v1080, %v1084
    %v1088 = vsel %vm467, %v1086, 0
    %1090 = vmatprep.subr.mxu0 0.0
    %1091 = vmatpush1.msra.mxu0 %v334
    %1092 = vmatprep.subr.mxu0 0.0
    %1093 = vmatpush1.msra.mxu0 %v335
    %1094 = vmatprep.subr.mxu0 0.0
    %1095 = vmatpush1.msra.mxu0 %v336
    %1096 = vmatprep.subr.mxu0 0.0
    %1097 = vmatpush1.msra.mxu0 %v337
    %1098 = vmatprep.subr.mxu0 0.0
    %1099 = vmatpush1.msra.mxu0 %v338
    %1100 = vmatprep.subr.mxu0 0.0
    %1101 = vmatpush1.msra.mxu0 %v339
    %1102 = vmatprep.subr.mxu0 0.0
    %1103 = vmatpush1.msra.mxu0 %v340
    %1104 = vmatprep.subr.mxu0 0.0
    %1105 = vmatpush1.msra.mxu0 %v341
    %1106 = vmatprep.subr.mxu0 0.0
    %1107 = vmatpush1.msra.mxu0 0.0
    %1108 = vmatprep.subr.mxu0 0.0
    %1109 = vmatpush1.msra.mxu0 0.0
    %1110 = vmatprep.subr.mxu0 0.0
    %1111 = vmatpush1.msra.mxu0 0.0
    %1112 = vmatprep.subr.mxu0 0.0
    %1113 = vmatpush1.msra.mxu0 0.0
    %1114 = vmatprep.subr.mxu0 0.0
    %1115 = vmatpush1.msra.mxu0 0.0
    %1116 = vmatprep.subr.mxu0 0.0
    %1117 = vmatpush1.msra.mxu0 0.0
    %1118 = vmatprep.subr.mxu0 0.0
    %1119 = vmatpush1.msra.mxu0 0.0
    %1120 = vmatprep.subr.mxu0 0.0
    %1121 = vmatpush1.msra.mxu0 0.0
    %1122 = vmatprep.subr.mxu0 0.0
    %1123 = vmatpush1.msra.mxu0 0.0
    %1124 = vmatprep.subr.mxu0 0.0
    %1125 = vmatpush1.msra.mxu0 0.0
    %1126 = vmatprep.subr.mxu0 0.0
    %1127 = vmatpush1.msra.mxu0 0.0
    %1128 = vmatprep.subr.mxu0 0.0
    %1129 = vmatpush1.msra.mxu0 0.0
    %1130 = vmatprep.subr.mxu0 0.0
    %1131 = vmatpush1.msra.mxu0 0.0
    %1132 = vmatprep.subr.mxu0 0.0
    %1133 = vmatpush1.msra.mxu0 0.0
    %1134 = vmatprep.subr.mxu0 0.0
    %1135 = vmatpush1.msra.mxu0 0.0
    %1136 = vmatprep.subr.mxu0 0.0
    %1137 = vmatpush1.msra.mxu0 0.0
    %1138 = vmatprep.subr.mxu0 0.0
    %1139 = vmatpush1.msra.mxu0 0.0
    %1140 = vmatprep.subr.mxu0 0.0
    %1141 = vmatpush1.msra.mxu0 0.0
    %1142 = vmatprep.subr.mxu0 0.0
    %1143 = vmatpush1.msra.mxu0 0.0
    %1144 = vmatprep.subr.mxu0 0.0
    %1145 = vmatpush1.msra.mxu0 0.0
    %1146 = vmatprep.subr.mxu0 0.0
    %1147 = vmatpush1.msra.mxu0 0.0
    %1148 = vmatprep.subr.mxu0 0.0
    %1149 = vmatpush1.msra.mxu0 0.0
    %1150 = vmatprep.subr.mxu0 0.0
    %1151 = vmatpush1.msra.mxu0 0.0
    %1152 = vmatprep.subr.mxu0 0.0
    %1153 = vmatpush1.msra.mxu0 0.0
    %1154 = vmatprep.mubr.f32.mxu0 0.0
    %1155 = vmatmul.mubr.f32.gmra.mrb[0].mxu0 %v1088
    %v1156 = vpop.f32.mrb[0].mxu0
    %v1157 = vadd.f32 %v347, %v1156
    %v1158 = vpop.f32.mrb[0].mxu0
    %1159 = vdwg.mxu0
    %v1160 = vxor.u32 %v1157, 2147483648
    %v1161 = vmul.f32 %v1160, 1.442695
    %v1162 = vpow.pop %v1161
    %v1163 = vadd.f32 %v1162, 1.0
    %v1164 = vrcp.pop %v1163
    %v1165 = vmul.f32 1.0, %v1164
    %v1166 = vtanh.pop %v1157
    %v1167 = vmul.f32 %v1165, %v972
    %1169 = vrot.lane.b32.xlu0 %v1166, 32
    %v1170 = vpop.permute.xlu0 %1169
    %v1172 = vmul.f32 %v1165, %v1170
    %1174 = vrot.lane.b32.xlu0 %v1172, 32
    %v1175 = vpop.permute.xlu0 %1174
    %v1177 = vadd.f32 %v1167, %v1175
    %v1178 = vtanh.pop %v1177
    %1180 = vrot.lane.b32.xlu0 %v1178, 32
    %v1181 = vpop.permute.xlu0 %1180
    %v1183 = vmul.f32 %v1165, %v1181
    %s1184 = scalar_lea.vmem [#allocation2], 32
    %v1185 = vld [vmem:[%s1184] sm:$0xff]
    %v1186 = vsel %vm192, %v1080, 0
    %1188 = vmatprep.subr.mxu0 0.0
    %1189 = vmatpush1.msra.mxu0 %v330
    %1190 = vmatprep.subr.mxu0 0.0
    %1191 = vmatpush1.msra.mxu0 %v331
    %1192 = vmatprep.subr.mxu0 0.0
    %1193 = vmatpush1.msra.mxu0 %v332
    %1194 = vmatprep.subr.mxu0 0.0
    %1195 = vmatpush1.msra.mxu0 %v333
    %1196 = vmatprep.subr.mxu0 0.0
    %1197 = vmatpush1.msra.mxu0 0.0
    %1198 = vmatprep.subr.mxu0 0.0
    %1199 = vmatpush1.msra.mxu0 0.0
    %1200 = vmatprep.subr.mxu0 0.0
    %1201 = vmatpush1.msra.mxu0 0.0
    %1202 = vmatprep.subr.mxu0 0.0
    %1203 = vmatpush1.msra.mxu0 0.0
    %1204 = vmatprep.subr.mxu0 0.0
    %1205 = vmatpush1.msra.mxu0 0.0
    %1206 = vmatprep.subr.mxu0 0.0
    %1207 = vmatpush1.msra.mxu0 0.0
    %1208 = vmatprep.subr.mxu0 0.0
    %1209 = vmatpush1.msra.mxu0 0.0
    %1210 = vmatprep.subr.mxu0 0.0
    %1211 = vmatpush1.msra.mxu0 0.0
    %1212 = vmatprep.subr.mxu0 0.0
    %1213 = vmatpush1.msra.mxu0 0.0
    %1214 = vmatprep.subr.mxu0 0.0
    %1215 = vmatpush1.msra.mxu0 0.0
    %1216 = vmatprep.subr.mxu0 0.0
    %1217 = vmatpush1.msra.mxu0 0.0
    %1218 = vmatprep.subr.mxu0 0.0
    %1219 = vmatpush1.msra.mxu0 0.0
    %1220 = vmatprep.subr.mxu0 0.0
    %1221 = vmatpush1.msra.mxu0 0.0
    %1222 = vmatprep.subr.mxu0 0.0
    %1223 = vmatpush1.msra.mxu0 0.0
    %1224 = vmatprep.subr.mxu0 0.0
    %1225 = vmatpush1.msra.mxu0 0.0
    %1226 = vmatprep.subr.mxu0 0.0
    %1227 = vmatpush1.msra.mxu0 0.0
    %1228 = vmatprep.subr.mxu0 0.0
    %1229 = vmatpush1.msra.mxu0 0.0
    %1230 = vmatprep.subr.mxu0 0.0
    %1231 = vmatpush1.msra.mxu0 0.0
    %1232 = vmatprep.subr.mxu0 0.0
    %1233 = vmatpush1.msra.mxu0 0.0
    %1234 = vmatprep.subr.mxu0 0.0
    %1235 = vmatpush1.msra.mxu0 0.0
    %1236 = vmatprep.subr.mxu0 0.0
    %1237 = vmatpush1.msra.mxu0 0.0
    %1238 = vmatprep.subr.mxu0 0.0
    %1239 = vmatpush1.msra.mxu0 0.0
    %1240 = vmatprep.subr.mxu0 0.0
    %1241 = vmatpush1.msra.mxu0 0.0
    %1242 = vmatprep.subr.mxu0 0.0
    %1243 = vmatpush1.msra.mxu0 0.0
    %1244 = vmatprep.subr.mxu0 0.0
    %1245 = vmatpush1.msra.mxu0 0.0
    %1246 = vmatprep.subr.mxu0 0.0
    %1247 = vmatpush1.msra.mxu0 0.0
    %1248 = vmatprep.subr.mxu0 0.0
    %1249 = vmatpush1.msra.mxu0 0.0
    %1250 = vmatprep.subr.mxu0 0.0
    %1251 = vmatpush1.msra.mxu0 0.0
    %1252 = vmatprep.mubr.f32.mxu0 0.0
    %1253 = vmatmul.mubr.f32.gmra.mrb[0].mxu0 %v1186
    %v1254 = vpop.f32.mrb[0].mxu0
    %v1255 = vadd.f32 0.0, %v1254
    %v1256 = vpop.f32.mrb[0].mxu0
    %1257 = vdwg.mxu0
    %v1258 = vadd.f32 %v1185, %v1255
    %v1259 = vxor.u32 %v1258, 2147483648
    %v1260 = vmul.f32 %v1259, 1.442695
    %v1261 = vpow.pop %v1260
    %v1262 = vadd.f32 %v1261, 1.0
    %v1263 = vrcp.pop %v1262
    %v1264 = vmul.f32 1.0, %v1263
    %v1265 = vtanh.pop %v1258
    %v1266 = vmul.f32 %v1264, %v1071
    %1268 = vrot.lane.b32.xlu0 %v1265, 32
    %v1269 = vpop.permute.xlu0 %1268
    %v1271 = vmul.f32 %v1264, %v1269
    %1273 = vrot.lane.b32.xlu0 %v1271, 32
    %v1274 = vpop.permute.xlu0 %1273
    %v1276 = vadd.f32 %v1266, %v1274
    %v1277 = vtanh.pop %v1276
    %1279 = vrot.lane.b32.xlu0 %v1277, 32
    %v1280 = vpop.permute.xlu0 %1279
    %v1282 = vmul.f32 %v1264, %v1280
    %1284 = vrot.lane.b32.xlu0 %v1282, 64
    %v1285 = vpop.permute.xlu0 %1284
    %1288 = vrot.lane.b32.xlu0 %v1183, 96
    %v1289 = vpop.permute.xlu0 %1288
    %v1291 = vsel %vm192, %v1285, %v1289
    %v1293 = vsel %vm467, %v1291, 0
    %1295 = vmatprep.subr.mxu0 0.0
    %1296 = vmatpush1.msra.mxu0 %v334
    %1297 = vmatprep.subr.mxu0 0.0
    %1298 = vmatpush1.msra.mxu0 %v335
    %1299 = vmatprep.subr.mxu0 0.0
    %1300 = vmatpush1.msra.mxu0 %v336
    %1301 = vmatprep.subr.mxu0 0.0
    %1302 = vmatpush1.msra.mxu0 %v337
    %1303 = vmatprep.subr.mxu0 0.0
    %1304 = vmatpush1.msra.mxu0 %v338
    %1305 = vmatprep.subr.mxu0 0.0
    %1306 = vmatpush1.msra.mxu0 %v339
    %1307 = vmatprep.subr.mxu0 0.0
    %1308 = vmatpush1.msra.mxu0 %v340
    %1309 = vmatprep.subr.mxu0 0.0
    %1310 = vmatpush1.msra.mxu0 %v341
    %1311 = vmatprep.subr.mxu0 0.0
    %1312 = vmatpush1.msra.mxu0 0.0
    %1313 = vmatprep.subr.mxu0 0.0
    %1314 = vmatpush1.msra.mxu0 0.0
    %1315 = vmatprep.subr.mxu0 0.0
    %1316 = vmatpush1.msra.mxu0 0.0
    %1317 = vmatprep.subr.mxu0 0.0
    %1318 = vmatpush1.msra.mxu0 0.0
    %1319 = vmatprep.subr.mxu0 0.0
    %1320 = vmatpush1.msra.mxu0 0.0
    %1321 = vmatprep.subr.mxu0 0.0
    %1322 = vmatpush1.msra.mxu0 0.0
    %1323 = vmatprep.subr.mxu0 0.0
    %1324 = vmatpush1.msra.mxu0 0.0
    %1325 = vmatprep.subr.mxu0 0.0
    %1326 = vmatpush1.msra.mxu0 0.0
    %1327 = vmatprep.subr.mxu0 0.0
    %1328 = vmatpush1.msra.mxu0 0.0
    %1329 = vmatprep.subr.mxu0 0.0
    %1330 = vmatpush1.msra.mxu0 0.0
    %1331 = vmatprep.subr.mxu0 0.0
    %1332 = vmatpush1.msra.mxu0 0.0
    %1333 = vmatprep.subr.mxu0 0.0
    %1334 = vmatpush1.msra.mxu0 0.0
    %1335 = vmatprep.subr.mxu0 0.0
    %1336 = vmatpush1.msra.mxu0 0.0
    %1337 = vmatprep.subr.mxu0 0.0
    %1338 = vmatpush1.msra.mxu0 0.0
    %1339 = vmatprep.subr.mxu0 0.0
    %1340 = vmatpush1.msra.mxu0 0.0
    %1341 = vmatprep.subr.mxu0 0.0
    %1342 = vmatpush1.msra.mxu0 0.0
    %1343 = vmatprep.subr.mxu0 0.0
    %1344 = vmatpush1.msra.mxu0 0.0
    %1345 = vmatprep.subr.mxu0 0.0
    %1346 = vmatpush1.msra.mxu0 0.0
    %1347 = vmatprep.subr.mxu0 0.0
    %1348 = vmatpush1.msra.mxu0 0.0
    %1349 = vmatprep.subr.mxu0 0.0
    %1350 = vmatpush1.msra.mxu0 0.0
    %1351 = vmatprep.subr.mxu0 0.0
    %1352 = vmatpush1.msra.mxu0 0.0
    %1353 = vmatprep.subr.mxu0 0.0
    %1354 = vmatpush1.msra.mxu0 0.0
    %1355 = vmatprep.subr.mxu0 0.0
    %1356 = vmatpush1.msra.mxu0 0.0
    %1357 = vmatprep.subr.mxu0 0.0
    %1358 = vmatpush1.msra.mxu0 0.0
    %1359 = vmatprep.mubr.f32.mxu0 0.0
    %1360 = vmatmul.mubr.f32.gmra.mrb[0].mxu0 %v1293
    %v1361 = vpop.f32.mrb[0].mxu0
    %v1362 = vadd.f32 %v347, %v1361
    %v1363 = vpop.f32.mrb[0].mxu0
    %1364 = vdwg.mxu0
    %v1365 = vxor.u32 %v1362, 2147483648
    %v1366 = vmul.f32 %v1365, 1.442695
    %v1367 = vpow.pop %v1366
    %v1368 = vadd.f32 %v1367, 1.0
    %v1369 = vrcp.pop %v1368
    %v1370 = vmul.f32 1.0, %v1369
    %v1371 = vtanh.pop %v1362
    %v1372 = vmul.f32 %v1370, %v1177
    %1374 = vrot.lane.b32.xlu0 %v1371, 32
    %v1375 = vpop.permute.xlu0 %1374
    %v1377 = vmul.f32 %v1370, %v1375
    %1379 = vrot.lane.b32.xlu0 %v1377, 32
    %v1380 = vpop.permute.xlu0 %1379
    %v1382 = vadd.f32 %v1372, %v1380
    %v1383 = vtanh.pop %v1382
    %1385 = vrot.lane.b32.xlu0 %v1383, 32
    %v1386 = vpop.permute.xlu0 %1385
    %v1388 = vmul.f32 %v1370, %v1386
    %s1389 = scalar_lea.vmem [#allocation2], 40
    %v1390 = vld [vmem:[%s1389] sm:$0xff]
    %v1391 = vsel %vm192, %v1285, 0
    %1393 = vmatprep.subr.mxu0 0.0
    %1394 = vmatpush1.msra.mxu0 %v330
    %1395 = vmatprep.subr.mxu0 0.0
    %1396 = vmatpush1.msra.mxu0 %v331
    %1397 = vmatprep.subr.mxu0 0.0
    %1398 = vmatpush1.msra.mxu0 %v332
    %1399 = vmatprep.subr.mxu0 0.0
    %1400 = vmatpush1.msra.mxu0 %v333
    %1401 = vmatprep.subr.mxu0 0.0
    %1402 = vmatpush1.msra.mxu0 0.0
    %1403 = vmatprep.subr.mxu0 0.0
    %1404 = vmatpush1.msra.mxu0 0.0
    %1405 = vmatprep.subr.mxu0 0.0
    %1406 = vmatpush1.msra.mxu0 0.0
    %1407 = vmatprep.subr.mxu0 0.0
    %1408 = vmatpush1.msra.mxu0 0.0
    %1409 = vmatprep.subr.mxu0 0.0
    %1410 = vmatpush1.msra.mxu0 0.0
    %1411 = vmatprep.subr.mxu0 0.0
    %1412 = vmatpush1.msra.mxu0 0.0
    %1413 = vmatprep.subr.mxu0 0.0
    %1414 = vmatpush1.msra.mxu0 0.0
    %1415 = vmatprep.subr.mxu0 0.0
    %1416 = vmatpush1.msra.mxu0 0.0
    %1417 = vmatprep.subr.mxu0 0.0
    %1418 = vmatpush1.msra.mxu0 0.0
    %1419 = vmatprep.subr.mxu0 0.0
    %1420 = vmatpush1.msra.mxu0 0.0
    %1421 = vmatprep.subr.mxu0 0.0
    %1422 = vmatpush1.msra.mxu0 0.0
    %1423 = vmatprep.subr.mxu0 0.0
    %1424 = vmatpush1.msra.mxu0 0.0
    %1425 = vmatprep.subr.mxu0 0.0
    %1426 = vmatpush1.msra.mxu0 0.0
    %1427 = vmatprep.subr.mxu0 0.0
    %1428 = vmatpush1.msra.mxu0 0.0
    %1429 = vmatprep.subr.mxu0 0.0
    %1430 = vmatpush1.msra.mxu0 0.0
    %1431 = vmatprep.subr.mxu0 0.0
    %1432 = vmatpush1.msra.mxu0 0.0
    %1433 = vmatprep.subr.mxu0 0.0
    %1434 = vmatpush1.msra.mxu0 0.0
    %1435 = vmatprep.subr.mxu0 0.0
    %1436 = vmatpush1.msra.mxu0 0.0
    %1437 = vmatprep.subr.mxu0 0.0
    %1438 = vmatpush1.msra.mxu0 0.0
    %1439 = vmatprep.subr.mxu0 0.0
    %1440 = vmatpush1.msra.mxu0 0.0
    %1441 = vmatprep.subr.mxu0 0.0
    %1442 = vmatpush1.msra.mxu0 0.0
    %1443 = vmatprep.subr.mxu0 0.0
    %1444 = vmatpush1.msra.mxu0 0.0
    %1445 = vmatprep.subr.mxu0 0.0
    %1446 = vmatpush1.msra.mxu0 0.0
    %1447 = vmatprep.subr.mxu0 0.0
    %1448 = vmatpush1.msra.mxu0 0.0
    %1449 = vmatprep.subr.mxu0 0.0
    %1450 = vmatpush1.msra.mxu0 0.0
    %1451 = vmatprep.subr.mxu0 0.0
    %1452 = vmatpush1.msra.mxu0 0.0
    %1453 = vmatprep.subr.mxu0 0.0
    %1454 = vmatpush1.msra.mxu0 0.0
    %1455 = vmatprep.subr.mxu0 0.0
    %1456 = vmatpush1.msra.mxu0 0.0
    %1457 = vmatprep.mubr.f32.mxu0 0.0
    %1458 = vmatmul.mubr.f32.gmra.mrb[0].mxu0 %v1391
    %v1459 = vpop.f32.mrb[0].mxu0
    %v1460 = vadd.f32 0.0, %v1459
    %v1461 = vpop.f32.mrb[0].mxu0
    %1462 = vdwg.mxu0
    %v1463 = vadd.f32 %v1390, %v1460
    %v1464 = vxor.u32 %v1463, 2147483648
    %v1465 = vmul.f32 %v1464, 1.442695
    %v1466 = vpow.pop %v1465
    %v1467 = vadd.f32 %v1466, 1.0
    %v1468 = vrcp.pop %v1467
    %v1469 = vmul.f32 1.0, %v1468
    %v1470 = vtanh.pop %v1463
    %v1471 = vmul.f32 %v1469, %v1276
    %1473 = vrot.lane.b32.xlu0 %v1470, 32
    %v1474 = vpop.permute.xlu0 %1473
    %v1476 = vmul.f32 %v1469, %v1474
    %1478 = vrot.lane.b32.xlu0 %v1476, 32
    %v1479 = vpop.permute.xlu0 %1478
    %v1481 = vadd.f32 %v1471, %v1479
    %v1482 = vtanh.pop %v1481
    %1484 = vrot.lane.b32.xlu0 %v1482, 32
    %v1485 = vpop.permute.xlu0 %1484
    %v1487 = vmul.f32 %v1469, %v1485
    %1489 = vrot.lane.b32.xlu0 %v1487, 64
    %v1490 = vpop.permute.xlu0 %1489
    %1493 = vrot.lane.b32.xlu0 %v1388, 96
    %v1494 = vpop.permute.xlu0 %1493
    %v1496 = vsel %vm192, %v1490, %v1494
    %v1498 = vsel %vm467, %v1496, 0
    %1500 = vmatprep.subr.mxu0 0.0
    %1501 = vmatpush1.msra.mxu0 %v334
    %1502 = vmatprep.subr.mxu0 0.0
    %1503 = vmatpush1.msra.mxu0 %v335
    %1504 = vmatprep.subr.mxu0 0.0
    %1505 = vmatpush1.msra.mxu0 %v336
    %1506 = vmatprep.subr.mxu0 0.0
    %1507 = vmatpush1.msra.mxu0 %v337
    %1508 = vmatprep.subr.mxu0 0.0
    %1509 = vmatpush1.msra.mxu0 %v338
    %1510 = vmatprep.subr.mxu0 0.0
    %1511 = vmatpush1.msra.mxu0 %v339
    %1512 = vmatprep.subr.mxu0 0.0
    %1513 = vmatpush1.msra.mxu0 %v340
    %1514 = vmatprep.subr.mxu0 0.0
    %1515 = vmatpush1.msra.mxu0 %v341
    %1516 = vmatprep.subr.mxu0 0.0
    %1517 = vmatpush1.msra.mxu0 0.0
    %1518 = vmatprep.subr.mxu0 0.0
    %1519 = vmatpush1.msra.mxu0 0.0
    %1520 = vmatprep.subr.mxu0 0.0
    %1521 = vmatpush1.msra.mxu0 0.0
    %1522 = vmatprep.subr.mxu0 0.0
    %1523 = vmatpush1.msra.mxu0 0.0
    %1524 = vmatprep.subr.mxu0 0.0
    %1525 = vmatpush1.msra.mxu0 0.0
    %1526 = vmatprep.subr.mxu0 0.0
    %1527 = vmatpush1.msra.mxu0 0.0
    %1528 = vmatprep.subr.mxu0 0.0
    %1529 = vmatpush1.msra.mxu0 0.0
    %1530 = vmatprep.subr.mxu0 0.0
    %1531 = vmatpush1.msra.mxu0 0.0
    %1532 = vmatprep.subr.mxu0 0.0
    %1533 = vmatpush1.msra.mxu0 0.0
    %1534 = vmatprep.subr.mxu0 0.0
    %1535 = vmatpush1.msra.mxu0 0.0
    %1536 = vmatprep.subr.mxu0 0.0
    %1537 = vmatpush1.msra.mxu0 0.0
    %1538 = vmatprep.subr.mxu0 0.0
    %1539 = vmatpush1.msra.mxu0 0.0
    %1540 = vmatprep.subr.mxu0 0.0
    %1541 = vmatpush1.msra.mxu0 0.0
    %1542 = vmatprep.subr.mxu0 0.0
    %1543 = vmatpush1.msra.mxu0 0.0
    %1544 = vmatprep.subr.mxu0 0.0
    %1545 = vmatpush1.msra.mxu0 0.0
    %1546 = vmatprep.subr.mxu0 0.0
    %1547 = vmatpush1.msra.mxu0 0.0
    %1548 = vmatprep.subr.mxu0 0.0
    %1549 = vmatpush1.msra.mxu0 0.0
    %1550 = vmatprep.subr.mxu0 0.0
    %1551 = vmatpush1.msra.mxu0 0.0
    %1552 = vmatprep.subr.mxu0 0.0
    %1553 = vmatpush1.msra.mxu0 0.0
    %1554 = vmatprep.subr.mxu0 0.0
    %1555 = vmatpush1.msra.mxu0 0.0
    %1556 = vmatprep.subr.mxu0 0.0
    %1557 = vmatpush1.msra.mxu0 0.0
    %1558 = vmatprep.subr.mxu0 0.0
    %1559 = vmatpush1.msra.mxu0 0.0
    %1560 = vmatprep.subr.mxu0 0.0
    %1561 = vmatpush1.msra.mxu0 0.0
    %1562 = vmatprep.subr.mxu0 0.0
    %1563 = vmatpush1.msra.mxu0 0.0
    %1564 = vmatprep.mubr.f32.mxu0 0.0
    %1565 = vmatmul.mubr.f32.gmra.mrb[0].mxu0 %v1498
    %v1566 = vpop.f32.mrb[0].mxu0
    %v1567 = vadd.f32 %v347, %v1566
    %v1568 = vpop.f32.mrb[0].mxu0
    %1569 = vdwg.mxu0
    %v1570 = vxor.u32 %v1567, 2147483648
    %v1571 = vmul.f32 %v1570, 1.442695
    %v1572 = vpow.pop %v1571
    %v1573 = vadd.f32 %v1572, 1.0
    %v1574 = vrcp.pop %v1573
    %v1575 = vmul.f32 1.0, %v1574
    %v1576 = vtanh.pop %v1567
    %v1577 = vmul.f32 %v1575, %v1382
    %1579 = vrot.lane.b32.xlu0 %v1576, 32
    %v1580 = vpop.permute.xlu0 %1579
    %v1582 = vmul.f32 %v1575, %v1580
    %1584 = vrot.lane.b32.xlu0 %v1582, 32
    %v1585 = vpop.permute.xlu0 %1584
    %v1587 = vadd.f32 %v1577, %v1585
    %v1588 = vtanh.pop %v1587
    %1590 = vrot.lane.b32.xlu0 %v1588, 32
    %v1591 = vpop.permute.xlu0 %1590
    %v1593 = vmul.f32 %v1575, %v1591
    %s1594 = scalar_lea.vmem [#allocation2], 48
    %v1595 = vld [vmem:[%s1594] sm:$0xff]
    %v1596 = vsel %vm192, %v1490, 0
    %1598 = vmatprep.subr.mxu0 0.0
    %1599 = vmatpush1.msra.mxu0 %v330
    %1600 = vmatprep.subr.mxu0 0.0
    %1601 = vmatpush1.msra.mxu0 %v331
    %1602 = vmatprep.subr.mxu0 0.0
    %1603 = vmatpush1.msra.mxu0 %v332
    %1604 = vmatprep.subr.mxu0 0.0
    %1605 = vmatpush1.msra.mxu0 %v333
    %1606 = vmatprep.subr.mxu0 0.0
    %1607 = vmatpush1.msra.mxu0 0.0
    %1608 = vmatprep.subr.mxu0 0.0
    %1609 = vmatpush1.msra.mxu0 0.0
    %1610 = vmatprep.subr.mxu0 0.0
    %1611 = vmatpush1.msra.mxu0 0.0
    %1612 = vmatprep.subr.mxu0 0.0
    %1613 = vmatpush1.msra.mxu0 0.0
    %1614 = vmatprep.subr.mxu0 0.0
    %1615 = vmatpush1.msra.mxu0 0.0
    %1616 = vmatprep.subr.mxu0 0.0
    %1617 = vmatpush1.msra.mxu0 0.0
    %1618 = vmatprep.subr.mxu0 0.0
    %1619 = vmatpush1.msra.mxu0 0.0
    %1620 = vmatprep.subr.mxu0 0.0
    %1621 = vmatpush1.msra.mxu0 0.0
    %1622 = vmatprep.subr.mxu0 0.0
    %1623 = vmatpush1.msra.mxu0 0.0
    %1624 = vmatprep.subr.mxu0 0.0
    %1625 = vmatpush1.msra.mxu0 0.0
    %1626 = vmatprep.subr.mxu0 0.0
    %1627 = vmatpush1.msra.mxu0 0.0
    %1628 = vmatprep.subr.mxu0 0.0
    %1629 = vmatpush1.msra.mxu0 0.0
    %1630 = vmatprep.subr.mxu0 0.0
    %1631 = vmatpush1.msra.mxu0 0.0
    %1632 = vmatprep.subr.mxu0 0.0
    %1633 = vmatpush1.msra.mxu0 0.0
    %1634 = vmatprep.subr.mxu0 0.0
    %1635 = vmatpush1.msra.mxu0 0.0
    %1636 = vmatprep.subr.mxu0 0.0
    %1637 = vmatpush1.msra.mxu0 0.0
    %1638 = vmatprep.subr.mxu0 0.0
    %1639 = vmatpush1.msra.mxu0 0.0
    %1640 = vmatprep.subr.mxu0 0.0
    %1641 = vmatpush1.msra.mxu0 0.0
    %1642 = vmatprep.subr.mxu0 0.0
    %1643 = vmatpush1.msra.mxu0 0.0
    %1644 = vmatprep.subr.mxu0 0.0
    %1645 = vmatpush1.msra.mxu0 0.0
    %1646 = vmatprep.subr.mxu0 0.0
    %1647 = vmatpush1.msra.mxu0 0.0
    %1648 = vmatprep.subr.mxu0 0.0
    %1649 = vmatpush1.msra.mxu0 0.0
    %1650 = vmatprep.subr.mxu0 0.0
    %1651 = vmatpush1.msra.mxu0 0.0
    %1652 = vmatprep.subr.mxu0 0.0
    %1653 = vmatpush1.msra.mxu0 0.0
    %1654 = vmatprep.subr.mxu0 0.0
    %1655 = vmatpush1.msra.mxu0 0.0
    %1656 = vmatprep.subr.mxu0 0.0
    %1657 = vmatpush1.msra.mxu0 0.0
    %1658 = vmatprep.subr.mxu0 0.0
    %1659 = vmatpush1.msra.mxu0 0.0
    %1660 = vmatprep.subr.mxu0 0.0
    %1661 = vmatpush1.msra.mxu0 0.0
    %1662 = vmatprep.mubr.f32.mxu0 0.0
    %1663 = vmatmul.mubr.f32.gmra.mrb[0].mxu0 %v1596
    %v1664 = vpop.f32.mrb[0].mxu0
    %v1665 = vadd.f32 0.0, %v1664
    %v1666 = vpop.f32.mrb[0].mxu0
    %1667 = vdwg.mxu0
    %v1668 = vadd.f32 %v1595, %v1665
    %v1669 = vxor.u32 %v1668, 2147483648
    %v1670 = vmul.f32 %v1669, 1.442695
    %v1671 = vpow.pop %v1670
    %v1672 = vadd.f32 %v1671, 1.0
    %v1673 = vrcp.pop %v1672
    %v1674 = vmul.f32 1.0, %v1673
    %v1675 = vtanh.pop %v1668
    %v1676 = vmul.f32 %v1674, %v1481
    %1678 = vrot.lane.b32.xlu0 %v1675, 32
    %v1679 = vpop.permute.xlu0 %1678
    %v1681 = vmul.f32 %v1674, %v1679
    %1683 = vrot.lane.b32.xlu0 %v1681, 32
    %v1684 = vpop.permute.xlu0 %1683
    %v1686 = vadd.f32 %v1676, %v1684
    %v1687 = vtanh.pop %v1686
    %1689 = vrot.lane.b32.xlu0 %v1687, 32
    %v1690 = vpop.permute.xlu0 %1689
    %v1692 = vmul.f32 %v1674, %v1690
    %1694 = vrot.lane.b32.xlu0 %v1692, 64
    %v1695 = vpop.permute.xlu0 %1694
    %1698 = vrot.lane.b32.xlu0 %v1593, 96
    %v1699 = vpop.permute.xlu0 %1698
    %v1701 = vsel %vm192, %v1695, %v1699
    %v1703 = vsel %vm467, %v1701, 0
    %1705 = vmatprep.subr.mxu0 0.0
    %1706 = vmatpush1.msra.mxu0 %v334
    %1707 = vmatprep.subr.mxu0 0.0
    %1708 = vmatpush1.msra.mxu0 %v335
    %1709 = vmatprep.subr.mxu0 0.0
    %1710 = vmatpush1.msra.mxu0 %v336
    %1711 = vmatprep.subr.mxu0 0.0
    %1712 = vmatpush1.msra.mxu0 %v337
    %1713 = vmatprep.subr.mxu0 0.0
    %1714 = vmatpush1.msra.mxu0 %v338
    %1715 = vmatprep.subr.mxu0 0.0
    %1716 = vmatpush1.msra.mxu0 %v339
    %1717 = vmatprep.subr.mxu0 0.0
    %1718 = vmatpush1.msra.mxu0 %v340
    %1719 = vmatprep.subr.mxu0 0.0
    %1720 = vmatpush1.msra.mxu0 %v341
    %1721 = vmatprep.subr.mxu0 0.0
    %1722 = vmatpush1.msra.mxu0 0.0
    %1723 = vmatprep.subr.mxu0 0.0
    %1724 = vmatpush1.msra.mxu0 0.0
    %1725 = vmatprep.subr.mxu0 0.0
    %1726 = vmatpush1.msra.mxu0 0.0
    %1727 = vmatprep.subr.mxu0 0.0
    %1728 = vmatpush1.msra.mxu0 0.0
    %1729 = vmatprep.subr.mxu0 0.0
    %1730 = vmatpush1.msra.mxu0 0.0
    %1731 = vmatprep.subr.mxu0 0.0
    %1732 = vmatpush1.msra.mxu0 0.0
    %1733 = vmatprep.subr.mxu0 0.0
    %1734 = vmatpush1.msra.mxu0 0.0
    %1735 = vmatprep.subr.mxu0 0.0
    %1736 = vmatpush1.msra.mxu0 0.0
    %1737 = vmatprep.subr.mxu0 0.0
    %1738 = vmatpush1.msra.mxu0 0.0
    %1739 = vmatprep.subr.mxu0 0.0
    %1740 = vmatpush1.msra.mxu0 0.0
    %1741 = vmatprep.subr.mxu0 0.0
    %1742 = vmatpush1.msra.mxu0 0.0
    %1743 = vmatprep.subr.mxu0 0.0
    %1744 = vmatpush1.msra.mxu0 0.0
    %1745 = vmatprep.subr.mxu0 0.0
    %1746 = vmatpush1.msra.mxu0 0.0
    %1747 = vmatprep.subr.mxu0 0.0
    %1748 = vmatpush1.msra.mxu0 0.0
    %1749 = vmatprep.subr.mxu0 0.0
    %1750 = vmatpush1.msra.mxu0 0.0
    %1751 = vmatprep.subr.mxu0 0.0
    %1752 = vmatpush1.msra.mxu0 0.0
    %1753 = vmatprep.subr.mxu0 0.0
    %1754 = vmatpush1.msra.mxu0 0.0
    %1755 = vmatprep.subr.mxu0 0.0
    %1756 = vmatpush1.msra.mxu0 0.0
    %1757 = vmatprep.subr.mxu0 0.0
    %1758 = vmatpush1.msra.mxu0 0.0
    %1759 = vmatprep.subr.mxu0 0.0
    %1760 = vmatpush1.msra.mxu0 0.0
    %1761 = vmatprep.subr.mxu0 0.0
    %1762 = vmatpush1.msra.mxu0 0.0
    %1763 = vmatprep.subr.mxu0 0.0
    %1764 = vmatpush1.msra.mxu0 0.0
    %1765 = vmatprep.subr.mxu0 0.0
    %1766 = vmatpush1.msra.mxu0 0.0
    %1767 = vmatprep.subr.mxu0 0.0
    %1768 = vmatpush1.msra.mxu0 0.0
    %1769 = vmatprep.mubr.f32.mxu0 0.0
    %1770 = vmatmul.mubr.f32.gmra.mrb[0].mxu0 %v1703
    %v1771 = vpop.f32.mrb[0].mxu0
    %v1772 = vadd.f32 %v347, %v1771
    %v1773 = vpop.f32.mrb[0].mxu0
    %1774 = vdwg.mxu0
    %v1775 = vxor.u32 %v1772, 2147483648
    %v1776 = vmul.f32 %v1775, 1.442695
    %v1777 = vpow.pop %v1776
    %v1778 = vadd.f32 %v1777, 1.0
    %v1779 = vrcp.pop %v1778
    %v1780 = vmul.f32 1.0, %v1779
    %v1781 = vtanh.pop %v1772
    %v1782 = vmul.f32 %v1780, %v1587
    %1784 = vrot.lane.b32.xlu0 %v1781, 32
    %v1785 = vpop.permute.xlu0 %1784
    %v1787 = vmul.f32 %v1780, %v1785
    %1789 = vrot.lane.b32.xlu0 %v1787, 32
    %v1790 = vpop.permute.xlu0 %1789
    %v1792 = vadd.f32 %v1782, %v1790
    %v1793 = vtanh.pop %v1792
    %1795 = vrot.lane.b32.xlu0 %v1793, 32
    %v1796 = vpop.permute.xlu0 %1795
    %v1798 = vmul.f32 %v1780, %v1796
    %s1799 = scalar_lea.vmem [#allocation2], 56
    %v1800 = vld [vmem:[%s1799] sm:$0xff]
    %v1801 = vsel %vm192, %v1695, 0
    %1803 = vmatprep.subr.mxu0 0.0
    %1804 = vmatpush1.msra.mxu0 %v330
    %1805 = vmatprep.subr.mxu0 0.0
    %1806 = vmatpush1.msra.mxu0 %v331
    %1807 = vmatprep.subr.mxu0 0.0
    %1808 = vmatpush1.msra.mxu0 %v332
    %1809 = vmatprep.subr.mxu0 0.0
    %1810 = vmatpush1.msra.mxu0 %v333
    %1811 = vmatprep.subr.mxu0 0.0
    %1812 = vmatpush1.msra.mxu0 0.0
    %1813 = vmatprep.subr.mxu0 0.0
    %1814 = vmatpush1.msra.mxu0 0.0
    %1815 = vmatprep.subr.mxu0 0.0
    %1816 = vmatpush1.msra.mxu0 0.0
    %1817 = vmatprep.subr.mxu0 0.0
    %1818 = vmatpush1.msra.mxu0 0.0
    %1819 = vmatprep.subr.mxu0 0.0
    %1820 = vmatpush1.msra.mxu0 0.0
    %1821 = vmatprep.subr.mxu0 0.0
    %1822 = vmatpush1.msra.mxu0 0.0
    %1823 = vmatprep.subr.mxu0 0.0
    %1824 = vmatpush1.msra.mxu0 0.0
    %1825 = vmatprep.subr.mxu0 0.0
    %1826 = vmatpush1.msra.mxu0 0.0
    %1827 = vmatprep.subr.mxu0 0.0
    %1828 = vmatpush1.msra.mxu0 0.0
    %1829 = vmatprep.subr.mxu0 0.0
    %1830 = vmatpush1.msra.mxu0 0.0
    %1831 = vmatprep.subr.mxu0 0.0
    %1832 = vmatpush1.msra.mxu0 0.0
    %1833 = vmatprep.subr.mxu0 0.0
    %1834 = vmatpush1.msra.mxu0 0.0
    %1835 = vmatprep.subr.mxu0 0.0
    %1836 = vmatpush1.msra.mxu0 0.0
    %1837 = vmatprep.subr.mxu0 0.0
    %1838 = vmatpush1.msra.mxu0 0.0
    %1839 = vmatprep.subr.mxu0 0.0
    %1840 = vmatpush1.msra.mxu0 0.0
    %1841 = vmatprep.subr.mxu0 0.0
    %1842 = vmatpush1.msra.mxu0 0.0
    %1843 = vmatprep.subr.mxu0 0.0
    %1844 = vmatpush1.msra.mxu0 0.0
    %1845 = vmatprep.subr.mxu0 0.0
    %1846 = vmatpush1.msra.mxu0 0.0
    %1847 = vmatprep.subr.mxu0 0.0
    %1848 = vmatpush1.msra.mxu0 0.0
    %1849 = vmatprep.subr.mxu0 0.0
    %1850 = vmatpush1.msra.mxu0 0.0
    %1851 = vmatprep.subr.mxu0 0.0
    %1852 = vmatpush1.msra.mxu0 0.0
    %1853 = vmatprep.subr.mxu0 0.0
    %1854 = vmatpush1.msra.mxu0 0.0
    %1855 = vmatprep.subr.mxu0 0.0
    %1856 = vmatpush1.msra.mxu0 0.0
    %1857 = vmatprep.subr.mxu0 0.0
    %1858 = vmatpush1.msra.mxu0 0.0
    %1859 = vmatprep.subr.mxu0 0.0
    %1860 = vmatpush1.msra.mxu0 0.0
    %1861 = vmatprep.subr.mxu0 0.0
    %1862 = vmatpush1.msra.mxu0 0.0
    %1863 = vmatprep.subr.mxu0 0.0
    %1864 = vmatpush1.msra.mxu0 0.0
    %1865 = vmatprep.subr.mxu0 0.0
    %1866 = vmatpush1.msra.mxu0 0.0
    %1867 = vmatprep.mubr.f32.mxu0 0.0
    %1868 = vmatmul.mubr.f32.gmra.mrb[0].mxu0 %v1801
    %v1869 = vpop.f32.mrb[0].mxu0
    %v1870 = vadd.f32 0.0, %v1869
    %v1871 = vpop.f32.mrb[0].mxu0
    %1872 = vdwg.mxu0
    %v1873 = vadd.f32 %v1800, %v1870
    %v1874 = vxor.u32 %v1873, 2147483648
    %v1875 = vmul.f32 %v1874, 1.442695
    %v1876 = vpow.pop %v1875
    %v1877 = vadd.f32 %v1876, 1.0
    %v1878 = vrcp.pop %v1877
    %v1879 = vmul.f32 1.0, %v1878
    %v1880 = vtanh.pop %v1873
    %v1881 = vmul.f32 %v1879, %v1686
    %1883 = vrot.lane.b32.xlu0 %v1880, 32
    %v1884 = vpop.permute.xlu0 %1883
    %v1886 = vmul.f32 %v1879, %v1884
    %1888 = vrot.lane.b32.xlu0 %v1886, 32
    %v1889 = vpop.permute.xlu0 %1888
    %v1891 = vadd.f32 %v1881, %v1889
    %v1892 = vtanh.pop %v1891
    %1894 = vrot.lane.b32.xlu0 %v1892, 32
    %v1895 = vpop.permute.xlu0 %1894
    %v1897 = vmul.f32 %v1879, %v1895
    %1899 = vrot.lane.b32.xlu0 %v1897, 64
    %v1900 = vpop.permute.xlu0 %1899
    %1903 = vrot.lane.b32.xlu0 %v1798, 96
    %v1904 = vpop.permute.xlu0 %1903
    %v1906 = vsel %vm192, %v1900, %v1904
    %v1908 = vsel %vm467, %v1906, 0
    %1910 = vmatprep.subr.mxu0 0.0
    %1911 = vmatpush1.msra.mxu0 %v334
    %1912 = vmatprep.subr.mxu0 0.0
    %1913 = vmatpush1.msra.mxu0 %v335
    %1914 = vmatprep.subr.mxu0 0.0
    %1915 = vmatpush1.msra.mxu0 %v336
    %1916 = vmatprep.subr.mxu0 0.0
    %1917 = vmatpush1.msra.mxu0 %v337
    %1918 = vmatprep.subr.mxu0 0.0
    %1919 = vmatpush1.msra.mxu0 %v338
    %1920 = vmatprep.subr.mxu0 0.0
    %1921 = vmatpush1.msra.mxu0 %v339
    %1922 = vmatprep.subr.mxu0 0.0
    %1923 = vmatpush1.msra.mxu0 %v340
    %1924 = vmatprep.subr.mxu0 0.0
    %1925 = vmatpush1.msra.mxu0 %v341
    %1926 = vmatprep.subr.mxu0 0.0
    %1927 = vmatpush1.msra.mxu0 0.0
    %1928 = vmatprep.subr.mxu0 0.0
    %1929 = vmatpush1.msra.mxu0 0.0
    %1930 = vmatprep.subr.mxu0 0.0
    %1931 = vmatpush1.msra.mxu0 0.0
    %1932 = vmatprep.subr.mxu0 0.0
    %1933 = vmatpush1.msra.mxu0 0.0
    %1934 = vmatprep.subr.mxu0 0.0
    %1935 = vmatpush1.msra.mxu0 0.0
    %1936 = vmatprep.subr.mxu0 0.0
    %1937 = vmatpush1.msra.mxu0 0.0
    %1938 = vmatprep.subr.mxu0 0.0
    %1939 = vmatpush1.msra.mxu0 0.0
    %1940 = vmatprep.subr.mxu0 0.0
    %1941 = vmatpush1.msra.mxu0 0.0
    %1942 = vmatprep.subr.mxu0 0.0
    %1943 = vmatpush1.msra.mxu0 0.0
    %1944 = vmatprep.subr.mxu0 0.0
    %1945 = vmatpush1.msra.mxu0 0.0
    %1946 = vmatprep.subr.mxu0 0.0
    %1947 = vmatpush1.msra.mxu0 0.0
    %1948 = vmatprep.subr.mxu0 0.0
    %1949 = vmatpush1.msra.mxu0 0.0
    %1950 = vmatprep.subr.mxu0 0.0
    %1951 = vmatpush1.msra.mxu0 0.0
    %1952 = vmatprep.subr.mxu0 0.0
    %1953 = vmatpush1.msra.mxu0 0.0
    %1954 = vmatprep.subr.mxu0 0.0
    %1955 = vmatpush1.msra.mxu0 0.0
    %1956 = vmatprep.subr.mxu0 0.0
    %1957 = vmatpush1.msra.mxu0 0.0
    %1958 = vmatprep.subr.mxu0 0.0
    %1959 = vmatpush1.msra.mxu0 0.0
    %1960 = vmatprep.subr.mxu0 0.0
    %1961 = vmatpush1.msra.mxu0 0.0
    %1962 = vmatprep.subr.mxu0 0.0
    %1963 = vmatpush1.msra.mxu0 0.0
    %1964 = vmatprep.subr.mxu0 0.0
    %1965 = vmatpush1.msra.mxu0 0.0
    %1966 = vmatprep.subr.mxu0 0.0
    %1967 = vmatpush1.msra.mxu0 0.0
    %1968 = vmatprep.subr.mxu0 0.0
    %1969 = vmatpush1.msra.mxu0 0.0
    %1970 = vmatprep.subr.mxu0 0.0
    %1971 = vmatpush1.msra.mxu0 0.0
    %1972 = vmatprep.subr.mxu0 0.0
    %1973 = vmatpush1.msra.mxu0 0.0
    %1974 = vmatprep.mubr.f32.mxu0 0.0
    %1975 = vmatmul.mubr.f32.gmra.mrb[0].mxu0 %v1908
    %v1976 = vpop.f32.mrb[0].mxu0
    %v1977 = vadd.f32 %v347, %v1976
    %v1978 = vpop.f32.mrb[0].mxu0
    %1979 = vdwg.mxu0
    %v1980 = vxor.u32 %v1977, 2147483648
    %v1981 = vmul.f32 %v1980, 1.442695
    %v1982 = vpow.pop %v1981
    %v1983 = vadd.f32 %v1982, 1.0
    %v1984 = vrcp.pop %v1983
    %v1985 = vmul.f32 1.0, %v1984
    %v1986 = vtanh.pop %v1977
    %v1987 = vmul.f32 %v1985, %v1792
    %1989 = vrot.lane.b32.xlu0 %v1986, 32
    %v1990 = vpop.permute.xlu0 %1989
    %v1992 = vmul.f32 %v1985, %v1990
    %1994 = vrot.lane.b32.xlu0 %v1992, 32
    %v1995 = vpop.permute.xlu0 %1994
    %v1997 = vadd.f32 %v1987, %v1995
    %v1998 = vtanh.pop %v1997
    %2000 = vrot.lane.b32.xlu0 %v1998, 32
    %v2001 = vpop.permute.xlu0 %2000
    %v2003 = vmul.f32 %v1985, %v2001
    %2004 = vst.msk [vmem:[#allocation20] sm:$0xff] %vm192, %v1900
    %2006 = vrot.lane.b32.xlu0 %v1891, 96
    %v2007 = vpop.permute.xlu0 %2006
    %2009 = vst.msk [vmem:[#allocation22] sm:$0xff] %vm192, %v2007
    %2011 = vrot.lane.b32.xlu0 %v2003, 64
    %v2012 = vpop.permute.xlu0 %2011
    %2014 = vst.msk [vmem:[%s350] sm:$0xff] %vm192, %v2012
    %2016 = vrot.lane.b32.xlu0 %v1997, 96
    %v2017 = vpop.permute.xlu0 %2016
    %2019 = vst.msk [vmem:[%s353] sm:$0xff] %vm192, %v2017
    // Predicated region
    $region82: #{tpu_custom_call.1} parent=1 // pred_check
      %p2020 = pneg %p160
    $region83: #{tpu_custom_call.1} parent=1 // pred_check_branch
      %2022 = sbr.rel (%p2020) target = $region85
    $region84: #{tpu_custom_call.1} parent=1 // pred_region
      %v2023 = vld [vmem:[#allocation18] sm:$0xff]
      %v2024 = vld [vmem:[#allocation18 + $0x8] sm:$0xff]
      %v2025 = vld [vmem:[#allocation18 + $0x10] sm:$0xff]
      %v2026 = vld [vmem:[#allocation18 + $0x18] sm:$0xff]
      %v2027 = vld [vmem:[#allocation3] sm:$0x1]
      %v2029 = vlaneseq
      %v2030 = vshrl.u32 %v2029, 7
      %v2031 = vsub.s32 0, %v2030
      %v2032 = vrot.slane %v2027, %v2031
      %v2034 = vsel %vm192, %v2012, 0
      %2036 = vmatprep.subr.mxu0 0.0
      %2037 = vmatpush1.msra.mxu0 %v2023
      %2038 = vmatprep.subr.mxu0 0.0
      %2039 = vmatpush1.msra.mxu0 %v2024
      %2040 = vmatprep.subr.mxu0 0.0
      %2041 = vmatpush1.msra.mxu0 %v2025
      %2042 = vmatprep.subr.mxu0 0.0
      %2043 = vmatpush1.msra.mxu0 %v2026
      %2044 = vmatprep.subr.mxu0 0.0
      %2045 = vmatpush1.msra.mxu0 0.0
      %2046 = vmatprep.subr.mxu0 0.0
      %2047 = vmatpush1.msra.mxu0 0.0
      %2048 = vmatprep.subr.mxu0 0.0
      %2049 = vmatpush1.msra.mxu0 0.0
      %2050 = vmatprep.subr.mxu0 0.0
      %2051 = vmatpush1.msra.mxu0 0.0
      %2052 = vmatprep.subr.mxu0 0.0
      %2053 = vmatpush1.msra.mxu0 0.0
      %2054 = vmatprep.subr.mxu0 0.0
      %2055 = vmatpush1.msra.mxu0 0.0
      %2056 = vmatprep.subr.mxu0 0.0
      %2057 = vmatpush1.msra.mxu0 0.0
      %2058 = vmatprep.subr.mxu0 0.0
      %2059 = vmatpush1.msra.mxu0 0.0
      %2060 = vmatprep.subr.mxu0 0.0
      %2061 = vmatpush1.msra.mxu0 0.0
      %2062 = vmatprep.subr.mxu0 0.0
      %2063 = vmatpush1.msra.mxu0 0.0
      %2064 = vmatprep.subr.mxu0 0.0
      %2065 = vmatpush1.msra.mxu0 0.0
      %2066 = vmatprep.subr.mxu0 0.0
      %2067 = vmatpush1.msra.mxu0 0.0
      %2068 = vmatprep.subr.mxu0 0.0
      %2069 = vmatpush1.msra.mxu0 0.0
      %2070 = vmatprep.subr.mxu0 0.0
      %2071 = vmatpush1.msra.mxu0 0.0
      %2072 = vmatprep.subr.mxu0 0.0
      %2073 = vmatpush1.msra.mxu0 0.0
      %2074 = vmatprep.subr.mxu0 0.0
      %2075 = vmatpush1.msra.mxu0 0.0
      %2076 = vmatprep.subr.mxu0 0.0
      %2077 = vmatpush1.msra.mxu0 0.0
      %2078 = vmatprep.subr.mxu0 0.0
      %2079 = vmatpush1.msra.mxu0 0.0
      %2080 = vmatprep.subr.mxu0 0.0
      %2081 = vmatpush1.msra.mxu0 0.0
      %2082 = vmatprep.subr.mxu0 0.0
      %2083 = vmatpush1.msra.mxu0 0.0
      %2084 = vmatprep.subr.mxu0 0.0
      %2085 = vmatpush1.msra.mxu0 0.0
      %2086 = vmatprep.subr.mxu0 0.0
      %2087 = vmatpush1.msra.mxu0 0.0
      %2088 = vmatprep.subr.mxu0 0.0
      %2089 = vmatpush1.msra.mxu0 0.0
      %2090 = vmatprep.subr.mxu0 0.0
      %2091 = vmatpush1.msra.mxu0 0.0
      %2092 = vmatprep.subr.mxu0 0.0
      %2093 = vmatpush1.msra.mxu0 0.0
      %2094 = vmatprep.subr.mxu0 0.0
      %2095 = vmatpush1.msra.mxu0 0.0
      %2096 = vmatprep.subr.mxu0 0.0
      %2097 = vmatpush1.msra.mxu0 0.0
      %2098 = vmatprep.subr.mxu0 0.0
      %2099 = vmatpush1.msra.mxu0 0.0
      %2100 = vmatprep.mubr.f32.mxu0 0.0
      %2101 = vmatmul.mubr.f32.gmra.mrb[0].mxu0 %v2034
      %v2102 = vpop.f32.mrb[0].mxu0
      %v2103 = vadd.f32 %v2032, %v2102
      %v2104 = vpop.f32.mrb[0].mxu0
      %2105 = vdwg.mxu0
      %v2106 = vxor.u32 %v2103, 2147483648
      %v2107 = vmul.f32 %v2106, 1.442695
      %v2108 = vpow.pop %v2107
      %v2109 = vadd.f32 %v2108, 1.0
      %v2110 = vrcp.pop %v2109
      %v2111 = vmul.f32 1.0, %v2110
      %vm2112 = vcmask 7168
      %2113 = vst.msk [vmem:[#allocation19] sm:$0xff] %vm2112, %v2111
    $region85: #{tpu_custom_call.1} parent=1 // pred_fallthru
      _
    // Predicated region
    $region86: #{tpu_custom_call.1} parent=1 // pred_check
      _
    $region87: #{tpu_custom_call.1} parent=1 // pred_check_branch
      %2115 = sbr.rel (0) target = $region89
    $region88: #{tpu_custom_call.1} parent=1 // pred_region
      %s2117 = ssub.s32 128, 128
      %2118 = vsyncadd [#allocation6], %s2117
      %s2120 = sshll.u32 [#allocation19], 4
      %s2121 = int_to_ptr.vmem [resolvable:$true] %s2120
      %2123 = dma.vmem_to_hbm [thread:$0]  %s2121, 128, %s10, [#allocation6]
    $region89: #{tpu_custom_call.1} parent=1 // pred_fallthru
      _
    // Predicated region
    $region90: #{tpu_custom_call.1} parent=1 // pred_check
      _
    $region91: #{tpu_custom_call.1} parent=1 // pred_check_branch
      %2125 = sbr.rel (0) target = $region93
    $region92: #{tpu_custom_call.1} parent=1 // pred_region
      %s2127 = ssub.s32 256, 256
      %2128 = vsyncadd [#allocation21], %s2127
      %s2129 = sshll.u32 [#allocation20], 4
      %s2130 = int_to_ptr.vmem [resolvable:$true] %s2129
      %2135 = dma.vmem_to_hbm [thread:$0]  %s2130, 256, %s11, [#allocation21], 128, 128, 8
    $region93: #{tpu_custom_call.1} parent=1 // pred_fallthru
      _
    // Predicated region
    $region94: #{tpu_custom_call.1} parent=1 // pred_check
      _
    $region95: #{tpu_custom_call.1} parent=1 // pred_check_branch
      %2137 = sbr.rel (0) target = $region97
    $region96: #{tpu_custom_call.1} parent=1 // pred_region
      %s2139 = ssub.s32 256, 256
      %2140 = vsyncadd [#allocation21], %s2139
      %s2141 = sshll.u32 [#allocation22], 4
      %s2142 = int_to_ptr.vmem [resolvable:$true] %s2141
      %2147 = dma.vmem_to_hbm [thread:$0]  %s2142, 256, %s12, [#allocation21], 128, 128, 8
    $region97: #{tpu_custom_call.1} parent=1 // pred_fallthru
      _
    // Predicated region
    $region98: #{tpu_custom_call.1} parent=1 // pred_check
      _
    $region99: #{tpu_custom_call.1} parent=1 // pred_check_branch
      %2149 = sbr.rel (0) target = $region101
    $region100: #{tpu_custom_call.1} parent=1 // pred_region
      %2150 = dma.done [#allocation6], 128
    $region101: #{tpu_custom_call.1} parent=1 // pred_fallthru
      _
    // Predicated region
    $region102: #{tpu_custom_call.1} parent=1 // pred_check
      _
    $region103: #{tpu_custom_call.1} parent=1 // pred_check_branch
      %2152 = sbr.rel (0) target = $region105
    $region104: #{tpu_custom_call.1} parent=1 // pred_region
      %2153 = dma.done [#allocation21], 256
    $region105: #{tpu_custom_call.1} parent=1 // pred_fallthru
      _
    // Predicated region
    $region106: #{tpu_custom_call.1} parent=1 // pred_check
      _
    $region107: #{tpu_custom_call.1} parent=1 // pred_check_branch
      %2155 = sbr.rel (0) target = $region109
    $region108: #{tpu_custom_call.1} parent=1 // pred_region
      %2156 = dma.done [#allocation21], 256
    $region109: #{tpu_custom_call.1} parent=1 // pred_fallthru
      _
    %2157 = vsyncpa [#allocation5], 1
    %2158 = vsyncpa [#allocation8], 1
    %2159 = vsyncpa [#allocation11], 1
    %2160 = vsyncpa [#allocation14], 1
    %2161 = vsyncpa [#allocation17], 1
    %2162 = vsyncpa [#allocation6], 1
    %2163 = vsyncpa [#allocation21], 1

// kernel: tpu_custom_call.1
$region0: #{tpu_custom_call.1}
  #allocation0 [shape = 'u32[]', space=smem, size = 0x4, offset = 0x4, fixed_abs, tag = 'smem constant byte address 0x4 - core index']
  #allocation1 [shape = 'u32[144,128]{1,0:T(1,128)}', space=vmem, size = 0x12000, scoped, tag = 'internal scratch']
  #allocation2 [shape = 'f32[8,8,128]{2,1,0:T(8,128)}', space=vmem, size = 0x8000, scoped, tag = 'scratch operand']
  #allocation3 [shape = 'f32[1,1]{1,0:T(1,128)S(1)}', space=vmem, size = 0x200, scoped, tag = 'scoped memory for tpu_custom_call.1']
  %s0 = inlined_call_operand.hbm [shape: f32[8,8,32], index: 0, kind: input, shape index: {}]
  %s1 = inlined_call_operand.hbm [shape: f32[2,8,32], index: 1, kind: input, shape index: {}]
  %s2 = inlined_call_operand.hbm [shape: f32[2,8,32], index: 2, kind: input, shape index: {}]
  %s3 = inlined_call_operand.hbm [shape: f32[32,128], index: 3, kind: input, shape index: {}]
  %s4 = inlined_call_operand.hbm [shape: f32[32,128], index: 4, kind: input, shape index: {}]
  %s5 = inlined_call_operand.hbm [shape: f32[1,128], index: 5, kind: input, shape index: {}]
  %s6 = inlined_call_operand.hbm [shape: f32[64,128], index: 6, kind: input, shape index: {}]
  %s7 = inlined_call_operand.hbm [shape: f32[1,128], index: 7, kind: input, shape index: {}]
  %s8 = inlined_call_operand.hbm [shape: f32[32,1], index: 8, kind: input, shape index: {}]
  %s9 = inlined_call_operand.<no memory space> [shape: f32[1,1], index: 9, kind: input, shape index: {}]
  %s10 = inlined_call_operand.hbm [shape: f32[8,1], index: 10, kind: output, shape index: {0}]
  %s11 = inlined_call_operand.hbm [shape: f32[2,8,32], index: 11, kind: output, shape index: {1}]
  %s12 = inlined_call_operand.hbm [shape: f32[2,8,32], index: 12, kind: output, shape index: {2}]
  %13 = xla_tuple %s10, %s11, %s12
  %s14 = sld [smem:[#allocation0]]
  $region110: #{tpu_custom_call.1} parent=0
    _
  %s16 = ssub.s32 1, %s14
  %s17 = scalar_select 0, %s16, %s14
  %v18 = vstv %s9
  %19 = vst [vmem:[#allocation3] sm:$0x1] %v18
  $region1: #{tpu_custom_call.1} parent=0
    #allocation4 [shape = 'u8[32768]{0}', space=vmem, size = 0x8000, scoped, tag = 'input window, operand 0, single buffered']
    #allocation5 [shape = 's32[1]{0}', space=sflag, size = 0x4, scoped, tag = 'scoped memory for tpu_custom_call.1']
    #allocation6 [shape = 's32[1]{0}', space=sflag, size = 0x4, scoped, tag = 'scoped memory for tpu_custom_call.1']
    #allocation7 [shape = 'u8[8192]{0}', space=vmem, size = 0x2000, scoped, tag = 'input window, operand 1, single buffered']
    #allocation8 [shape = 's32[1]{0}', space=sflag, size = 0x4, scoped, tag = 'scoped memory for tpu_custom_call.1']
    #allocation9 [shape = 'u8[8192]{0}', space=vmem, size = 0x2000, scoped, tag = 'input window, operand 2, single buffered']
    #allocation10 [shape = 'u8[16384]{0}', space=vmem, size = 0x4000, scoped, tag = 'input window, operand 3, single buffered']
    #allocation11 [shape = 's32[1]{0}', space=sflag, size = 0x4, scoped, tag = 'scoped memory for tpu_custom_call.1']
    #allocation12 [shape = 'u8[16384]{0}', space=vmem, size = 0x4000, scoped, tag = 'input window, operand 4, single buffered']
    #allocation13 [shape = 'u8[512]{0}', space=vmem, size = 0x400, scoped, tag = 'input window, operand 5, single buffered']
    #allocation14 [shape = 's32[1]{0}', space=sflag, size = 0x4, scoped, tag = 'scoped memory for tpu_custom_call.1']
    #allocation15 [shape = 'u8[32768]{0}', space=vmem, size = 0x8000, scoped, tag = 'input window, operand 6, single buffered']
    #allocation16 [shape = 'u8[512]{0}', space=vmem, size = 0x400, scoped, tag = 'input window, operand 7, single buffered']
    #allocation17 [shape = 's32[1]{0}', space=sflag, size = 0x4, scoped, tag = 'scoped memory for tpu_custom_call.1']
    #allocation18 [shape = 'u8[16384]{0}', space=vmem, size = 0x4000, scoped, tag = 'input window, operand 8, single buffered']
    #allocation19 [shape = 'u8[4096]{0}', space=vmem, size = 0x1000, scoped, tag = 'output window, operand 0, single buffered']
    #allocation20 [shape = 'u8[8192]{0}', space=vmem, size = 0x2000, scoped, tag = 'output window, operand 1, single buffered']
    #allocation21 [shape = 's32[1]{0}', space=sflag, size = 0x4, scoped, tag = 'scoped memory for tpu_custom_call.1']
    #allocation22 [shape = 'u8[8192]{0}', space=vmem, size = 0x2000, scoped, tag = 'output window, operand 2, single buffered']
    %20 = vsyncpa [#allocation5], 0
    %21 = vsyncpa [#allocation8], 0
    %22 = vsyncpa [#allocation11], 0
    %23 = vsyncpa [#allocation14], 0
    %24 = vsyncpa [#allocation17], 0
    %25 = vsyncpa [#allocation6], 0
    %26 = vsyncpa [#allocation21], 0
    // Predicated region
    $region2: #{tpu_custom_call.1} parent=1 // pred_check
      _
    $region3: #{tpu_custom_call.1} parent=1 // pred_check_branch
      %28 = sbr.rel (0) target = $region5
    $region4: #{tpu_custom_call.1} parent=1 // pred_region
      %s30 = ssub.s32 1024, 1024
      %31 = vsyncadd [#allocation5], %s30
      %s32 = sshll.u32 [#allocation4], 4
      %s33 = int_to_ptr.vmem [resolvable:$true] %s32
      %38 = dma.hbm_to_vmem [thread:$0]  %s0, 1024, %s33, [#allocation5], 128, 128, 8
    $region5: #{tpu_custom_call.1} parent=1 // pred_fallthru
      _
    // Predicated region
    $region6: #{tpu_custom_call.1} parent=1 // pred_check
      _
    $region7: #{tpu_custom_call.1} parent=1 // pred_check_branch
      %40 = sbr.rel (0) target = $region9
    $region8: #{tpu_custom_call.1} parent=1 // pred_region
      %s42 = ssub.s32 256, 256
      %43 = vsyncadd [#allocation8], %s42
      %s44 = sshll.u32 [#allocation7], 4
      %s45 = int_to_ptr.vmem [resolvable:$true] %s44
      %50 = dma.hbm_to_vmem [thread:$0]  %s1, 256, %s45, [#allocation8], 128, 128, 8
    $region9: #{tpu_custom_call.1} parent=1 // pred_fallthru
      _
    // Predicated region
    $region10: #{tpu_custom_call.1} parent=1 // pred_check
      _
    $region11: #{tpu_custom_call.1} parent=1 // pred_check_branch
      %52 = sbr.rel (0) target = $region13
    $region12: #{tpu_custom_call.1} parent=1 // pred_region
      %s54 = ssub.s32 256, 256
      %55 = vsyncadd [#allocation8], %s54
      %s56 = sshll.u32 [#allocation9], 4
      %s57 = int_to_ptr.vmem [resolvable:$true] %s56
      %62 = dma.hbm_to_vmem [thread:$0]  %s2, 256, %s57, [#allocation8], 128, 128, 8
    $region13: #{tpu_custom_call.1} parent=1 // pred_fallthru
      _
    // Predicated region
    $region14: #{tpu_custom_call.1} parent=1 // pred_check
      _
    $region15: #{tpu_custom_call.1} parent=1 // pred_check_branch
      %64 = sbr.rel (0) target = $region17
    $region16: #{tpu_custom_call.1} parent=1 // pred_region
      %s66 = ssub.s32 512, 512
      %67 = vsyncadd [#allocation11], %s66
      %s68 = sshll.u32 [#allocation10], 4
      %s69 = int_to_ptr.vmem [resolvable:$true] %s68
      %74 = dma.hbm_to_vmem [thread:$0]  %s3, 512, %s69, [#allocation11], 128, 128, 8
    $region17: #{tpu_custom_call.1} parent=1 // pred_fallthru
      _
    // Predicated region
    $region18: #{tpu_custom_call.1} parent=1 // pred_check
      _
    $region19: #{tpu_custom_call.1} parent=1 // pred_check_branch
      %76 = sbr.rel (0) target = $region21
    $region20: #{tpu_custom_call.1} parent=1 // pred_region
      %s78 = ssub.s32 512, 512
      %79 = vsyncadd [#allocation11], %s78
      %s80 = sshll.u32 [#allocation12], 4
      %s81 = int_to_ptr.vmem [resolvable:$true] %s80
      %86 = dma.hbm_to_vmem [thread:$0]  %s4, 512, %s81, [#allocation11], 128, 128, 8
    $region21: #{tpu_custom_call.1} parent=1 // pred_fallthru
      _
    // Predicated region
    $region22: #{tpu_custom_call.1} parent=1 // pred_check
      _
    $region23: #{tpu_custom_call.1} parent=1 // pred_check_branch
      %88 = sbr.rel (0) target = $region25
    $region24: #{tpu_custom_call.1} parent=1 // pred_region
      %s90 = ssub.s32 16, 16
      %91 = vsyncadd [#allocation14], %s90
      %s93 = sshll.u32 [#allocation13], 4
      %s94 = int_to_ptr.vmem [resolvable:$true] %s93
      %96 = dma.hbm_to_vmem [thread:$0]  %s5, 16, %s94, [#allocation14]
    $region25: #{tpu_custom_call.1} parent=1 // pred_fallthru
      _
    // Predicated region
    $region26: #{tpu_custom_call.1} parent=1 // pred_check
      _
    $region27: #{tpu_custom_call.1} parent=1 // pred_check_branch
      %98 = sbr.rel (0) target = $region29
    $region28: #{tpu_custom_call.1} parent=1 // pred_region
      %s100 = ssub.s32 1024, 1024
      %101 = vsyncadd [#allocation14], %s100
      %s102 = sshll.u32 [#allocation15], 4
      %s103 = int_to_ptr.vmem [resolvable:$true] %s102
      %108 = dma.hbm_to_vmem [thread:$0]  %s6, 1024, %s103, [#allocation14], 128, 128, 8
    $region29: #{tpu_custom_call.1} parent=1 // pred_fallthru
      _
    // Predicated region
    $region30: #{tpu_custom_call.1} parent=1 // pred_check
      _
    $region31: #{tpu_custom_call.1} parent=1 // pred_check_branch
      %110 = sbr.rel (0) target = $region33
    $region32: #{tpu_custom_call.1} parent=1 // pred_region
      %s112 = ssub.s32 16, 16
      %113 = vsyncadd [#allocation17], %s112
      %s115 = sshll.u32 [#allocation16], 4
      %s116 = int_to_ptr.vmem [resolvable:$true] %s115
      %118 = dma.hbm_to_vmem [thread:$0]  %s7, 16, %s116, [#allocation17]
    $region33: #{tpu_custom_call.1} parent=1 // pred_fallthru
      _
    // Predicated region
    $region34: #{tpu_custom_call.1} parent=1 // pred_check
      _
    $region35: #{tpu_custom_call.1} parent=1 // pred_check_branch
      %120 = sbr.rel (0) target = $region37
    $region36: #{tpu_custom_call.1} parent=1 // pred_region
      %s122 = ssub.s32 512, 512
      %123 = vsyncadd [#allocation17], %s122
      %s124 = sshll.u32 [#allocation18], 4
      %s125 = int_to_ptr.vmem [resolvable:$true] %s124
      %130 = dma.hbm_to_vmem [thread:$0]  %s8, 512, %s125, [#allocation17], 128, 128, 8
    $region37: #{tpu_custom_call.1} parent=1 // pred_fallthru
      _
    // Predicated region
    $region38: #{tpu_custom_call.1} parent=1 // pred_check
      _
    $region39: #{tpu_custom_call.1} parent=1 // pred_check_branch
      %132 = sbr.rel (0) target = $region41
    $region40: #{tpu_custom_call.1} parent=1 // pred_region
      _
    $region41: #{tpu_custom_call.1} parent=1 // pred_fallthru
      _
    // Predicated region
    $region42: #{tpu_custom_call.1} parent=1 // pred_check
      _
    $region43: #{tpu_custom_call.1} parent=1 // pred_check_branch
      %134 = sbr.rel (0) target = $region45
    $region44: #{tpu_custom_call.1} parent=1 // pred_region
      %135 = dma.done [#allocation5], 1024
    $region45: #{tpu_custom_call.1} parent=1 // pred_fallthru
      _
    // Predicated region
    $region46: #{tpu_custom_call.1} parent=1 // pred_check
      _
    $region47: #{tpu_custom_call.1} parent=1 // pred_check_branch
      %137 = sbr.rel (0) target = $region49
    $region48: #{tpu_custom_call.1} parent=1 // pred_region
      %138 = dma.done [#allocation8], 256
    $region49: #{tpu_custom_call.1} parent=1 // pred_fallthru
      _
    // Predicated region
    $region50: #{tpu_custom_call.1} parent=1 // pred_check
      _
    $region51: #{tpu_custom_call.1} parent=1 // pred_check_branch
      %140 = sbr.rel (0) target = $region53
    $region52: #{tpu_custom_call.1} parent=1 // pred_region
      %141 = dma.done [#allocation8], 256
    $region53: #{tpu_custom_call.1} parent=1 // pred_fallthru
      _
    // Predicated region
    $region54: #{tpu_custom_call.1} parent=1 // pred_check
      _
    $region55: #{tpu_custom_call.1} parent=1 // pred_check_branch
      %143 = sbr.rel (0) target = $region57
    $region56: #{tpu_custom_call.1} parent=1 // pred_region
      %144 = dma.done [#allocation11], 512
    $region57: #{tpu_custom_call.1} parent=1 // pred_fallthru
      _
    // Predicated region
    $region58: #{tpu_custom_call.1} parent=1 // pred_check
      _
    $region59: #{tpu_custom_call.1} parent=1 // pred_check_branch
      %146 = sbr.rel (0) target = $region61
    $region60: #{tpu_custom_call.1} parent=1 // pred_region
      %147 = dma.done [#allocation11], 512
    $region61: #{tpu_custom_call.1} parent=1 // pred_fallthru
      _
    // Predicated region
    $region62: #{tpu_custom_call.1} parent=1 // pred_check
      _
    $region63: #{tpu_custom_call.1} parent=1 // pred_check_branch
      %149 = sbr.rel (0) target = $region65
    $region64: #{tpu_custom_call.1} parent=1 // pred_region
      %150 = dma.done [#allocation14], 16
    $region65: #{tpu_custom_call.1} parent=1 // pred_fallthru
      _
    // Predicated region
    $region66: #{tpu_custom_call.1} parent=1 // pred_check
      _
    $region67: #{tpu_custom_call.1} parent=1 // pred_check_branch
      %152 = sbr.rel (0) target = $region69
    $region68: #{tpu_custom_call.1} parent=1 // pred_region
      %153 = dma.done [#allocation14], 1024
    $region69: #{tpu_custom_call.1} parent=1 // pred_fallthru
      _
    // Predicated region
    $region70: #{tpu_custom_call.1} parent=1 // pred_check
      _
    $region71: #{tpu_custom_call.1} parent=1 // pred_check_branch
      %155 = sbr.rel (0) target = $region73
    $region72: #{tpu_custom_call.1} parent=1 // pred_region
      %156 = dma.done [#allocation17], 16
    $region73: #{tpu_custom_call.1} parent=1 // pred_fallthru
      _
    // Predicated region
    $region74: #{tpu_custom_call.1} parent=1 // pred_check
      _
    $region75: #{tpu_custom_call.1} parent=1 // pred_check_branch
      %158 = sbr.rel (0) target = $region77
    $region76: #{tpu_custom_call.1} parent=1 // pred_region
      %159 = dma.done [#allocation17], 512
    $region77: #{tpu_custom_call.1} parent=1 // pred_fallthru
      _
    %p160 = scmp.eq.s32.totalorder 0, 0
    // Predicated region
    $region78: #{tpu_custom_call.1} parent=1 // pred_check
      %p161 = pneg %p160
    $region79: #{tpu_custom_call.1} parent=1 // pred_check_branch
      %163 = sbr.rel (%p161) target = $region81
    $region80: #{tpu_custom_call.1} parent=1 // pred_region
      %v164 = vld [vmem:[#allocation7] sm:$0xff]
      %v165 = vld [vmem:[#allocation7 + $0x8] sm:$0xff]
      %vm166 = vcmask 261120
      %167 = vst.msk [vmem:[#allocation20] sm:$0xff] %vm166, %v164
      %168 = vst.msk [vmem:[#allocation20 + $0x8] sm:$0xff] %vm166, %v165
      %v169 = vld [vmem:[#allocation9] sm:$0xff]
      %v170 = vld [vmem:[#allocation9 + $0x8] sm:$0xff]
      %171 = vst.msk [vmem:[#allocation22] sm:$0xff] %vm166, %v169
      %172 = vst.msk [vmem:[#allocation22 + $0x8] sm:$0xff] %vm166, %v170
    $region81: #{tpu_custom_call.1} parent=1 // pred_fallthru
      _
    %v173 = vld [vmem:[#allocation4] sm:$0xff]
    %v174 = vld [vmem:[#allocation4 + $0x8] sm:$0xff]
    %v175 = vld [vmem:[#allocation4 + $0x10] sm:$0xff]
    %v176 = vld [vmem:[#allocation4 + $0x18] sm:$0xff]
    %v177 = vld [vmem:[#allocation4 + $0x20] sm:$0xff]
    %v178 = vld [vmem:[#allocation4 + $0x28] sm:$0xff]
    %v179 = vld [vmem:[#allocation4 + $0x30] sm:$0xff]
    %v180 = vld [vmem:[#allocation4 + $0x38] sm:$0xff]
    %v181 = vld [vmem:[#allocation10] sm:$0xff]
    %v182 = vld [vmem:[#allocation10 + $0x8] sm:$0xff]
    %v183 = vld [vmem:[#allocation10 + $0x10] sm:$0xff]
    %v184 = vld [vmem:[#allocation10 + $0x18] sm:$0xff]
    %v185 = vld [vmem:[#allocation13] sm:$0x1]
    %v187 = vlaneseq
    %v188 = vshrl.u32 %v187, 7
    %v189 = vsub.s32 0, %v188
    %v190 = vrot.slane %v185, %v189
    %vm192 = vcmask 261120
    %v194 = vsel %vm192, %v173, 0
    %v197 = vsel %vm192, %v174, 0
    %v200 = vsel %vm192, %v175, 0
    %v203 = vsel %vm192, %v176, 0
    %v206 = vsel %vm192, %v177, 0
    %v209 = vsel %vm192, %v178, 0
    %v212 = vsel %vm192, %v179, 0
    %v215 = vsel %vm192, %v180, 0
    %217 = vmatprep.subr.mxu0 0.0
    %218 = vmatpush1.msra.mxu0 %v181
    %219 = vmatprep.subr.mxu0 0.0
    %220 = vmatpush1.msra.mxu0 %v182
    %221 = vmatprep.subr.mxu0 0.0
    %222 = vmatpush1.msra.mxu0 %v183
    %223 = vmatprep.subr.mxu0 0.0
    %224 = vmatpush1.msra.mxu0 %v184
    %225 = vmatprep.subr.mxu0 0.0
    %226 = vmatpush1.msra.mxu0 0.0
    %227 = vmatprep.subr.mxu0 0.0
    %228 = vmatpush1.msra.mxu0 0.0
    %229 = vmatprep.subr.mxu0 0.0
    %230 = vmatpush1.msra.mxu0 0.0
    %231 = vmatprep.subr.mxu0 0.0
    %232 = vmatpush1.msra.mxu0 0.0
    %233 = vmatprep.subr.mxu0 0.0
    %234 = vmatpush1.msra.mxu0 0.0
    %235 = vmatprep.subr.mxu0 0.0
    %236 = vmatpush1.msra.mxu0 0.0
    %237 = vmatprep.subr.mxu0 0.0
    %238 = vmatpush1.msra.mxu0 0.0
    %239 = vmatprep.subr.mxu0 0.0
    %240 = vmatpush1.msra.mxu0 0.0
    %241 = vmatprep.subr.mxu0 0.0
    %242 = vmatpush1.msra.mxu0 0.0
    %243 = vmatprep.subr.mxu0 0.0
    %244 = vmatpush1.msra.mxu0 0.0
    %245 = vmatprep.subr.mxu0 0.0
    %246 = vmatpush1.msra.mxu0 0.0
    %247 = vmatprep.subr.mxu0 0.0
    %248 = vmatpush1.msra.mxu0 0.0
    %249 = vmatprep.subr.mxu0 0.0
    %250 = vmatpush1.msra.mxu0 0.0
    %251 = vmatprep.subr.mxu0 0.0
    %252 = vmatpush1.msra.mxu0 0.0
    %253 = vmatprep.subr.mxu0 0.0
    %254 = vmatpush1.msra.mxu0 0.0
    %255 = vmatprep.subr.mxu0 0.0
    %256 = vmatpush1.msra.mxu0 0.0
    %257 = vmatprep.subr.mxu0 0.0
    %258 = vmatpush1.msra.mxu0 0.0
    %259 = vmatprep.subr.mxu0 0.0
    %260 = vmatpush1.msra.mxu0 0.0
    %261 = vmatprep.subr.mxu0 0.0
    %262 = vmatpush1.msra.mxu0 0.0
    %263 = vmatprep.subr.mxu0 0.0
    %264 = vmatpush1.msra.mxu0 0.0
    %265 = vmatprep.subr.mxu0 0.0
    %266 = vmatpush1.msra.mxu0 0.0
    %267 = vmatprep.subr.mxu0 0.0
    %268 = vmatpush1.msra.mxu0 0.0
    %269 = vmatprep.subr.mxu0 0.0
    %270 = vmatpush1.msra.mxu0 0.0
    %271 = vmatprep.subr.mxu0 0.0
    %272 = vmatpush1.msra.mxu0 0.0
    %273 = vmatprep.subr.mxu0 0.0
    %274 = vmatpush1.msra.mxu0 0.0
    %275 = vmatprep.subr.mxu0 0.0
    %276 = vmatpush1.msra.mxu0 0.0
    %277 = vmatprep.subr.mxu0 0.0
    %278 = vmatpush1.msra.mxu0 0.0
    %279 = vmatprep.subr.mxu0 0.0
    %280 = vmatpush1.msra.mxu0 0.0
    %281 = vmatprep.mubr.f32.mxu0 0.0
    %282 = vmatmul.mubr.f32.gmra.mrb[0].mxu0 %v194
    %v283 = vpop.f32.mrb[0].mxu0
    %v284 = vadd.f32 %v190, %v283
    %v285 = vpop.f32.mrb[0].mxu0
    %286 = vmatprep.mubr.f32.mxu0 0.0
    %287 = vmatmul.mubr.f32.gmra.mrb[0].mxu0 %v197
    %v288 = vpop.f32.mrb[0].mxu0
    %v289 = vadd.f32 %v190, %v288
    %v290 = vpop.f32.mrb[0].mxu0
    %291 = vmatprep.mubr.f32.mxu0 0.0
    %292 = vmatmul.mubr.f32.gmra.mrb[0].mxu0 %v200
    %v293 = vpop.f32.mrb[0].mxu0
    %v294 = vadd.f32 %v190, %v293
    %v295 = vpop.f32.mrb[0].mxu0
    %296 = vmatprep.mubr.f32.mxu0 0.0
    %297 = vmatmul.mubr.f32.gmra.mrb[0].mxu0 %v203
    %v298 = vpop.f32.mrb[0].mxu0
    %v299 = vadd.f32 %v190, %v298
    %v300 = vpop.f32.mrb[0].mxu0
    %301 = vmatprep.mubr.f32.mxu0 0.0
    %302 = vmatmul.mubr.f32.gmra.mrb[0].mxu0 %v206
    %v303 = vpop.f32.mrb[0].mxu0
    %v304 = vadd.f32 %v190, %v303
    %v305 = vpop.f32.mrb[0].mxu0
    %306 = vmatprep.mubr.f32.mxu0 0.0
    %307 = vmatmul.mubr.f32.gmra.mrb[0].mxu0 %v209
    %v308 = vpop.f32.mrb[0].mxu0
    %v309 = vadd.f32 %v190, %v308
    %v310 = vpop.f32.mrb[0].mxu0
    %311 = vmatprep.mubr.f32.mxu0 0.0
    %312 = vmatmul.mubr.f32.gmra.mrb[0].mxu0 %v212
    %v313 = vpop.f32.mrb[0].mxu0
    %v314 = vadd.f32 %v190, %v313
    %v315 = vpop.f32.mrb[0].mxu0
    %316 = vmatprep.mubr.f32.mxu0 0.0
    %317 = vmatmul.mubr.f32.gmra.mrb[0].mxu0 %v215
    %v318 = vpop.f32.mrb[0].mxu0
    %v319 = vadd.f32 %v190, %v318
    %v320 = vpop.f32.mrb[0].mxu0
    %321 = vdwg.mxu0
    %322 = vst [vmem:[#allocation2] sm:$0xff] %v284
    %323 = vst [vmem:[#allocation2 + $0x8] sm:$0xff] %v289
    %324 = vst [vmem:[#allocation2 + $0x10] sm:$0xff] %v294
    %325 = vst [vmem:[#allocation2 + $0x18] sm:$0xff] %v299
    %326 = vst [vmem:[#allocation2 + $0x20] sm:$0xff] %v304
    %327 = vst [vmem:[#allocation2 + $0x28] sm:$0xff] %v309
    %328 = vst [vmem:[#allocation2 + $0x30] sm:$0xff] %v314
    %329 = vst [vmem:[#allocation2 + $0x38] sm:$0xff] %v319
    %v330 = vld [vmem:[#allocation12] sm:$0xff]
    %v331 = vld [vmem:[#allocation12 + $0x8] sm:$0xff]
    %v332 = vld [vmem:[#allocation12 + $0x10] sm:$0xff]
    %v333 = vld [vmem:[#allocation12 + $0x18] sm:$0xff]
    %v334 = vld [vmem:[#allocation15] sm:$0xff]
    %v335 = vld [vmem:[#allocation15 + $0x8] sm:$0xff]
    %v336 = vld [vmem:[#allocation15 + $0x10] sm:$0xff]
    %v337 = vld [vmem:[#allocation15 + $0x18] sm:$0xff]
    %v338 = vld [vmem:[#allocation15 + $0x20] sm:$0xff]
    %v339 = vld [vmem:[#allocation15 + $0x28] sm:$0xff]
    %v340 = vld [vmem:[#allocation15 + $0x30] sm:$0xff]
    %v341 = vld [vmem:[#allocation15 + $0x38] sm:$0xff]
    %v342 = vld [vmem:[#allocation16] sm:$0x1]
    %v344 = vlaneseq
    %v345 = vshrl.u32 %v344, 7
    %v346 = vsub.s32 0, %v345
    %v347 = vrot.slane %v342, %v346
    %v349 = vld [vmem:[#allocation20] sm:$0xff]
    %s350 = scalar_lea.vmem [#allocation20], 8
    %v351 = vld [vmem:[%s350] sm:$0xff]
    %v352 = vld [vmem:[#allocation22] sm:$0xff]
    %s353 = scalar_lea.vmem [#allocation22], 8
    %v354 = vld [vmem:[%s353] sm:$0xff]
    %v355 = vld [vmem:[#allocation2] sm:$0xff]
    %v357 = vsel %vm192, %v349, 0
    %359 = vmatprep.subr.mxu0 0.0
    %360 = vmatpush1.msra.mxu0 %v330
    %361 = vmatprep.subr.mxu0 0.0
    %362 = vmatpush1.msra.mxu0 %v331
    %363 = vmatprep.subr.mxu0 0.0
    %364 = vmatpush1.msra.mxu0 %v332
    %365 = vmatprep.subr.mxu0 0.0
    %366 = vmatpush1.msra.mxu0 %v333
    %367 = vmatprep.subr.mxu0 0.0
    %368 = vmatpush1.msra.mxu0 0.0
    %369 = vmatprep.subr.mxu0 0.0
    %370 = vmatpush1.msra.mxu0 0.0
    %371 = vmatprep.subr.mxu0 0.0
    %372 = vmatpush1.msra.mxu0 0.0
    %373 = vmatprep.subr.mxu0 0.0
    %374 = vmatpush1.msra.mxu0 0.0
    %375 = vmatprep.subr.mxu0 0.0
    %376 = vmatpush1.msra.mxu0 0.0
    %377 = vmatprep.subr.mxu0 0.0
    %378 = vmatpush1.msra.mxu0 0.0
    %379 = vmatprep.subr.mxu0 0.0
    %380 = vmatpush1.msra.mxu0 0.0
    %381 = vmatprep.subr.mxu0 0.0
    %382 = vmatpush1.msra.mxu0 0.0
    %383 = vmatprep.subr.mxu0 0.0
    %384 = vmatpush1.msra.mxu0 0.0
    %385 = vmatprep.subr.mxu0 0.0
    %386 = vmatpush1.msra.mxu0 0.0
    %387 = vmatprep.subr.mxu0 0.0
    %388 = vmatpush1.msra.mxu0 0.0
    %389 = vmatprep.subr.mxu0 0.0
    %390 = vmatpush1.msra.mxu0 0.0
    %391 = vmatprep.subr.mxu0 0.0
    %392 = vmatpush1.msra.mxu0 0.0
    %393 = vmatprep.subr.mxu0 0.0
    %394 = vmatpush1.msra.mxu0 0.0
    %395 = vmatprep.subr.mxu0 0.0
    %396 = vmatpush1.msra.mxu0 0.0
    %397 = vmatprep.subr.mxu0 0.0
    %398 = vmatpush1.msra.mxu0 0.0
    %399 = vmatprep.subr.mxu0 0.0
    %400 = vmatpush1.msra.mxu0 0.0
    %401 = vmatprep.subr.mxu0 0.0
    %402 = vmatpush1.msra.mxu0 0.0
    %403 = vmatprep.subr.mxu0 0.0
    %404 = vmatpush1.msra.mxu0 0.0
    %405 = vmatprep.subr.mxu0 0.0
    %406 = vmatpush1.msra.mxu0 0.0
    %407 = vmatprep.subr.mxu0 0.0
    %408 = vmatpush1.msra.mxu0 0.0
    %409 = vmatprep.subr.mxu0 0.0
    %410 = vmatpush1.msra.mxu0 0.0
    %411 = vmatprep.subr.mxu0 0.0
    %412 = vmatpush1.msra.mxu0 0.0
    %413 = vmatprep.subr.mxu0 0.0
    %414 = vmatpush1.msra.mxu0 0.0
    %415 = vmatprep.subr.mxu0 0.0
    %416 = vmatpush1.msra.mxu0 0.0
    %417 = vmatprep.subr.mxu0 0.0
    %418 = vmatpush1.msra.mxu0 0.0
    %419 = vmatprep.subr.mxu0 0.0
    %420 = vmatpush1.msra.mxu0 0.0
    %421 = vmatprep.subr.mxu0 0.0
    %422 = vmatpush1.msra.mxu0 0.0
    %423 = vmatprep.mubr.f32.mxu0 0.0
    %424 = vmatmul.mubr.f32.gmra.mrb[0].mxu0 %v357
    %v425 = vpop.f32.mrb[0].mxu0
    %v426 = vadd.f32 0.0, %v425
    %v427 = vpop.f32.mrb[0].mxu0
    %428 = vdwg.mxu0
    %v429 = vadd.f32 %v355, %v426
    %v430 = vxor.u32 %v429, 2147483648
    %v431 = vmul.f32 %v430, 1.442695
    %v432 = vpow.pop %v431
    %v433 = vadd.f32 %v432, 1.0
    %v434 = vrcp.pop %v433
    %v435 = vmul.f32 1.0, %v434
    %v436 = vtanh.pop %v429
    %438 = vrot.lane.b32.xlu0 %v352, 32
    %v439 = vpop.permute.xlu0 %438
    %v441 = vmul.f32 %v435, %v439
    %443 = vrot.lane.b32.xlu0 %v436, 32
    %v444 = vpop.permute.xlu0 %443
    %v446 = vmul.f32 %v435, %v444
    %448 = vrot.lane.b32.xlu0 %v446, 32
    %v449 = vpop.permute.xlu0 %448
    %v451 = vadd.f32 %v441, %v449
    %v452 = vtanh.pop %v451
    %454 = vrot.lane.b32.xlu0 %v452, 32
    %v455 = vpop.permute.xlu0 %454
    %v457 = vmul.f32 %v435, %v455
    %459 = vrot.lane.b32.xlu0 %v457, 64
    %v460 = vpop.permute.xlu0 %459
    %463 = vrot.lane.b32.xlu0 %v351, 32
    %v464 = vpop.permute.xlu0 %463
    %v466 = vsel %vm192, %v460, %v464
    %vm467 = vcmask 523264
    %v469 = vsel %vm467, %v466, 0
    %471 = vmatprep.subr.mxu0 0.0
    %472 = vmatpush1.msra.mxu0 %v334
    %473 = vmatprep.subr.mxu0 0.0
    %474 = vmatpush1.msra.mxu0 %v335
    %475 = vmatprep.subr.mxu0 0.0
    %476 = vmatpush1.msra.mxu0 %v336
    %477 = vmatprep.subr.mxu0 0.0
    %478 = vmatpush1.msra.mxu0 %v337
    %479 = vmatprep.subr.mxu0 0.0
    %480 = vmatpush1.msra.mxu0 %v338
    %481 = vmatprep.subr.mxu0 0.0
    %482 = vmatpush1.msra.mxu0 %v339
    %483 = vmatprep.subr.mxu0 0.0
    %484 = vmatpush1.msra.mxu0 %v340
    %485 = vmatprep.subr.mxu0 0.0
    %486 = vmatpush1.msra.mxu0 %v341
    %487 = vmatprep.subr.mxu0 0.0
    %488 = vmatpush1.msra.mxu0 0.0
    %489 = vmatprep.subr.mxu0 0.0
    %490 = vmatpush1.msra.mxu0 0.0
    %491 = vmatprep.subr.mxu0 0.0
    %492 = vmatpush1.msra.mxu0 0.0
    %493 = vmatprep.subr.mxu0 0.0
    %494 = vmatpush1.msra.mxu0 0.0
    %495 = vmatprep.subr.mxu0 0.0
    %496 = vmatpush1.msra.mxu0 0.0
    %497 = vmatprep.subr.mxu0 0.0
    %498 = vmatpush1.msra.mxu0 0.0
    %499 = vmatprep.subr.mxu0 0.0
    %500 = vmatpush1.msra.mxu0 0.0
    %501 = vmatprep.subr.mxu0 0.0
    %502 = vmatpush1.msra.mxu0 0.0
    %503 = vmatprep.subr.mxu0 0.0
    %504 = vmatpush1.msra.mxu0 0.0
    %505 = vmatprep.subr.mxu0 0.0
    %506 = vmatpush1.msra.mxu0 0.0
    %507 = vmatprep.subr.mxu0 0.0
    %508 = vmatpush1.msra.mxu0 0.0
    %509 = vmatprep.subr.mxu0 0.0
    %510 = vmatpush1.msra.mxu0 0.0
    %511 = vmatprep.subr.mxu0 0.0
    %512 = vmatpush1.msra.mxu0 0.0
    %513 = vmatprep.subr.mxu0 0.0
    %514 = vmatpush1.msra.mxu0 0.0
    %515 = vmatprep.subr.mxu0 0.0
    %516 = vmatpush1.msra.mxu0 0.0
    %517 = vmatprep.subr.mxu0 0.0
    %518 = vmatpush1.msra.mxu0 0.0
    %519 = vmatprep.subr.mxu0 0.0
    %520 = vmatpush1.msra.mxu0 0.0
    %521 = vmatprep.subr.mxu0 0.0
    %522 = vmatpush1.msra.mxu0 0.0
    %523 = vmatprep.subr.mxu0 0.0
    %524 = vmatpush1.msra.mxu0 0.0
    %525 = vmatprep.subr.mxu0 0.0
    %526 = vmatpush1.msra.mxu0 0.0
    %527 = vmatprep.subr.mxu0 0.0
    %528 = vmatpush1.msra.mxu0 0.0
    %529 = vmatprep.subr.mxu0 0.0
    %530 = vmatpush1.msra.mxu0 0.0
    %531 = vmatprep.subr.mxu0 0.0
    %532 = vmatpush1.msra.mxu0 0.0
    %533 = vmatprep.subr.mxu0 0.0
    %534 = vmatpush1.msra.mxu0 0.0
    %535 = vmatprep.mubr.f32.mxu0 0.0
    %536 = vmatmul.mubr.f32.gmra.mrb[0].mxu0 %v469
    %v537 = vpop.f32.mrb[0].mxu0
    %v538 = vadd.f32 %v347, %v537
    %v539 = vpop.f32.mrb[0].mxu0
    %540 = vdwg.mxu0
    %v541 = vxor.u32 %v538, 2147483648
    %v542 = vmul.f32 %v541, 1.442695
    %v543 = vpow.pop %v542
    %v544 = vadd.f32 %v543, 1.0
    %v545 = vrcp.pop %v544
    %v546 = vmul.f32 1.0, %v545
    %v547 = vtanh.pop %v538
    %549 = vrot.lane.b32.xlu0 %v354, 32
    %v550 = vpop.permute.xlu0 %549
    %v552 = vmul.f32 %v546, %v550
    %554 = vrot.lane.b32.xlu0 %v547, 32
    %v555 = vpop.permute.xlu0 %554
    %v557 = vmul.f32 %v546, %v555
    %559 = vrot.lane.b32.xlu0 %v557, 32
    %v560 = vpop.permute.xlu0 %559
    %v562 = vadd.f32 %v552, %v560
    %v563 = vtanh.pop %v562
    %565 = vrot.lane.b32.xlu0 %v563, 32
    %v566 = vpop.permute.xlu0 %565
    %v568 = vmul.f32 %v546, %v566
    %s569 = scalar_lea.vmem [#allocation2], 8
    %v570 = vld [vmem:[%s569] sm:$0xff]
    %v571 = vsel %vm192, %v460, 0
    %573 = vmatprep.subr.mxu0 0.0
    %574 = vmatpush1.msra.mxu0 %v330
    %575 = vmatprep.subr.mxu0 0.0
    %576 = vmatpush1.msra.mxu0 %v331
    %577 = vmatprep.subr.mxu0 0.0
    %578 = vmatpush1.msra.mxu0 %v332
    %579 = vmatprep.subr.mxu0 0.0
    %580 = vmatpush1.msra.mxu0 %v333
    %581 = vmatprep.subr.mxu0 0.0
    %582 = vmatpush1.msra.mxu0 0.0
    %583 = vmatprep.subr.mxu0 0.0
    %584 = vmatpush1.msra.mxu0 0.0
    %585 = vmatprep.subr.mxu0 0.0
    %586 = vmatpush1.msra.mxu0 0.0
    %587 = vmatprep.subr.mxu0 0.0
    %588 = vmatpush1.msra.mxu0 0.0
    %589 = vmatprep.subr.mxu0 0.0
    %590 = vmatpush1.msra.mxu0 0.0
    %591 = vmatprep.subr.mxu0 0.0
    %592 = vmatpush1.msra.mxu0 0.0
    %593 = vmatprep.subr.mxu0 0.0
    %594 = vmatpush1.msra.mxu0 0.0
    %595 = vmatprep.subr.mxu0 0.0
    %596 = vmatpush1.msra.mxu0 0.0
    %597 = vmatprep.subr.mxu0 0.0
    %598 = vmatpush1.msra.mxu0 0.0
    %599 = vmatprep.subr.mxu0 0.0
    %600 = vmatpush1.msra.mxu0 0.0
    %601 = vmatprep.subr.mxu0 0.0
    %602 = vmatpush1.msra.mxu0 0.0
    %603 = vmatprep.subr.mxu0 0.0
    %604 = vmatpush1.msra.mxu0 0.0
    %605 = vmatprep.subr.mxu0 0.0
    %606 = vmatpush1.msra.mxu0 0.0
    %607 = vmatprep.subr.mxu0 0.0
    %608 = vmatpush1.msra.mxu0 0.0
    %609 = vmatprep.subr.mxu0 0.0
    %610 = vmatpush1.msra.mxu0 0.0
    %611 = vmatprep.subr.mxu0 0.0
    %612 = vmatpush1.msra.mxu0 0.0
    %613 = vmatprep.subr.mxu0 0.0
    %614 = vmatpush1.msra.mxu0 0.0
    %615 = vmatprep.subr.mxu0 0.0
    %616 = vmatpush1.msra.mxu0 0.0
    %617 = vmatprep.subr.mxu0 0.0
    %618 = vmatpush1.msra.mxu0 0.0
    %619 = vmatprep.subr.mxu0 0.0
    %620 = vmatpush1.msra.mxu0 0.0
    %621 = vmatprep.subr.mxu0 0.0
    %622 = vmatpush1.msra.mxu0 0.0
    %623 = vmatprep.subr.mxu0 0.0
    %624 = vmatpush1.msra.mxu0 0.0
    %625 = vmatprep.subr.mxu0 0.0
    %626 = vmatpush1.msra.mxu0 0.0
    %627 = vmatprep.subr.mxu0 0.0
    %628 = vmatpush1.msra.mxu0 0.0
    %629 = vmatprep.subr.mxu0 0.0
    %630 = vmatpush1.msra.mxu0 0.0
    %631 = vmatprep.subr.mxu0 0.0
    %632 = vmatpush1.msra.mxu0 0.0
    %633 = vmatprep.subr.mxu0 0.0
    %634 = vmatpush1.msra.mxu0 0.0
    %635 = vmatprep.subr.mxu0 0.0
    %636 = vmatpush1.msra.mxu0 0.0
    %637 = vmatprep.mubr.f32.mxu0 0.0
    %638 = vmatmul.mubr.f32.gmra.mrb[0].mxu0 %v571
    %v639 = vpop.f32.mrb[0].mxu0
    %v640 = vadd.f32 0.0, %v639
    %v641 = vpop.f32.mrb[0].mxu0
    %642 = vdwg.mxu0
    %v643 = vadd.f32 %v570, %v640
    %v644 = vxor.u32 %v643, 2147483648
    %v645 = vmul.f32 %v644, 1.442695
    %v646 = vpow.pop %v645
    %v647 = vadd.f32 %v646, 1.0
    %v648 = vrcp.pop %v647
    %v649 = vmul.f32 1.0, %v648
    %v650 = vtanh.pop %v643
    %v651 = vmul.f32 %v649, %v451
    %653 = vrot.lane.b32.xlu0 %v650, 32
    %v654 = vpop.permute.xlu0 %653
    %v656 = vmul.f32 %v649, %v654
    %658 = vrot.lane.b32.xlu0 %v656, 32
    %v659 = vpop.permute.xlu0 %658
    %v661 = vadd.f32 %v651, %v659
    %v662 = vtanh.pop %v661
    %664 = vrot.lane.b32.xlu0 %v662, 32
    %v665 = vpop.permute.xlu0 %664
    %v667 = vmul.f32 %v649, %v665
    %669 = vrot.lane.b32.xlu0 %v667, 64
    %v670 = vpop.permute.xlu0 %669
    %673 = vrot.lane.b32.xlu0 %v568, 96
    %v674 = vpop.permute.xlu0 %673
    %v676 = vsel %vm192, %v670, %v674
    %v678 = vsel %vm467, %v676, 0
    %680 = vmatprep.subr.mxu0 0.0
    %681 = vmatpush1.msra.mxu0 %v334
    %682 = vmatprep.subr.mxu0 0.0
    %683 = vmatpush1.msra.mxu0 %v335
    %684 = vmatprep.subr.mxu0 0.0
    %685 = vmatpush1.msra.mxu0 %v336
    %686 = vmatprep.subr.mxu0 0.0
    %687 = vmatpush1.msra.mxu0 %v337
    %688 = vmatprep.subr.mxu0 0.0
    %689 = vmatpush1.msra.mxu0 %v338
    %690 = vmatprep.subr.mxu0 0.0
    %691 = vmatpush1.msra.mxu0 %v339
    %692 = vmatprep.subr.mxu0 0.0
    %693 = vmatpush1.msra.mxu0 %v340
    %694 = vmatprep.subr.mxu0 0.0
    %695 = vmatpush1.msra.mxu0 %v341
    %696 = vmatprep.subr.mxu0 0.0
    %697 = vmatpush1.msra.mxu0 0.0
    %698 = vmatprep.subr.mxu0 0.0
    %699 = vmatpush1.msra.mxu0 0.0
    %700 = vmatprep.subr.mxu0 0.0
    %701 = vmatpush1.msra.mxu0 0.0
    %702 = vmatprep.subr.mxu0 0.0
    %703 = vmatpush1.msra.mxu0 0.0
    %704 = vmatprep.subr.mxu0 0.0
    %705 = vmatpush1.msra.mxu0 0.0
    %706 = vmatprep.subr.mxu0 0.0
    %707 = vmatpush1.msra.mxu0 0.0
    %708 = vmatprep.subr.mxu0 0.0
    %709 = vmatpush1.msra.mxu0 0.0
    %710 = vmatprep.subr.mxu0 0.0
    %711 = vmatpush1.msra.mxu0 0.0
    %712 = vmatprep.subr.mxu0 0.0
    %713 = vmatpush1.msra.mxu0 0.0
    %714 = vmatprep.subr.mxu0 0.0
    %715 = vmatpush1.msra.mxu0 0.0
    %716 = vmatprep.subr.mxu0 0.0
    %717 = vmatpush1.msra.mxu0 0.0
    %718 = vmatprep.subr.mxu0 0.0
    %719 = vmatpush1.msra.mxu0 0.0
    %720 = vmatprep.subr.mxu0 0.0
    %721 = vmatpush1.msra.mxu0 0.0
    %722 = vmatprep.subr.mxu0 0.0
    %723 = vmatpush1.msra.mxu0 0.0
    %724 = vmatprep.subr.mxu0 0.0
    %725 = vmatpush1.msra.mxu0 0.0
    %726 = vmatprep.subr.mxu0 0.0
    %727 = vmatpush1.msra.mxu0 0.0
    %728 = vmatprep.subr.mxu0 0.0
    %729 = vmatpush1.msra.mxu0 0.0
    %730 = vmatprep.subr.mxu0 0.0
    %731 = vmatpush1.msra.mxu0 0.0
    %732 = vmatprep.subr.mxu0 0.0
    %733 = vmatpush1.msra.mxu0 0.0
    %734 = vmatprep.subr.mxu0 0.0
    %735 = vmatpush1.msra.mxu0 0.0
    %736 = vmatprep.subr.mxu0 0.0
    %737 = vmatpush1.msra.mxu0 0.0
    %738 = vmatprep.subr.mxu0 0.0
    %739 = vmatpush1.msra.mxu0 0.0
    %740 = vmatprep.subr.mxu0 0.0
    %741 = vmatpush1.msra.mxu0 0.0
    %742 = vmatprep.subr.mxu0 0.0
    %743 = vmatpush1.msra.mxu0 0.0
    %744 = vmatprep.mubr.f32.mxu0 0.0
    %745 = vmatmul.mubr.f32.gmra.mrb[0].mxu0 %v678
    %v746 = vpop.f32.mrb[0].mxu0
    %v747 = vadd.f32 %v347, %v746
    %v748 = vpop.f32.mrb[0].mxu0
    %749 = vdwg.mxu0
    %v750 = vxor.u32 %v747, 2147483648
    %v751 = vmul.f32 %v750, 1.442695
    %v752 = vpow.pop %v751
    %v753 = vadd.f32 %v752, 1.0
    %v754 = vrcp.pop %v753
    %v755 = vmul.f32 1.0, %v754
    %v756 = vtanh.pop %v747
    %v757 = vmul.f32 %v755, %v562
    %759 = vrot.lane.b32.xlu0 %v756, 32
    %v760 = vpop.permute.xlu0 %759
    %v762 = vmul.f32 %v755, %v760
    %764 = vrot.lane.b32.xlu0 %v762, 32
    %v765 = vpop.permute.xlu0 %764
    %v767 = vadd.f32 %v757, %v765
    %v768 = vtanh.pop %v767
    %770 = vrot.lane.b32.xlu0 %v768, 32
    %v771 = vpop.permute.xlu0 %770
    %v773 = vmul.f32 %v755, %v771
    %s774 = scalar_lea.vmem [#allocation2], 16
    %v775 = vld [vmem:[%s774] sm:$0xff]
    %v776 = vsel %vm192, %v670, 0
    %778 = vmatprep.subr.mxu0 0.0
    %779 = vmatpush1.msra.mxu0 %v330
    %780 = vmatprep.subr.mxu0 0.0
    %781 = vmatpush1.msra.mxu0 %v331
    %782 = vmatprep.subr.mxu0 0.0
    %783 = vmatpush1.msra.mxu0 %v332
    %784 = vmatprep.subr.mxu0 0.0
    %785 = vmatpush1.msra.mxu0 %v333
    %786 = vmatprep.subr.mxu0 0.0
    %787 = vmatpush1.msra.mxu0 0.0
    %788 = vmatprep.subr.mxu0 0.0
    %789 = vmatpush1.msra.mxu0 0.0
    %790 = vmatprep.subr.mxu0 0.0
    %791 = vmatpush1.msra.mxu0 0.0
    %792 = vmatprep.subr.mxu0 0.0
    %793 = vmatpush1.msra.mxu0 0.0
    %794 = vmatprep.subr.mxu0 0.0
    %795 = vmatpush1.msra.mxu0 0.0
    %796 = vmatprep.subr.mxu0 0.0
    %797 = vmatpush1.msra.mxu0 0.0
    %798 = vmatprep.subr.mxu0 0.0
    %799 = vmatpush1.msra.mxu0 0.0
    %800 = vmatprep.subr.mxu0 0.0
    %801 = vmatpush1.msra.mxu0 0.0
    %802 = vmatprep.subr.mxu0 0.0
    %803 = vmatpush1.msra.mxu0 0.0
    %804 = vmatprep.subr.mxu0 0.0
    %805 = vmatpush1.msra.mxu0 0.0
    %806 = vmatprep.subr.mxu0 0.0
    %807 = vmatpush1.msra.mxu0 0.0
    %808 = vmatprep.subr.mxu0 0.0
    %809 = vmatpush1.msra.mxu0 0.0
    %810 = vmatprep.subr.mxu0 0.0
    %811 = vmatpush1.msra.mxu0 0.0
    %812 = vmatprep.subr.mxu0 0.0
    %813 = vmatpush1.msra.mxu0 0.0
    %814 = vmatprep.subr.mxu0 0.0
    %815 = vmatpush1.msra.mxu0 0.0
    %816 = vmatprep.subr.mxu0 0.0
    %817 = vmatpush1.msra.mxu0 0.0
    %818 = vmatprep.subr.mxu0 0.0
    %819 = vmatpush1.msra.mxu0 0.0
    %820 = vmatprep.subr.mxu0 0.0
    %821 = vmatpush1.msra.mxu0 0.0
    %822 = vmatprep.subr.mxu0 0.0
    %823 = vmatpush1.msra.mxu0 0.0
    %824 = vmatprep.subr.mxu0 0.0
    %825 = vmatpush1.msra.mxu0 0.0
    %826 = vmatprep.subr.mxu0 0.0
    %827 = vmatpush1.msra.mxu0 0.0
    %828 = vmatprep.subr.mxu0 0.0
    %829 = vmatpush1.msra.mxu0 0.0
    %830 = vmatprep.subr.mxu0 0.0
    %831 = vmatpush1.msra.mxu0 0.0
    %832 = vmatprep.subr.mxu0 0.0
    %833 = vmatpush1.msra.mxu0 0.0
    %834 = vmatprep.subr.mxu0 0.0
    %835 = vmatpush1.msra.mxu0 0.0
    %836 = vmatprep.subr.mxu0 0.0
    %837 = vmatpush1.msra.mxu0 0.0
    %838 = vmatprep.subr.mxu0 0.0
    %839 = vmatpush1.msra.mxu0 0.0
    %840 = vmatprep.subr.mxu0 0.0
    %841 = vmatpush1.msra.mxu0 0.0
    %842 = vmatprep.mubr.f32.mxu0 0.0
    %843 = vmatmul.mubr.f32.gmra.mrb[0].mxu0 %v776
    %v844 = vpop.f32.mrb[0].mxu0
    %v845 = vadd.f32 0.0, %v844
    %v846 = vpop.f32.mrb[0].mxu0
    %847 = vdwg.mxu0
    %v848 = vadd.f32 %v775, %v845
    %v849 = vxor.u32 %v848, 2147483648
    %v850 = vmul.f32 %v849, 1.442695
    %v851 = vpow.pop %v850
    %v852 = vadd.f32 %v851, 1.0
    %v853 = vrcp.pop %v852
    %v854 = vmul.f32 1.0, %v853
    %v855 = vtanh.pop %v848
    %v856 = vmul.f32 %v854, %v661
    %858 = vrot.lane.b32.xlu0 %v855, 32
    %v859 = vpop.permute.xlu0 %858
    %v861 = vmul.f32 %v854, %v859
    %863 = vrot.lane.b32.xlu0 %v861, 32
    %v864 = vpop.permute.xlu0 %863
    %v866 = vadd.f32 %v856, %v864
    %v867 = vtanh.pop %v866
    %869 = vrot.lane.b32.xlu0 %v867, 32
    %v870 = vpop.permute.xlu0 %869
    %v872 = vmul.f32 %v854, %v870
    %874 = vrot.lane.b32.xlu0 %v872, 64
    %v875 = vpop.permute.xlu0 %874
    %878 = vrot.lane.b32.xlu0 %v773, 96
    %v879 = vpop.permute.xlu0 %878
    %v881 = vsel %vm192, %v875, %v879
    %v883 = vsel %vm467, %v881, 0
    %885 = vmatprep.subr.mxu0 0.0
    %886 = vmatpush1.msra.mxu0 %v334
    %887 = vmatprep.subr.mxu0 0.0
    %888 = vmatpush1.msra.mxu0 %v335
    %889 = vmatprep.subr.mxu0 0.0
    %890 = vmatpush1.msra.mxu0 %v336
    %891 = vmatprep.subr.mxu0 0.0
    %892 = vmatpush1.msra.mxu0 %v337
    %893 = vmatprep.subr.mxu0 0.0
    %894 = vmatpush1.msra.mxu0 %v338
    %895 = vmatprep.subr.mxu0 0.0
    %896 = vmatpush1.msra.mxu0 %v339
    %897 = vmatprep.subr.mxu0 0.0
    %898 = vmatpush1.msra.mxu0 %v340
    %899 = vmatprep.subr.mxu0 0.0
    %900 = vmatpush1.msra.mxu0 %v341
    %901 = vmatprep.subr.mxu0 0.0
    %902 = vmatpush1.msra.mxu0 0.0
    %903 = vmatprep.subr.mxu0 0.0
    %904 = vmatpush1.msra.mxu0 0.0
    %905 = vmatprep.subr.mxu0 0.0
    %906 = vmatpush1.msra.mxu0 0.0
    %907 = vmatprep.subr.mxu0 0.0
    %908 = vmatpush1.msra.mxu0 0.0
    %909 = vmatprep.subr.mxu0 0.0
    %910 = vmatpush1.msra.mxu0 0.0
    %911 = vmatprep.subr.mxu0 0.0
    %912 = vmatpush1.msra.mxu0 0.0
    %913 = vmatprep.subr.mxu0 0.0
    %914 = vmatpush1.msra.mxu0 0.0
    %915 = vmatprep.subr.mxu0 0.0
    %916 = vmatpush1.msra.mxu0 0.0
    %917 = vmatprep.subr.mxu0 0.0
    %918 = vmatpush1.msra.mxu0 0.0
    %919 = vmatprep.subr.mxu0 0.0
    %920 = vmatpush1.msra.mxu0 0.0
    %921 = vmatprep.subr.mxu0 0.0
    %922 = vmatpush1.msra.mxu0 0.0
    %923 = vmatprep.subr.mxu0 0.0
    %924 = vmatpush1.msra.mxu0 0.0
    %925 = vmatprep.subr.mxu0 0.0
    %926 = vmatpush1.msra.mxu0 0.0
    %927 = vmatprep.subr.mxu0 0.0
    %928 = vmatpush1.msra.mxu0 0.0
    %929 = vmatprep.subr.mxu0 0.0
    %930 = vmatpush1.msra.mxu0 0.0
    %931 = vmatprep.subr.mxu0 0.0
    %932 = vmatpush1.msra.mxu0 0.0
    %933 = vmatprep.subr.mxu0 0.0
    %934 = vmatpush1.msra.mxu0 0.0
    %935 = vmatprep.subr.mxu0 0.0
    %936 = vmatpush1.msra.mxu0 0.0
    %937 = vmatprep.subr.mxu0 0.0
    %938 = vmatpush1.msra.mxu0 0.0
    %939 = vmatprep.subr.mxu0 0.0
    %940 = vmatpush1.msra.mxu0 0.0
    %941 = vmatprep.subr.mxu0 0.0
    %942 = vmatpush1.msra.mxu0 0.0
    %943 = vmatprep.subr.mxu0 0.0
    %944 = vmatpush1.msra.mxu0 0.0
    %945 = vmatprep.subr.mxu0 0.0
    %946 = vmatpush1.msra.mxu0 0.0
    %947 = vmatprep.subr.mxu0 0.0
    %948 = vmatpush1.msra.mxu0 0.0
    %949 = vmatprep.mubr.f32.mxu0 0.0
    %950 = vmatmul.mubr.f32.gmra.mrb[0].mxu0 %v883
    %v951 = vpop.f32.mrb[0].mxu0
    %v952 = vadd.f32 %v347, %v951
    %v953 = vpop.f32.mrb[0].mxu0
    %954 = vdwg.mxu0
    %v955 = vxor.u32 %v952, 2147483648
    %v956 = vmul.f32 %v955, 1.442695
    %v957 = vpow.pop %v956
    %v958 = vadd.f32 %v957, 1.0
    %v959 = vrcp.pop %v958
    %v960 = vmul.f32 1.0, %v959
    %v961 = vtanh.pop %v952
    %v962 = vmul.f32 %v960, %v767
    %964 = vrot.lane.b32.xlu0 %v961, 32
    %v965 = vpop.permute.xlu0 %964
    %v967 = vmul.f32 %v960, %v965
    %969 = vrot.lane.b32.xlu0 %v967, 32
    %v970 = vpop.permute.xlu0 %969
    %v972 = vadd.f32 %v962, %v970
    %v973 = vtanh.pop %v972
    %975 = vrot.lane.b32.xlu0 %v973, 32
    %v976 = vpop.permute.xlu0 %975
    %v978 = vmul.f32 %v960, %v976
    %s979 = scalar_lea.vmem [#allocation2], 24
    %v980 = vld [vmem:[%s979] sm:$0xff]
    %v981 = vsel %vm192, %v875, 0
    %983 = vmatprep.subr.mxu0 0.0
    %984 = vmatpush1.msra.mxu0 %v330
    %985 = vmatprep.subr.mxu0 0.0
    %986 = vmatpush1.msra.mxu0 %v331
    %987 = vmatprep.subr.mxu0 0.0
    %988 = vmatpush1.msra.mxu0 %v332
    %989 = vmatprep.subr.mxu0 0.0
    %990 = vmatpush1.msra.mxu0 %v333
    %991 = vmatprep.subr.mxu0 0.0
    %992 = vmatpush1.msra.mxu0 0.0
    %993 = vmatprep.subr.mxu0 0.0
    %994 = vmatpush1.msra.mxu0 0.0
    %995 = vmatprep.subr.mxu0 0.0
    %996 = vmatpush1.msra.mxu0 0.0
    %997 = vmatprep.subr.mxu0 0.0
    %998 = vmatpush1.msra.mxu0 0.0
    %999 = vmatprep.subr.mxu0 0.0
    %1000 = vmatpush1.msra.mxu0 0.0
    %1001 = vmatprep.subr.mxu0 0.0
    %1002 = vmatpush1.msra.mxu0 0.0
    %1003 = vmatprep.subr.mxu0 0.0
    %1004 = vmatpush1.msra.mxu0 0.0
    %1005 = vmatprep.subr.mxu0 0.0
    %1006 = vmatpush1.msra.mxu0 0.0
    %1007 = vmatprep.subr.mxu0 0.0
    %1008 = vmatpush1.msra.mxu0 0.0
    %1009 = vmatprep.subr.mxu0 0.0
    %1010 = vmatpush1.msra.mxu0 0.0
    %1011 = vmatprep.subr.mxu0 0.0
    %1012 = vmatpush1.msra.mxu0 0.0
    %1013 = vmatprep.subr.mxu0 0.0
    %1014 = vmatpush1.msra.mxu0 0.0
    %1015 = vmatprep.subr.mxu0 0.0
    %1016 = vmatpush1.msra.mxu0 0.0
    %1017 = vmatprep.subr.mxu0 0.0
    %1018 = vmatpush1.msra.mxu0 0.0
    %1019 = vmatprep.subr.mxu0 0.0
    %1020 = vmatpush1.msra.mxu0 0.0
    %1021 = vmatprep.subr.mxu0 0.0
    %1022 = vmatpush1.msra.mxu0 0.0
    %1023 = vmatprep.subr.mxu0 0.0
    %1024 = vmatpush1.msra.mxu0 0.0
    %1025 = vmatprep.subr.mxu0 0.0
    %1026 = vmatpush1.msra.mxu0 0.0
    %1027 = vmatprep.subr.mxu0 0.0
    %1028 = vmatpush1.msra.mxu0 0.0
    %1029 = vmatprep.subr.mxu0 0.0
    %1030 = vmatpush1.msra.mxu0 0.0
    %1031 = vmatprep.subr.mxu0 0.0
    %1032 = vmatpush1.msra.mxu0 0.0
    %1033 = vmatprep.subr.mxu0 0.0
    %1034 = vmatpush1.msra.mxu0 0.0
    %1035 = vmatprep.subr.mxu0 0.0
    %1036 = vmatpush1.msra.mxu0 0.0
    %1037 = vmatprep.subr.mxu0 0.0
    %1038 = vmatpush1.msra.mxu0 0.0
    %1039 = vmatprep.subr.mxu0 0.0
    %1040 = vmatpush1.msra.mxu0 0.0
    %1041 = vmatprep.subr.mxu0 0.0
    %1042 = vmatpush1.msra.mxu0 0.0
    %1043 = vmatprep.subr.mxu0 0.0
    %1044 = vmatpush1.msra.mxu0 0.0
    %1045 = vmatprep.subr.mxu0 0.0
    %1046 = vmatpush1.msra.mxu0 0.0
    %1047 = vmatprep.mubr.f32.mxu0 0.0
    %1048 = vmatmul.mubr.f32.gmra.mrb[0].mxu0 %v981
    %v1049 = vpop.f32.mrb[0].mxu0
    %v1050 = vadd.f32 0.0, %v1049
    %v1051 = vpop.f32.mrb[0].mxu0
    %1052 = vdwg.mxu0
    %v1053 = vadd.f32 %v980, %v1050
    %v1054 = vxor.u32 %v1053, 2147483648
    %v1055 = vmul.f32 %v1054, 1.442695
    %v1056 = vpow.pop %v1055
    %v1057 = vadd.f32 %v1056, 1.0
    %v1058 = vrcp.pop %v1057
    %v1059 = vmul.f32 1.0, %v1058
    %v1060 = vtanh.pop %v1053
    %v1061 = vmul.f32 %v1059, %v866
    %1063 = vrot.lane.b32.xlu0 %v1060, 32
    %v1064 = vpop.permute.xlu0 %1063
    %v1066 = vmul.f32 %v1059, %v1064
    %1068 = vrot.lane.b32.xlu0 %v1066, 32
    %v1069 = vpop.permute.xlu0 %1068
    %v1071 = vadd.f32 %v1061, %v1069
    %v1072 = vtanh.pop %v1071
    %1074 = vrot.lane.b32.xlu0 %v1072, 32
    %v1075 = vpop.permute.xlu0 %1074
    %v1077 = vmul.f32 %v1059, %v1075
    %1079 = vrot.lane.b32.xlu0 %v1077, 64
    %v1080 = vpop.permute.xlu0 %1079
    %1083 = vrot.lane.b32.xlu0 %v978, 96
    %v1084 = vpop.permute.xlu0 %1083
    %v1086 = vsel %vm192, %v1080, %v1084
    %v1088 = vsel %vm467, %v1086, 0
    %1090 = vmatprep.subr.mxu0 0.0
    %1091 = vmatpush1.msra.mxu0 %v334
    %1092 = vmatprep.subr.mxu0 0.0
    %1093 = vmatpush1.msra.mxu0 %v335
    %1094 = vmatprep.subr.mxu0 0.0
    %1095 = vmatpush1.msra.mxu0 %v336
    %1096 = vmatprep.subr.mxu0 0.0
    %1097 = vmatpush1.msra.mxu0 %v337
    %1098 = vmatprep.subr.mxu0 0.0
    %1099 = vmatpush1.msra.mxu0 %v338
    %1100 = vmatprep.subr.mxu0 0.0
    %1101 = vmatpush1.msra.mxu0 %v339
    %1102 = vmatprep.subr.mxu0 0.0
    %1103 = vmatpush1.msra.mxu0 %v340
    %1104 = vmatprep.subr.mxu0 0.0
    %1105 = vmatpush1.msra.mxu0 %v341
    %1106 = vmatprep.subr.mxu0 0.0
    %1107 = vmatpush1.msra.mxu0 0.0
    %1108 = vmatprep.subr.mxu0 0.0
    %1109 = vmatpush1.msra.mxu0 0.0
    %1110 = vmatprep.subr.mxu0 0.0
    %1111 = vmatpush1.msra.mxu0 0.0
    %1112 = vmatprep.subr.mxu0 0.0
    %1113 = vmatpush1.msra.mxu0 0.0
    %1114 = vmatprep.subr.mxu0 0.0
    %1115 = vmatpush1.msra.mxu0 0.0
    %1116 = vmatprep.subr.mxu0 0.0
    %1117 = vmatpush1.msra.mxu0 0.0
    %1118 = vmatprep.subr.mxu0 0.0
    %1119 = vmatpush1.msra.mxu0 0.0
    %1120 = vmatprep.subr.mxu0 0.0
    %1121 = vmatpush1.msra.mxu0 0.0
    %1122 = vmatprep.subr.mxu0 0.0
    %1123 = vmatpush1.msra.mxu0 0.0
    %1124 = vmatprep.subr.mxu0 0.0
    %1125 = vmatpush1.msra.mxu0 0.0
    %1126 = vmatprep.subr.mxu0 0.0
    %1127 = vmatpush1.msra.mxu0 0.0
    %1128 = vmatprep.subr.mxu0 0.0
    %1129 = vmatpush1.msra.mxu0 0.0
    %1130 = vmatprep.subr.mxu0 0.0
    %1131 = vmatpush1.msra.mxu0 0.0
    %1132 = vmatprep.subr.mxu0 0.0
    %1133 = vmatpush1.msra.mxu0 0.0
    %1134 = vmatprep.subr.mxu0 0.0
    %1135 = vmatpush1.msra.mxu0 0.0
    %1136 = vmatprep.subr.mxu0 0.0
    %1137 = vmatpush1.msra.mxu0 0.0
    %1138 = vmatprep.subr.mxu0 0.0
    %1139 = vmatpush1.msra.mxu0 0.0
    %1140 = vmatprep.subr.mxu0 0.0
    %1141 = vmatpush1.msra.mxu0 0.0
    %1142 = vmatprep.subr.mxu0 0.0
    %1143 = vmatpush1.msra.mxu0 0.0
    %1144 = vmatprep.subr.mxu0 0.0
    %1145 = vmatpush1.msra.mxu0 0.0
    %1146 = vmatprep.subr.mxu0 0.0
    %1147 = vmatpush1.msra.mxu0 0.0
    %1148 = vmatprep.subr.mxu0 0.0
    %1149 = vmatpush1.msra.mxu0 0.0
    %1150 = vmatprep.subr.mxu0 0.0
    %1151 = vmatpush1.msra.mxu0 0.0
    %1152 = vmatprep.subr.mxu0 0.0
    %1153 = vmatpush1.msra.mxu0 0.0
    %1154 = vmatprep.mubr.f32.mxu0 0.0
    %1155 = vmatmul.mubr.f32.gmra.mrb[0].mxu0 %v1088
    %v1156 = vpop.f32.mrb[0].mxu0
    %v1157 = vadd.f32 %v347, %v1156
    %v1158 = vpop.f32.mrb[0].mxu0
    %1159 = vdwg.mxu0
    %v1160 = vxor.u32 %v1157, 2147483648
    %v1161 = vmul.f32 %v1160, 1.442695
    %v1162 = vpow.pop %v1161
    %v1163 = vadd.f32 %v1162, 1.0
    %v1164 = vrcp.pop %v1163
    %v1165 = vmul.f32 1.0, %v1164
    %v1166 = vtanh.pop %v1157
    %v1167 = vmul.f32 %v1165, %v972
    %1169 = vrot.lane.b32.xlu0 %v1166, 32
    %v1170 = vpop.permute.xlu0 %1169
    %v1172 = vmul.f32 %v1165, %v1170
    %1174 = vrot.lane.b32.xlu0 %v1172, 32
    %v1175 = vpop.permute.xlu0 %1174
    %v1177 = vadd.f32 %v1167, %v1175
    %v1178 = vtanh.pop %v1177
    %1180 = vrot.lane.b32.xlu0 %v1178, 32
    %v1181 = vpop.permute.xlu0 %1180
    %v1183 = vmul.f32 %v1165, %v1181
    %s1184 = scalar_lea.vmem [#allocation2], 32
    %v1185 = vld [vmem:[%s1184] sm:$0xff]
    %v1186 = vsel %vm192, %v1080, 0
    %1188 = vmatprep.subr.mxu0 0.0
    %1189 = vmatpush1.msra.mxu0 %v330
    %1190 = vmatprep.subr.mxu0 0.0
    %1191 = vmatpush1.msra.mxu0 %v331
    %1192 = vmatprep.subr.mxu0 0.0
    %1193 = vmatpush1.msra.mxu0 %v332
    %1194 = vmatprep.subr.mxu0 0.0
    %1195 = vmatpush1.msra.mxu0 %v333
    %1196 = vmatprep.subr.mxu0 0.0
    %1197 = vmatpush1.msra.mxu0 0.0
    %1198 = vmatprep.subr.mxu0 0.0
    %1199 = vmatpush1.msra.mxu0 0.0
    %1200 = vmatprep.subr.mxu0 0.0
    %1201 = vmatpush1.msra.mxu0 0.0
    %1202 = vmatprep.subr.mxu0 0.0
    %1203 = vmatpush1.msra.mxu0 0.0
    %1204 = vmatprep.subr.mxu0 0.0
    %1205 = vmatpush1.msra.mxu0 0.0
    %1206 = vmatprep.subr.mxu0 0.0
    %1207 = vmatpush1.msra.mxu0 0.0
    %1208 = vmatprep.subr.mxu0 0.0
    %1209 = vmatpush1.msra.mxu0 0.0
    %1210 = vmatprep.subr.mxu0 0.0
    %1211 = vmatpush1.msra.mxu0 0.0
    %1212 = vmatprep.subr.mxu0 0.0
    %1213 = vmatpush1.msra.mxu0 0.0
    %1214 = vmatprep.subr.mxu0 0.0
    %1215 = vmatpush1.msra.mxu0 0.0
    %1216 = vmatprep.subr.mxu0 0.0
    %1217 = vmatpush1.msra.mxu0 0.0
    %1218 = vmatprep.subr.mxu0 0.0
    %1219 = vmatpush1.msra.mxu0 0.0
    %1220 = vmatprep.subr.mxu0 0.0
    %1221 = vmatpush1.msra.mxu0 0.0
    %1222 = vmatprep.subr.mxu0 0.0
    %1223 = vmatpush1.msra.mxu0 0.0
    %1224 = vmatprep.subr.mxu0 0.0
    %1225 = vmatpush1.msra.mxu0 0.0
    %1226 = vmatprep.subr.mxu0 0.0
    %1227 = vmatpush1.msra.mxu0 0.0
    %1228 = vmatprep.subr.mxu0 0.0
    %1229 = vmatpush1.msra.mxu0 0.0
    %1230 = vmatprep.subr.mxu0 0.0
    %1231 = vmatpush1.msra.mxu0 0.0
    %1232 = vmatprep.subr.mxu0 0.0
    %1233 = vmatpush1.msra.mxu0 0.0
    %1234 = vmatprep.subr.mxu0 0.0
    %1235 = vmatpush1.msra.mxu0 0.0
    %1236 = vmatprep.subr.mxu0 0.0
    %1237 = vmatpush1.msra.mxu0 0.0
    %1238 = vmatprep.subr.mxu0 0.0
    %1239 = vmatpush1.msra.mxu0 0.0
    %1240 = vmatprep.subr.mxu0 0.0
    %1241 = vmatpush1.msra.mxu0 0.0
    %1242 = vmatprep.subr.mxu0 0.0
    %1243 = vmatpush1.msra.mxu0 0.0
    %1244 = vmatprep.subr.mxu0 0.0
    %1245 = vmatpush1.msra.mxu0 0.0
    %1246 = vmatprep.subr.mxu0 0.0
    %1247 = vmatpush1.msra.mxu0 0.0
    %1248 = vmatprep.subr.mxu0 0.0
    %1249 = vmatpush1.msra.mxu0 0.0
    %1250 = vmatprep.subr.mxu0 0.0
    %1251 = vmatpush1.msra.mxu0 0.0
    %1252 = vmatprep.mubr.f32.mxu0 0.0
    %1253 = vmatmul.mubr.f32.gmra.mrb[0].mxu0 %v1186
    %v1254 = vpop.f32.mrb[0].mxu0
    %v1255 = vadd.f32 0.0, %v1254
    %v1256 = vpop.f32.mrb[0].mxu0
    %1257 = vdwg.mxu0
    %v1258 = vadd.f32 %v1185, %v1255
    %v1259 = vxor.u32 %v1258, 2147483648
    %v1260 = vmul.f32 %v1259, 1.442695
    %v1261 = vpow.pop %v1260
    %v1262 = vadd.f32 %v1261, 1.0
    %v1263 = vrcp.pop %v1262
    %v1264 = vmul.f32 1.0, %v1263
    %v1265 = vtanh.pop %v1258
    %v1266 = vmul.f32 %v1264, %v1071
    %1268 = vrot.lane.b32.xlu0 %v1265, 32
    %v1269 = vpop.permute.xlu0 %1268
    %v1271 = vmul.f32 %v1264, %v1269
    %1273 = vrot.lane.b32.xlu0 %v1271, 32
    %v1274 = vpop.permute.xlu0 %1273
    %v1276 = vadd.f32 %v1266, %v1274
    %v1277 = vtanh.pop %v1276
    %1279 = vrot.lane.b32.xlu0 %v1277, 32
    %v1280 = vpop.permute.xlu0 %1279
    %v1282 = vmul.f32 %v1264, %v1280
    %1284 = vrot.lane.b32.xlu0 %v1282, 64
    %v1285 = vpop.permute.xlu0 %1284
    %1288 = vrot.lane.b32.xlu0 %v1183, 96
    %v1289 = vpop.permute.xlu0 %1288
    %v1291 = vsel %vm192, %v1285, %v1289
    %v1293 = vsel %vm467, %v1291, 0
    %1295 = vmatprep.subr.mxu0 0.0
    %1296 = vmatpush1.msra.mxu0 %v334
    %1297 = vmatprep.subr.mxu0 0.0
    %1298 = vmatpush1.msra.mxu0 %v335
    %1299 = vmatprep.subr.mxu0 0.0
    %1300 = vmatpush1.msra.mxu0 %v336
    %1301 = vmatprep.subr.mxu0 0.0
    %1302 = vmatpush1.msra.mxu0 %v337
    %1303 = vmatprep.subr.mxu0 0.0
    %1304 = vmatpush1.msra.mxu0 %v338
    %1305 = vmatprep.subr.mxu0 0.0
    %1306 = vmatpush1.msra.mxu0 %v339
    %1307 = vmatprep.subr.mxu0 0.0
    %1308 = vmatpush1.msra.mxu0 %v340
    %1309 = vmatprep.subr.mxu0 0.0
    %1310 = vmatpush1.msra.mxu0 %v341
    %1311 = vmatprep.subr.mxu0 0.0
    %1312 = vmatpush1.msra.mxu0 0.0
    %1313 = vmatprep.subr.mxu0 0.0
    %1314 = vmatpush1.msra.mxu0 0.0
    %1315 = vmatprep.subr.mxu0 0.0
    %1316 = vmatpush1.msra.mxu0 0.0
    %1317 = vmatprep.subr.mxu0 0.0
    %1318 = vmatpush1.msra.mxu0 0.0
    %1319 = vmatprep.subr.mxu0 0.0
    %1320 = vmatpush1.msra.mxu0 0.0
    %1321 = vmatprep.subr.mxu0 0.0
    %1322 = vmatpush1.msra.mxu0 0.0
    %1323 = vmatprep.subr.mxu0 0.0
    %1324 = vmatpush1.msra.mxu0 0.0
    %1325 = vmatprep.subr.mxu0 0.0
    %1326 = vmatpush1.msra.mxu0 0.0
    %1327 = vmatprep.subr.mxu0 0.0
    %1328 = vmatpush1.msra.mxu0 0.0
    %1329 = vmatprep.subr.mxu0 0.0
    %1330 = vmatpush1.msra.mxu0 0.0
    %1331 = vmatprep.subr.mxu0 0.0
    %1332 = vmatpush1.msra.mxu0 0.0
    %1333 = vmatprep.subr.mxu0 0.0
    %1334 = vmatpush1.msra.mxu0 0.0
    %1335 = vmatprep.subr.mxu0 0.0
    %1336 = vmatpush1.msra.mxu0 0.0
    %1337 = vmatprep.subr.mxu0 0.0
    %1338 = vmatpush1.msra.mxu0 0.0
    %1339 = vmatprep.subr.mxu0 0.0
    %1340 = vmatpush1.msra.mxu0 0.0
    %1341 = vmatprep.subr.mxu0 0.0
    %1342 = vmatpush1.msra.mxu0 0.0
    %1343 = vmatprep.subr.mxu0 0.0
    %1344 = vmatpush1.msra.mxu0 0.0
    %1345 = vmatprep.subr.mxu0 0.0
    %1346 = vmatpush1.msra.mxu0 0.0
    %1347 = vmatprep.subr.mxu0 0.0
    %1348 = vmatpush1.msra.mxu0 0.0
    %1349 = vmatprep.subr.mxu0 0.0
    %1350 = vmatpush1.msra.mxu0 0.0
    %1351 = vmatprep.subr.mxu0 0.0
    %1352 = vmatpush1.msra.mxu0 0.0
    %1353 = vmatprep.subr.mxu0 0.0
    %1354 = vmatpush1.msra.mxu0 0.0
    %1355 = vmatprep.subr.mxu0 0.0
    %1356 = vmatpush1.msra.mxu0 0.0
    %1357 = vmatprep.subr.mxu0 0.0
    %1358 = vmatpush1.msra.mxu0 0.0
    %1359 = vmatprep.mubr.f32.mxu0 0.0
    %1360 = vmatmul.mubr.f32.gmra.mrb[0].mxu0 %v1293
    %v1361 = vpop.f32.mrb[0].mxu0
    %v1362 = vadd.f32 %v347, %v1361
    %v1363 = vpop.f32.mrb[0].mxu0
    %1364 = vdwg.mxu0
    %v1365 = vxor.u32 %v1362, 2147483648
    %v1366 = vmul.f32 %v1365, 1.442695
    %v1367 = vpow.pop %v1366
    %v1368 = vadd.f32 %v1367, 1.0
    %v1369 = vrcp.pop %v1368
    %v1370 = vmul.f32 1.0, %v1369
    %v1371 = vtanh.pop %v1362
    %v1372 = vmul.f32 %v1370, %v1177
    %1374 = vrot.lane.b32.xlu0 %v1371, 32
    %v1375 = vpop.permute.xlu0 %1374
    %v1377 = vmul.f32 %v1370, %v1375
    %1379 = vrot.lane.b32.xlu0 %v1377, 32
    %v1380 = vpop.permute.xlu0 %1379
    %v1382 = vadd.f32 %v1372, %v1380
    %v1383 = vtanh.pop %v1382
    %1385 = vrot.lane.b32.xlu0 %v1383, 32
    %v1386 = vpop.permute.xlu0 %1385
    %v1388 = vmul.f32 %v1370, %v1386
    %s1389 = scalar_lea.vmem [#allocation2], 40
    %v1390 = vld [vmem:[%s1389] sm:$0xff]
    %v1391 = vsel %vm192, %v1285, 0
    %1393 = vmatprep.subr.mxu0 0.0
    %1394 = vmatpush1.msra.mxu0 %v330
    %1395 = vmatprep.subr.mxu0 0.0
    %1396 = vmatpush1.msra.mxu0 %v331
    %1397 = vmatprep.subr.mxu0 0.0
    %1398 = vmatpush1.msra.mxu0 %v332
    %1399 = vmatprep.subr.mxu0 0.0
    %1400 = vmatpush1.msra.mxu0 %v333
    %1401 = vmatprep.subr.mxu0 0.0
    %1402 = vmatpush1.msra.mxu0 0.0
    %1403 = vmatprep.subr.mxu0 0.0
    %1404 = vmatpush1.msra.mxu0 0.0
    %1405 = vmatprep.subr.mxu0 0.0
    %1406 = vmatpush1.msra.mxu0 0.0
    %1407 = vmatprep.subr.mxu0 0.0
    %1408 = vmatpush1.msra.mxu0 0.0
    %1409 = vmatprep.subr.mxu0 0.0
    %1410 = vmatpush1.msra.mxu0 0.0
    %1411 = vmatprep.subr.mxu0 0.0
    %1412 = vmatpush1.msra.mxu0 0.0
    %1413 = vmatprep.subr.mxu0 0.0
    %1414 = vmatpush1.msra.mxu0 0.0
    %1415 = vmatprep.subr.mxu0 0.0
    %1416 = vmatpush1.msra.mxu0 0.0
    %1417 = vmatprep.subr.mxu0 0.0
    %1418 = vmatpush1.msra.mxu0 0.0
    %1419 = vmatprep.subr.mxu0 0.0
    %1420 = vmatpush1.msra.mxu0 0.0
    %1421 = vmatprep.subr.mxu0 0.0
    %1422 = vmatpush1.msra.mxu0 0.0
    %1423 = vmatprep.subr.mxu0 0.0
    %1424 = vmatpush1.msra.mxu0 0.0
    %1425 = vmatprep.subr.mxu0 0.0
    %1426 = vmatpush1.msra.mxu0 0.0
    %1427 = vmatprep.subr.mxu0 0.0
    %1428 = vmatpush1.msra.mxu0 0.0
    %1429 = vmatprep.subr.mxu0 0.0
    %1430 = vmatpush1.msra.mxu0 0.0
    %1431 = vmatprep.subr.mxu0 0.0
    %1432 = vmatpush1.msra.mxu0 0.0
    %1433 = vmatprep.subr.mxu0 0.0
    %1434 = vmatpush1.msra.mxu0 0.0
    %1435 = vmatprep.subr.mxu0 0.0
    %1436 = vmatpush1.msra.mxu0 0.0
    %1437 = vmatprep.subr.mxu0 0.0
    %1438 = vmatpush1.msra.mxu0 0.0
    %1439 = vmatprep.subr.mxu0 0.0
    %1440 = vmatpush1.msra.mxu0 0.0
    %1441 = vmatprep.subr.mxu0 0.0
    %1442 = vmatpush1.msra.mxu0 0.0
    %1443 = vmatprep.subr.mxu0 0.0
    %1444 = vmatpush1.msra.mxu0 0.0
    %1445 = vmatprep.subr.mxu0 0.0
    %1446 = vmatpush1.msra.mxu0 0.0
    %1447 = vmatprep.subr.mxu0 0.0
    %1448 = vmatpush1.msra.mxu0 0.0
    %1449 = vmatprep.subr.mxu0 0.0
    %1450 = vmatpush1.msra.mxu0 0.0
    %1451 = vmatprep.subr.mxu0 0.0
    %1452 = vmatpush1.msra.mxu0 0.0
    %1453 = vmatprep.subr.mxu0 0.0
    %1454 = vmatpush1.msra.mxu0 0.0
    %1455 = vmatprep.subr.mxu0 0.0
    %1456 = vmatpush1.msra.mxu0 0.0
    %1457 = vmatprep.mubr.f32.mxu0 0.0
    %1458 = vmatmul.mubr.f32.gmra.mrb[0].mxu0 %v1391
    %v1459 = vpop.f32.mrb[0].mxu0
    %v1460 = vadd.f32 0.0, %v1459
    %v1461 = vpop.f32.mrb[0].mxu0
    %1462 = vdwg.mxu0
    %v1463 = vadd.f32 %v1390, %v1460
    %v1464 = vxor.u32 %v1463, 2147483648
    %v1465 = vmul.f32 %v1464, 1.442695
    %v1466 = vpow.pop %v1465
    %v1467 = vadd.f32 %v1466, 1.0
    %v1468 = vrcp.pop %v1467
    %v1469 = vmul.f32 1.0, %v1468
    %v1470 = vtanh.pop %v1463
    %v1471 = vmul.f32 %v1469, %v1276
    %1473 = vrot.lane.b32.xlu0 %v1470, 32
    %v1474 = vpop.permute.xlu0 %1473
    %v1476 = vmul.f32 %v1469, %v1474
    %1478 = vrot.lane.b32.xlu0 %v1476, 32
    %v1479 = vpop.permute.xlu0 %1478
    %v1481 = vadd.f32 %v1471, %v1479
    %v1482 = vtanh.pop %v1481
    %1484 = vrot.lane.b32.xlu0 %v1482, 32
    %v1485 = vpop.permute.xlu0 %1484
    %v1487 = vmul.f32 %v1469, %v1485
    %1489 = vrot.lane.b32.xlu0 %v1487, 64
    %v1490 = vpop.permute.xlu0 %1489
    %1493 = vrot.lane.b32.xlu0 %v1388, 96
    %v1494 = vpop.permute.xlu0 %1493
    %v1496 = vsel %vm192, %v1490, %v1494
    %v1498 = vsel %vm467, %v1496, 0
    %1500 = vmatprep.subr.mxu0 0.0
    %1501 = vmatpush1.msra.mxu0 %v334
    %1502 = vmatprep.subr.mxu0 0.0
    %1503 = vmatpush1.msra.mxu0 %v335
    %1504 = vmatprep.subr.mxu0 0.0
    %1505 = vmatpush1.msra.mxu0 %v336
    %1506 = vmatprep.subr.mxu0 0.0
    %1507 = vmatpush1.msra.mxu0 %v337
    %1508 = vmatprep.subr.mxu0 0.0
    %1509 = vmatpush1.msra.mxu0 %v338
    %1510 = vmatprep.subr.mxu0 0.0
    %1511 = vmatpush1.msra.mxu0 %v339
    %1512 = vmatprep.subr.mxu0 0.0
    %1513 = vmatpush1.msra.mxu0 %v340
    %1514 = vmatprep.subr.mxu0 0.0
    %1515 = vmatpush1.msra.mxu0 %v341
    %1516 = vmatprep.subr.mxu0 0.0
    %1517 = vmatpush1.msra.mxu0 0.0
    %1518 = vmatprep.subr.mxu0 0.0
    %1519 = vmatpush1.msra.mxu0 0.0
    %1520 = vmatprep.subr.mxu0 0.0
    %1521 = vmatpush1.msra.mxu0 0.0
    %1522 = vmatprep.subr.mxu0 0.0
    %1523 = vmatpush1.msra.mxu0 0.0
    %1524 = vmatprep.subr.mxu0 0.0
    %1525 = vmatpush1.msra.mxu0 0.0
    %1526 = vmatprep.subr.mxu0 0.0
    %1527 = vmatpush1.msra.mxu0 0.0
    %1528 = vmatprep.subr.mxu0 0.0
    %1529 = vmatpush1.msra.mxu0 0.0
    %1530 = vmatprep.subr.mxu0 0.0
    %1531 = vmatpush1.msra.mxu0 0.0
    %1532 = vmatprep.subr.mxu0 0.0
    %1533 = vmatpush1.msra.mxu0 0.0
    %1534 = vmatprep.subr.mxu0 0.0
    %1535 = vmatpush1.msra.mxu0 0.0
    %1536 = vmatprep.subr.mxu0 0.0
    %1537 = vmatpush1.msra.mxu0 0.0
    %1538 = vmatprep.subr.mxu0 0.0
    %1539 = vmatpush1.msra.mxu0 0.0
    %1540 = vmatprep.subr.mxu0 0.0
    %1541 = vmatpush1.msra.mxu0 0.0
    %1542 = vmatprep.subr.mxu0 0.0
    %1543 = vmatpush1.msra.mxu0 0.0
    %1544 = vmatprep.subr.mxu0 0.0
    %1545 = vmatpush1.msra.mxu0 0.0
    %1546 = vmatprep.subr.mxu0 0.0
    %1547 = vmatpush1.msra.mxu0 0.0
    %1548 = vmatprep.subr.mxu0 0.0
    %1549 = vmatpush1.msra.mxu0 0.0
    %1550 = vmatprep.subr.mxu0 0.0
    %1551 = vmatpush1.msra.mxu0 0.0
    %1552 = vmatprep.subr.mxu0 0.0
    %1553 = vmatpush1.msra.mxu0 0.0
    %1554 = vmatprep.subr.mxu0 0.0
    %1555 = vmatpush1.msra.mxu0 0.0
    %1556 = vmatprep.subr.mxu0 0.0
    %1557 = vmatpush1.msra.mxu0 0.0
    %1558 = vmatprep.subr.mxu0 0.0
    %1559 = vmatpush1.msra.mxu0 0.0
    %1560 = vmatprep.subr.mxu0 0.0
    %1561 = vmatpush1.msra.mxu0 0.0
    %1562 = vmatprep.subr.mxu0 0.0
    %1563 = vmatpush1.msra.mxu0 0.0
    %1564 = vmatprep.mubr.f32.mxu0 0.0
    %1565 = vmatmul.mubr.f32.gmra.mrb[0].mxu0 %v1498
    %v1566 = vpop.f32.mrb[0].mxu0
    %v1567 = vadd.f32 %v347, %v1566
    %v1568 = vpop.f32.mrb[0].mxu0
    %1569 = vdwg.mxu0
    %v1570 = vxor.u32 %v1567, 2147483648
    %v1571 = vmul.f32 %v1570, 1.442695
    %v1572 = vpow.pop %v1571
    %v1573 = vadd.f32 %v1572, 1.0
    %v1574 = vrcp.pop %v1573
    %v1575 = vmul.f32 1.0, %v1574
    %v1576 = vtanh.pop %v1567
    %v1577 = vmul.f32 %v1575, %v1382
    %1579 = vrot.lane.b32.xlu0 %v1576, 32
    %v1580 = vpop.permute.xlu0 %1579
    %v1582 = vmul.f32 %v1575, %v1580
    %1584 = vrot.lane.b32.xlu0 %v1582, 32
    %v1585 = vpop.permute.xlu0 %1584
    %v1587 = vadd.f32 %v1577, %v1585
    %v1588 = vtanh.pop %v1587
    %1590 = vrot.lane.b32.xlu0 %v1588, 32
    %v1591 = vpop.permute.xlu0 %1590
    %v1593 = vmul.f32 %v1575, %v1591
    %s1594 = scalar_lea.vmem [#allocation2], 48
    %v1595 = vld [vmem:[%s1594] sm:$0xff]
    %v1596 = vsel %vm192, %v1490, 0
    %1598 = vmatprep.subr.mxu0 0.0
    %1599 = vmatpush1.msra.mxu0 %v330
    %1600 = vmatprep.subr.mxu0 0.0
    %1601 = vmatpush1.msra.mxu0 %v331
    %1602 = vmatprep.subr.mxu0 0.0
    %1603 = vmatpush1.msra.mxu0 %v332
    %1604 = vmatprep.subr.mxu0 0.0
    %1605 = vmatpush1.msra.mxu0 %v333
    %1606 = vmatprep.subr.mxu0 0.0
    %1607 = vmatpush1.msra.mxu0 0.0
    %1608 = vmatprep.subr.mxu0 0.0
    %1609 = vmatpush1.msra.mxu0 0.0
    %1610 = vmatprep.subr.mxu0 0.0
    %1611 = vmatpush1.msra.mxu0 0.0
    %1612 = vmatprep.subr.mxu0 0.0
    %1613 = vmatpush1.msra.mxu0 0.0
    %1614 = vmatprep.subr.mxu0 0.0
    %1615 = vmatpush1.msra.mxu0 0.0
    %1616 = vmatprep.subr.mxu0 0.0
    %1617 = vmatpush1.msra.mxu0 0.0
    %1618 = vmatprep.subr.mxu0 0.0
    %1619 = vmatpush1.msra.mxu0 0.0
    %1620 = vmatprep.subr.mxu0 0.0
    %1621 = vmatpush1.msra.mxu0 0.0
    %1622 = vmatprep.subr.mxu0 0.0
    %1623 = vmatpush1.msra.mxu0 0.0
    %1624 = vmatprep.subr.mxu0 0.0
    %1625 = vmatpush1.msra.mxu0 0.0
    %1626 = vmatprep.subr.mxu0 0.0
    %1627 = vmatpush1.msra.mxu0 0.0
    %1628 = vmatprep.subr.mxu0 0.0
    %1629 = vmatpush1.msra.mxu0 0.0
    %1630 = vmatprep.subr.mxu0 0.0
    %1631 = vmatpush1.msra.mxu0 0.0
    %1632 = vmatprep.subr.mxu0 0.0
    %1633 = vmatpush1.msra.mxu0 0.0
    %1634 = vmatprep.subr.mxu0 0.0
    %1635 = vmatpush1.msra.mxu0 0.0
    %1636 = vmatprep.subr.mxu0 0.0
    %1637 = vmatpush1.msra.mxu0 0.0
    %1638 = vmatprep.subr.mxu0 0.0
    %1639 = vmatpush1.msra.mxu0 0.0
    %1640 = vmatprep.subr.mxu0 0.0
    %1641 = vmatpush1.msra.mxu0 0.0
    %1642 = vmatprep.subr.mxu0 0.0
    %1643 = vmatpush1.msra.mxu0 0.0
    %1644 = vmatprep.subr.mxu0 0.0
    %1645 = vmatpush1.msra.mxu0 0.0
    %1646 = vmatprep.subr.mxu0 0.0
    %1647 = vmatpush1.msra.mxu0 0.0
    %1648 = vmatprep.subr.mxu0 0.0
    %1649 = vmatpush1.msra.mxu0 0.0
    %1650 = vmatprep.subr.mxu0 0.0
    %1651 = vmatpush1.msra.mxu0 0.0
    %1652 = vmatprep.subr.mxu0 0.0
    %1653 = vmatpush1.msra.mxu0 0.0
    %1654 = vmatprep.subr.mxu0 0.0
    %1655 = vmatpush1.msra.mxu0 0.0
    %1656 = vmatprep.subr.mxu0 0.0
    %1657 = vmatpush1.msra.mxu0 0.0
    %1658 = vmatprep.subr.mxu0 0.0
    %1659 = vmatpush1.msra.mxu0 0.0
    %1660 = vmatprep.subr.mxu0 0.0
    %1661 = vmatpush1.msra.mxu0 0.0
    %1662 = vmatprep.mubr.f32.mxu0 0.0
    %1663 = vmatmul.mubr.f32.gmra.mrb[0].mxu0 %v1596
    %v1664 = vpop.f32.mrb[0].mxu0
    %v1665 = vadd.f32 0.0, %v1664
    %v1666 = vpop.f32.mrb[0].mxu0
    %1667 = vdwg.mxu0
    %v1668 = vadd.f32 %v1595, %v1665
    %v1669 = vxor.u32 %v1668, 2147483648
    %v1670 = vmul.f32 %v1669, 1.442695
    %v1671 = vpow.pop %v1670
    %v1672 = vadd.f32 %v1671, 1.0
    %v1673 = vrcp.pop %v1672
    %v1674 = vmul.f32 1.0, %v1673
    %v1675 = vtanh.pop %v1668
    %v1676 = vmul.f32 %v1674, %v1481
    %1678 = vrot.lane.b32.xlu0 %v1675, 32
    %v1679 = vpop.permute.xlu0 %1678
    %v1681 = vmul.f32 %v1674, %v1679
    %1683 = vrot.lane.b32.xlu0 %v1681, 32
    %v1684 = vpop.permute.xlu0 %1683
    %v1686 = vadd.f32 %v1676, %v1684
    %v1687 = vtanh.pop %v1686
    %1689 = vrot.lane.b32.xlu0 %v1687, 32
    %v1690 = vpop.permute.xlu0 %1689
    %v1692 = vmul.f32 %v1674, %v1690
    %1694 = vrot.lane.b32.xlu0 %v1692, 64
    %v1695 = vpop.permute.xlu0 %1694
    %1698 = vrot.lane.b32.xlu0 %v1593, 96
    %v1699 = vpop.permute.xlu0 %1698
    %v1701 = vsel %vm192, %v1695, %v1699
    %v1703 = vsel %vm467, %v1701, 0
    %1705 = vmatprep.subr.mxu0 0.0
    %1706 = vmatpush1.msra.mxu0 %v334
    %1707 = vmatprep.subr.mxu0 0.0
    %1708 = vmatpush1.msra.mxu0 %v335
    %1709 = vmatprep.subr.mxu0 0.0
    %1710 = vmatpush1.msra.mxu0 %v336
    %1711 = vmatprep.subr.mxu0 0.0
    %1712 = vmatpush1.msra.mxu0 %v337
    %1713 = vmatprep.subr.mxu0 0.0
    %1714 = vmatpush1.msra.mxu0 %v338
    %1715 = vmatprep.subr.mxu0 0.0
    %1716 = vmatpush1.msra.mxu0 %v339
    %1717 = vmatprep.subr.mxu0 0.0
    %1718 = vmatpush1.msra.mxu0 %v340
    %1719 = vmatprep.subr.mxu0 0.0
    %1720 = vmatpush1.msra.mxu0 %v341
    %1721 = vmatprep.subr.mxu0 0.0
    %1722 = vmatpush1.msra.mxu0 0.0
    %1723 = vmatprep.subr.mxu0 0.0
    %1724 = vmatpush1.msra.mxu0 0.0
    %1725 = vmatprep.subr.mxu0 0.0
    %1726 = vmatpush1.msra.mxu0 0.0
    %1727 = vmatprep.subr.mxu0 0.0
    %1728 = vmatpush1.msra.mxu0 0.0
    %1729 = vmatprep.subr.mxu0 0.0
    %1730 = vmatpush1.msra.mxu0 0.0
    %1731 = vmatprep.subr.mxu0 0.0
    %1732 = vmatpush1.msra.mxu0 0.0
    %1733 = vmatprep.subr.mxu0 0.0
    %1734 = vmatpush1.msra.mxu0 0.0
    %1735 = vmatprep.subr.mxu0 0.0
    %1736 = vmatpush1.msra.mxu0 0.0
    %1737 = vmatprep.subr.mxu0 0.0
    %1738 = vmatpush1.msra.mxu0 0.0
    %1739 = vmatprep.subr.mxu0 0.0
    %1740 = vmatpush1.msra.mxu0 0.0
    %1741 = vmatprep.subr.mxu0 0.0
    %1742 = vmatpush1.msra.mxu0 0.0
    %1743 = vmatprep.subr.mxu0 0.0
    %1744 = vmatpush1.msra.mxu0 0.0
    %1745 = vmatprep.subr.mxu0 0.0
    %1746 = vmatpush1.msra.mxu0 0.0
    %1747 = vmatprep.subr.mxu0 0.0
    %1748 = vmatpush1.msra.mxu0 0.0
    %1749 = vmatprep.subr.mxu0 0.0
    %1750 = vmatpush1.msra.mxu0 0.0
    %1751 = vmatprep.subr.mxu0 0.0
    %1752 = vmatpush1.msra.mxu0 0.0
    %1753 = vmatprep.subr.mxu0 0.0
    %1754 = vmatpush1.msra.mxu0 0.0
    %1755 = vmatprep.subr.mxu0 0.0
    %1756 = vmatpush1.msra.mxu0 0.0
    %1757 = vmatprep.subr.mxu0 0.0
    %1758 = vmatpush1.msra.mxu0 0.0
    %1759 = vmatprep.subr.mxu0 0.0
    %1760 = vmatpush1.msra.mxu0 0.0
    %1761 = vmatprep.subr.mxu0 0.0
    %1762 = vmatpush1.msra.mxu0 0.0
    %1763 = vmatprep.subr.mxu0 0.0
    %1764 = vmatpush1.msra.mxu0 0.0
    %1765 = vmatprep.subr.mxu0 0.0
    %1766 = vmatpush1.msra.mxu0 0.0
    %1767 = vmatprep.subr.mxu0 0.0
    %1768 = vmatpush1.msra.mxu0 0.0
    %1769 = vmatprep.mubr.f32.mxu0 0.0
    %1770 = vmatmul.mubr.f32.gmra.mrb[0].mxu0 %v1703
    %v1771 = vpop.f32.mrb[0].mxu0
    %v1772 = vadd.f32 %v347, %v1771
    %v1773 = vpop.f32.mrb[0].mxu0
    %1774 = vdwg.mxu0
    %v1775 = vxor.u32 %v1772, 2147483648
    %v1776 = vmul.f32 %v1775, 1.442695
    %v1777 = vpow.pop %v1776
    %v1778 = vadd.f32 %v1777, 1.0
    %v1779 = vrcp.pop %v1778
    %v1780 = vmul.f32 1.0, %v1779
    %v1781 = vtanh.pop %v1772
    %v1782 = vmul.f32 %v1780, %v1587
    %1784 = vrot.lane.b32.xlu0 %v1781, 32
    %v1785 = vpop.permute.xlu0 %1784
    %v1787 = vmul.f32 %v1780, %v1785
    %1789 = vrot.lane.b32.xlu0 %v1787, 32
    %v1790 = vpop.permute.xlu0 %1789
    %v1792 = vadd.f32 %v1782, %v1790
    %v1793 = vtanh.pop %v1792
    %1795 = vrot.lane.b32.xlu0 %v1793, 32
    %v1796 = vpop.permute.xlu0 %1795
    %v1798 = vmul.f32 %v1780, %v1796
    %s1799 = scalar_lea.vmem [#allocation2], 56
    %v1800 = vld [vmem:[%s1799] sm:$0xff]
    %v1801 = vsel %vm192, %v1695, 0
    %1803 = vmatprep.subr.mxu0 0.0
    %1804 = vmatpush1.msra.mxu0 %v330
    %1805 = vmatprep.subr.mxu0 0.0
    %1806 = vmatpush1.msra.mxu0 %v331
    %1807 = vmatprep.subr.mxu0 0.0
    %1808 = vmatpush1.msra.mxu0 %v332
    %1809 = vmatprep.subr.mxu0 0.0
    %1810 = vmatpush1.msra.mxu0 %v333
    %1811 = vmatprep.subr.mxu0 0.0
    %1812 = vmatpush1.msra.mxu0 0.0
    %1813 = vmatprep.subr.mxu0 0.0
    %1814 = vmatpush1.msra.mxu0 0.0
    %1815 = vmatprep.subr.mxu0 0.0
    %1816 = vmatpush1.msra.mxu0 0.0
    %1817 = vmatprep.subr.mxu0 0.0
    %1818 = vmatpush1.msra.mxu0 0.0
    %1819 = vmatprep.subr.mxu0 0.0
    %1820 = vmatpush1.msra.mxu0 0.0
    %1821 = vmatprep.subr.mxu0 0.0
    %1822 = vmatpush1.msra.mxu0 0.0
    %1823 = vmatprep.subr.mxu0 0.0
    %1824 = vmatpush1.msra.mxu0 0.0
    %1825 = vmatprep.subr.mxu0 0.0
    %1826 = vmatpush1.msra.mxu0 0.0
    %1827 = vmatprep.subr.mxu0 0.0
    %1828 = vmatpush1.msra.mxu0 0.0
    %1829 = vmatprep.subr.mxu0 0.0
    %1830 = vmatpush1.msra.mxu0 0.0
    %1831 = vmatprep.subr.mxu0 0.0
    %1832 = vmatpush1.msra.mxu0 0.0
    %1833 = vmatprep.subr.mxu0 0.0
    %1834 = vmatpush1.msra.mxu0 0.0
    %1835 = vmatprep.subr.mxu0 0.0
    %1836 = vmatpush1.msra.mxu0 0.0
    %1837 = vmatprep.subr.mxu0 0.0
    %1838 = vmatpush1.msra.mxu0 0.0
    %1839 = vmatprep.subr.mxu0 0.0
    %1840 = vmatpush1.msra.mxu0 0.0
    %1841 = vmatprep.subr.mxu0 0.0
    %1842 = vmatpush1.msra.mxu0 0.0
    %1843 = vmatprep.subr.mxu0 0.0
    %1844 = vmatpush1.msra.mxu0 0.0
    %1845 = vmatprep.subr.mxu0 0.0
    %1846 = vmatpush1.msra.mxu0 0.0
    %1847 = vmatprep.subr.mxu0 0.0
    %1848 = vmatpush1.msra.mxu0 0.0
    %1849 = vmatprep.subr.mxu0 0.0
    %1850 = vmatpush1.msra.mxu0 0.0
    %1851 = vmatprep.subr.mxu0 0.0
    %1852 = vmatpush1.msra.mxu0 0.0
    %1853 = vmatprep.subr.mxu0 0.0
    %1854 = vmatpush1.msra.mxu0 0.0
    %1855 = vmatprep.subr.mxu0 0.0
    %1856 = vmatpush1.msra.mxu0 0.0
    %1857 = vmatprep.subr.mxu0 0.0
    %1858 = vmatpush1.msra.mxu0 0.0
    %1859 = vmatprep.subr.mxu0 0.0
    %1860 = vmatpush1.msra.mxu0 0.0
    %1861 = vmatprep.subr.mxu0 0.0
    %1862 = vmatpush1.msra.mxu0 0.0
    %1863 = vmatprep.subr.mxu0 0.0
    %1864 = vmatpush1.msra.mxu0 0.0
    %1865 = vmatprep.subr.mxu0 0.0
    %1866 = vmatpush1.msra.mxu0 0.0
    %1867 = vmatprep.mubr.f32.mxu0 0.0
    %1868 = vmatmul.mubr.f32.gmra.mrb[0].mxu0 %v1801
    %v1869 = vpop.f32.mrb[0].mxu0
    %v1870 = vadd.f32 0.0, %v1869
    %v1871 = vpop.f32.mrb[0].mxu0
    %1872 = vdwg.mxu0
    %v1873 = vadd.f32 %v1800, %v1870
    %v1874 = vxor.u32 %v1873, 2147483648
    %v1875 = vmul.f32 %v1874, 1.442695
    %v1876 = vpow.pop %v1875
    %v1877 = vadd.f32 %v1876, 1.0
    %v1878 = vrcp.pop %v1877
    %v1879 = vmul.f32 1.0, %v1878
    %v1880 = vtanh.pop %v1873
    %v1881 = vmul.f32 %v1879, %v1686
    %1883 = vrot.lane.b32.xlu0 %v1880, 32
    %v1884 = vpop.permute.xlu0 %1883
    %v1886 = vmul.f32 %v1879, %v1884
    %1888 = vrot.lane.b32.xlu0 %v1886, 32
    %v1889 = vpop.permute.xlu0 %1888
    %v1891 = vadd.f32 %v1881, %v1889
    %v1892 = vtanh.pop %v1891
    %1894 = vrot.lane.b32.xlu0 %v1892, 32
    %v1895 = vpop.permute.xlu0 %1894
    %v1897 = vmul.f32 %v1879, %v1895
    %1899 = vrot.lane.b32.xlu0 %v1897, 64
    %v1900 = vpop.permute.xlu0 %1899
    %1903 = vrot.lane.b32.xlu0 %v1798, 96
    %v1904 = vpop.permute.xlu0 %1903
    %v1906 = vsel %vm192, %v1900, %v1904
    %v1908 = vsel %vm467, %v1906, 0
    %1910 = vmatprep.subr.mxu0 0.0
    %1911 = vmatpush1.msra.mxu0 %v334
    %1912 = vmatprep.subr.mxu0 0.0
    %1913 = vmatpush1.msra.mxu0 %v335
    %1914 = vmatprep.subr.mxu0 0.0
    %1915 = vmatpush1.msra.mxu0 %v336
    %1916 = vmatprep.subr.mxu0 0.0
    %1917 = vmatpush1.msra.mxu0 %v337
    %1918 = vmatprep.subr.mxu0 0.0
    %1919 = vmatpush1.msra.mxu0 %v338
    %1920 = vmatprep.subr.mxu0 0.0
    %1921 = vmatpush1.msra.mxu0 %v339
    %1922 = vmatprep.subr.mxu0 0.0
    %1923 = vmatpush1.msra.mxu0 %v340
    %1924 = vmatprep.subr.mxu0 0.0
    %1925 = vmatpush1.msra.mxu0 %v341
    %1926 = vmatprep.subr.mxu0 0.0
    %1927 = vmatpush1.msra.mxu0 0.0
    %1928 = vmatprep.subr.mxu0 0.0
    %1929 = vmatpush1.msra.mxu0 0.0
    %1930 = vmatprep.subr.mxu0 0.0
    %1931 = vmatpush1.msra.mxu0 0.0
    %1932 = vmatprep.subr.mxu0 0.0
    %1933 = vmatpush1.msra.mxu0 0.0
    %1934 = vmatprep.subr.mxu0 0.0
    %1935 = vmatpush1.msra.mxu0 0.0
    %1936 = vmatprep.subr.mxu0 0.0
    %1937 = vmatpush1.msra.mxu0 0.0
    %1938 = vmatprep.subr.mxu0 0.0
    %1939 = vmatpush1.msra.mxu0 0.0
    %1940 = vmatprep.subr.mxu0 0.0
    %1941 = vmatpush1.msra.mxu0 0.0
    %1942 = vmatprep.subr.mxu0 0.0
    %1943 = vmatpush1.msra.mxu0 0.0
    %1944 = vmatprep.subr.mxu0 0.0
    %1945 = vmatpush1.msra.mxu0 0.0
    %1946 = vmatprep.subr.mxu0 0.0
    %1947 = vmatpush1.msra.mxu0 0.0
    %1948 = vmatprep.subr.mxu0 0.0
    %1949 = vmatpush1.msra.mxu0 0.0
    %1950 = vmatprep.subr.mxu0 0.0
    %1951 = vmatpush1.msra.mxu0 0.0
    %1952 = vmatprep.subr.mxu0 0.0
    %1953 = vmatpush1.msra.mxu0 0.0
    %1954 = vmatprep.subr.mxu0 0.0
    %1955 = vmatpush1.msra.mxu0 0.0
    %1956 = vmatprep.subr.mxu0 0.0
    %1957 = vmatpush1.msra.mxu0 0.0
    %1958 = vmatprep.subr.mxu0 0.0
    %1959 = vmatpush1.msra.mxu0 0.0
    %1960 = vmatprep.subr.mxu0 0.0
    %1961 = vmatpush1.msra.mxu0 0.0
    %1962 = vmatprep.subr.mxu0 0.0
    %1963 = vmatpush1.msra.mxu0 0.0
    %1964 = vmatprep.subr.mxu0 0.0
    %1965 = vmatpush1.msra.mxu0 0.0
    %1966 = vmatprep.subr.mxu0 0.0
    %1967 = vmatpush1.msra.mxu0 0.0
    %1968 = vmatprep.subr.mxu0 0.0
    %1969 = vmatpush1.msra.mxu0 0.0
    %1970 = vmatprep.subr.mxu0 0.0
    %1971 = vmatpush1.msra.mxu0 0.0
    %1972 = vmatprep.subr.mxu0 0.0
    %1973 = vmatpush1.msra.mxu0 0.0
    %1974 = vmatprep.mubr.f32.mxu0 0.0
    %1975 = vmatmul.mubr.f32.gmra.mrb[0].mxu0 %v1908
    %v1976 = vpop.f32.mrb[0].mxu0
    %v1977 = vadd.f32 %v347, %v1976
    %v1978 = vpop.f32.mrb[0].mxu0
    %1979 = vdwg.mxu0
    %v1980 = vxor.u32 %v1977, 2147483648
    %v1981 = vmul.f32 %v1980, 1.442695
    %v1982 = vpow.pop %v1981
    %v1983 = vadd.f32 %v1982, 1.0
    %v1984 = vrcp.pop %v1983
    %v1985 = vmul.f32 1.0, %v1984
    %v1986 = vtanh.pop %v1977
    %v1987 = vmul.f32 %v1985, %v1792
    %1989 = vrot.lane.b32.xlu0 %v1986, 32
    %v1990 = vpop.permute.xlu0 %1989
    %v1992 = vmul.f32 %v1985, %v1990
    %1994 = vrot.lane.b32.xlu0 %v1992, 32
    %v1995 = vpop.permute.xlu0 %1994
    %v1997 = vadd.f32 %v1987, %v1995
    %v1998 = vtanh.pop %v1997
    %2000 = vrot.lane.b32.xlu0 %v1998, 32
    %v2001 = vpop.permute.xlu0 %2000
    %v2003 = vmul.f32 %v1985, %v2001
    %2004 = vst.msk [vmem:[#allocation20] sm:$0xff] %vm192, %v1900
    %2006 = vrot.lane.b32.xlu0 %v1891, 96
    %v2007 = vpop.permute.xlu0 %2006
    %2009 = vst.msk [vmem:[#allocation22] sm:$0xff] %vm192, %v2007
    %2011 = vrot.lane.b32.xlu0 %v2003, 64
    %v2012 = vpop.permute.xlu0 %2011
    %2014 = vst.msk [vmem:[%s350] sm:$0xff] %vm192, %v2012
    %2016 = vrot.lane.b32.xlu0 %v1997, 96
    %v2017 = vpop.permute.xlu0 %2016
    %2019 = vst.msk [vmem:[%s353] sm:$0xff] %vm192, %v2017
    // Predicated region
    $region82: #{tpu_custom_call.1} parent=1 // pred_check
      %p2020 = pneg %p160
    $region83: #{tpu_custom_call.1} parent=1 // pred_check_branch
      %2022 = sbr.rel (%p2020) target = $region85
    $region84: #{tpu_custom_call.1} parent=1 // pred_region
      %v2023 = vld [vmem:[#allocation18] sm:$0xff]
      %v2024 = vld [vmem:[#allocation18 + $0x8] sm:$0xff]
      %v2025 = vld [vmem:[#allocation18 + $0x10] sm:$0xff]
      %v2026 = vld [vmem:[#allocation18 + $0x18] sm:$0xff]
      %v2027 = vld [vmem:[#allocation3] sm:$0x1]
      %v2029 = vlaneseq
      %v2030 = vshrl.u32 %v2029, 7
      %v2031 = vsub.s32 0, %v2030
      %v2032 = vrot.slane %v2027, %v2031
      %v2034 = vsel %vm192, %v2012, 0
      %2036 = vmatprep.subr.mxu0 0.0
      %2037 = vmatpush1.msra.mxu0 %v2023
      %2038 = vmatprep.subr.mxu0 0.0
      %2039 = vmatpush1.msra.mxu0 %v2024
      %2040 = vmatprep.subr.mxu0 0.0
      %2041 = vmatpush1.msra.mxu0 %v2025
      %2042 = vmatprep.subr.mxu0 0.0
      %2043 = vmatpush1.msra.mxu0 %v2026
      %2044 = vmatprep.subr.mxu0 0.0
      %2045 = vmatpush1.msra.mxu0 0.0
      %2046 = vmatprep.subr.mxu0 0.0
      %2047 = vmatpush1.msra.mxu0 0.0
      %2048 = vmatprep.subr.mxu0 0.0
      %2049 = vmatpush1.msra.mxu0 0.0
      %2050 = vmatprep.subr.mxu0 0.0
      %2051 = vmatpush1.msra.mxu0 0.0
      %2052 = vmatprep.subr.mxu0 0.0
      %2053 = vmatpush1.msra.mxu0 0.0
      %2054 = vmatprep.subr.mxu0 0.0
      %2055 = vmatpush1.msra.mxu0 0.0
      %2056 = vmatprep.subr.mxu0 0.0
      %2057 = vmatpush1.msra.mxu0 0.0
      %2058 = vmatprep.subr.mxu0 0.0
      %2059 = vmatpush1.msra.mxu0 0.0
      %2060 = vmatprep.subr.mxu0 0.0
      %2061 = vmatpush1.msra.mxu0 0.0
      %2062 = vmatprep.subr.mxu0 0.0
      %2063 = vmatpush1.msra.mxu0 0.0
      %2064 = vmatprep.subr.mxu0 0.0
      %2065 = vmatpush1.msra.mxu0 0.0
      %2066 = vmatprep.subr.mxu0 0.0
      %2067 = vmatpush1.msra.mxu0 0.0
      %2068 = vmatprep.subr.mxu0 0.0
      %2069 = vmatpush1.msra.mxu0 0.0
      %2070 = vmatprep.subr.mxu0 0.0
      %2071 = vmatpush1.msra.mxu0 0.0
      %2072 = vmatprep.subr.mxu0 0.0
      %2073 = vmatpush1.msra.mxu0 0.0
      %2074 = vmatprep.subr.mxu0 0.0
      %2075 = vmatpush1.msra.mxu0 0.0
      %2076 = vmatprep.subr.mxu0 0.0
      %2077 = vmatpush1.msra.mxu0 0.0
      %2078 = vmatprep.subr.mxu0 0.0
      %2079 = vmatpush1.msra.mxu0 0.0
      %2080 = vmatprep.subr.mxu0 0.0
      %2081 = vmatpush1.msra.mxu0 0.0
      %2082 = vmatprep.subr.mxu0 0.0
      %2083 = vmatpush1.msra.mxu0 0.0
      %2084 = vmatprep.subr.mxu0 0.0
      %2085 = vmatpush1.msra.mxu0 0.0
      %2086 = vmatprep.subr.mxu0 0.0
      %2087 = vmatpush1.msra.mxu0 0.0
      %2088 = vmatprep.subr.mxu0 0.0
      %2089 = vmatpush1.msra.mxu0 0.0
      %2090 = vmatprep.subr.mxu0 0.0
      %2091 = vmatpush1.msra.mxu0 0.0
      %2092 = vmatprep.subr.mxu0 0.0
      %2093 = vmatpush1.msra.mxu0 0.0
      %2094 = vmatprep.subr.mxu0 0.0
      %2095 = vmatpush1.msra.mxu0 0.0
      %2096 = vmatprep.subr.mxu0 0.0
      %2097 = vmatpush1.msra.mxu0 0.0
      %2098 = vmatprep.subr.mxu0 0.0
      %2099 = vmatpush1.msra.mxu0 0.0
      %2100 = vmatprep.mubr.f32.mxu0 0.0
      %2101 = vmatmul.mubr.f32.gmra.mrb[0].mxu0 %v2034
      %v2102 = vpop.f32.mrb[0].mxu0
      %v2103 = vadd.f32 %v2032, %v2102
      %v2104 = vpop.f32.mrb[0].mxu0
      %2105 = vdwg.mxu0
      %v2106 = vxor.u32 %v2103, 2147483648
      %v2107 = vmul.f32 %v2106, 1.442695
      %v2108 = vpow.pop %v2107
      %v2109 = vadd.f32 %v2108, 1.0
      %v2110 = vrcp.pop %v2109
      %v2111 = vmul.f32 1.0, %v2110
      %vm2112 = vcmask 7168
      %2113 = vst.msk [vmem:[#allocation19] sm:$0xff] %vm2112, %v2111
    $region85: #{tpu_custom_call.1} parent=1 // pred_fallthru
      _
    // Predicated region
    $region86: #{tpu_custom_call.1} parent=1 // pred_check
      _
    $region87: #{tpu_custom_call.1} parent=1 // pred_check_branch
      %2115 = sbr.rel (0) target = $region89
    $region88: #{tpu_custom_call.1} parent=1 // pred_region
      %s2117 = ssub.s32 128, 128
      %2118 = vsyncadd [#allocation6], %s2117
      %s2120 = sshll.u32 [#allocation19], 4
      %s2121 = int_to_ptr.vmem [resolvable:$true] %s2120
      %2123 = dma.vmem_to_hbm [thread:$0]  %s2121, 128, %s10, [#allocation6]
    $region89: #{tpu_custom_call.1} parent=1 // pred_fallthru
      _
    // Predicated region
    $region90: #{tpu_custom_call.1} parent=1 // pred_check
      _
    $region91: #{tpu_custom_call.1} parent=1 // pred_check_branch
      %2125 = sbr.rel (0) target = $region93
    $region92: #{tpu_custom_call.1} parent=1 // pred_region
      %s2127 = ssub.s32 256, 256
      %2128 = vsyncadd [#allocation21], %s2127
      %s2129 = sshll.u32 [#allocation20], 4
      %s2130 = int_to_ptr.vmem [resolvable:$true] %s2129
      %2135 = dma.vmem_to_hbm [thread:$0]  %s2130, 256, %s11, [#allocation21], 128, 128, 8
    $region93: #{tpu_custom_call.1} parent=1 // pred_fallthru
      _
    // Predicated region
    $region94: #{tpu_custom_call.1} parent=1 // pred_check
      _
    $region95: #{tpu_custom_call.1} parent=1 // pred_check_branch
      %2137 = sbr.rel (0) target = $region97
    $region96: #{tpu_custom_call.1} parent=1 // pred_region
      %s2139 = ssub.s32 256, 256
      %2140 = vsyncadd [#allocation21], %s2139
      %s2141 = sshll.u32 [#allocation22], 4
      %s2142 = int_to_ptr.vmem [resolvable:$true] %s2141
      %2147 = dma.vmem_to_hbm [thread:$0]  %s2142, 256, %s12, [#allocation21], 128, 128, 8
    $region97: #{tpu_custom_call.1} parent=1 // pred_fallthru
      _
    // Predicated region
    $region98: #{tpu_custom_call.1} parent=1 // pred_check
      _
    $region99: #{tpu_custom_call.1} parent=1 // pred_check_branch
      %2149 = sbr.rel (0) target = $region101
    $region100: #{tpu_custom_call.1} parent=1 // pred_region
      %2150 = dma.done [#allocation6], 128
    $region101: #{tpu_custom_call.1} parent=1 // pred_fallthru
      _
    // Predicated region
    $region102: #{tpu_custom_call.1} parent=1 // pred_check
      _
    $region103: #{tpu_custom_call.1} parent=1 // pred_check_branch
      %2152 = sbr.rel (0) target = $region105
    $region104: #{tpu_custom_call.1} parent=1 // pred_region
      %2153 = dma.done [#allocation21], 256
    $region105: #{tpu_custom_call.1} parent=1 // pred_fallthru
      _
    // Predicated region
    $region106: #{tpu_custom_call.1} parent=1 // pred_check
      _
    $region107: #{tpu_custom_call.1} parent=1 // pred_check_branch
      %2155 = sbr.rel (0) target = $region109
    $region108: #{tpu_custom_call.1} parent=1 // pred_region
      %2156 = dma.done [#allocation21], 256
    $region109: #{tpu_custom_call.1} parent=1 // pred_fallthru
      _
    %2157 = vsyncpa [#allocation5], 1
    %2158 = vsyncpa [#allocation8], 1
    %2159 = vsyncpa [#allocation11], 1
    %2160 = vsyncpa [#allocation14], 1
    %2161 = vsyncpa [#allocation17], 1
    %2162 = vsyncpa [#allocation6], 1
    %2163 = vsyncpa [#allocation21], 1

</llo_original>
